<compile_context>
chip_gen: v7x
topology: tpu7x:2x2x1
jax: 0.10.0
libtpu: 0.0.40
codegen_flags: <defaults>
</compile_context>

<pallas_src>
import jax
import jax.numpy as jnp
from jax import lax
from jax.experimental import pallas as pl
from jax.experimental.pallas import tpu as pltpu

E = 64            # character embedding dim (Embedding(len(dict), 64))
H = 64            # LSTM hidden size per direction (bidirectional -> 2H)
NEG_INF = -1e30   # additive mask for padded vocabulary columns (kept in f32)


def lambo_subword_kernel(xc_ref, wih_ref, whh_ref, b_ref,
                         wlin_ref, blin_ref, wnt_ref, vbias_ref,
                         out_ref,
                         gxi_ref, hsa_ref, hsb_ref):
    L, BT, Vp = out_ref.shape
    two_e = xc_ref.shape[-1]

    # ---- hoisted, pre-interleaved input projection (one bf16 MXU call) -----
    # xc row (s, b) = [emb(t=s, b) | emb(t=L-1-s, b)]; wih is block-structured
    # so gxi row s already holds [fwd gates(t=s) | bwd gates(t=L-1-s)] with
    # each of the 4 gates (i,f,g,o) occupying a full 128-lane block.
    xc = xc_ref[...].reshape(L * BT, two_e)
    gxi_ref[...] = (jnp.dot(xc.astype(jnp.bfloat16), wih_ref[...],
                            preferred_element_type=jnp.float32) + b_ref[...])

    # ---- fused bidirectional recurrence (serial critical path) -------------
    # TODO(synk): pin whh in the MXU weight registers across the unrolled loop
    # (pltpu.matmul_push_rhs / matmul_acc_lhs / matmul_pop) so the (2H, 8H)
    # weights are not re-streamed every step; kept as jnp.dot here for
    # guaranteed lowering.
    def step(s, carry):
        h, c = carry                               # (BT, 2H) = [h_f | h_b]
        r_f = pl.multiple_of(s * BT, BT)           # BT is a multiple of 8
        r_b = pl.multiple_of((L - 1 - s) * BT, BT)
        gates = gxi_ref[pl.ds(r_f, BT), :] + jnp.dot(
            h, whh_ref[...], preferred_element_type=jnp.float32)   # (BT, 8H)
        i = jax.nn.sigmoid(gates[:, 0:2 * H])
        f = jax.nn.sigmoid(gates[:, 2 * H:4 * H])
        g = jnp.tanh(gates[:, 4 * H:6 * H])
        o = jax.nn.sigmoid(gates[:, 6 * H:8 * H])
        c_new = f * c + i * g
        h_new = o * jnp.tanh(c_new)
        # two unmasked lane-dense 128-lane stores (step-major + time-major);
        # the fwd/bwd halves are recombined once after the loop.
        hsa_ref[pl.ds(r_f, BT), :] = h_new
        hsb_ref[pl.ds(r_b, BT), :] = h_new
        return h_new, c_new

    zeros = jnp.zeros((BT, 2 * H), jnp.float32)
    lax.fori_loop(0, L, step, (zeros, zeros), unroll=True)

    # ---- de-interleave + dense linear: one (L*BT, 2H) @ (2H, E) bf16 GEMM --
    lane = lax.broadcasted_iota(jnp.int32, (L * BT, 2 * H), 1)
    hid = jnp.where(lane < H, hsa_ref[...], hsb_ref[...])   # [h_f(t) | h_b(t)]
    red = jnp.dot(hid.astype(jnp.bfloat16), wlin_ref[...],
                  preferred_element_type=jnp.float32) + blin_ref[...]

    # ---- inverted embedding (cosine similarity) + log-softmax (f32) --------
    inv_norm = lax.rsqrt(
        jnp.maximum(jnp.sum(red * red, axis=-1, keepdims=True), 1e-24))
    rn = red * inv_norm
    # TODO(synk): for large dictionaries, row-tile this scores/log-softmax
    # stage over L*BT blocks to bound the working set under v7x's 64 MiB VMEM.
    scores = jnp.dot(rn.astype(jnp.bfloat16), wnt_ref[...],
                     preferred_element_type=jnp.float32) + vbias_ref[...]
    m = jnp.max(scores, axis=-1, keepdims=True)
    z = scores - m
    logp = z - jnp.log(jnp.sum(jnp.exp(z), axis=-1, keepdims=True))
    out_ref[...] = logp.reshape(L, BT, Vp).astype(out_ref.dtype)


def prepare_params(params):
    """Param-load-time weight rearrangement for the kernel (pure JAX glue).

    * the input projection is built for the combined [emb(t) | emb(L-1-t)]
      input: rows 0..E-1 feed the fwd gate lanes, rows E..2E-1 the bwd lanes,
      with each gate a full 128-lane block [gate_fwd(64) | gate_bwd(64)],
    * the recurrent weight is block-diagonal over the combined [h_f | h_b]
      state and kept in f32 (serially-compounding path),
    * the three big GEMM weights (wih, wlin, wnt) are stored in bf16,
    * the inverted-embedding matrix is pre-normalized, transposed, padded to a
      lane-dense (E, V_pad) layout, and an additive (1, V_pad) -inf bias row
      masks the padded vocab columns.
    """
    V = params['emb_w'].shape[0]
    Vp = ((V + 127) // 128) * 128

    def merge_gate_cols(mf, mb):
        return jnp.concatenate(
            [m[:, g * H:(g + 1) * H] for g in range(4) for m in (mf, mb)],
            axis=-1)                                               # (?, 8H)

    zE = jnp.zeros((E, H), jnp.float32)
    wih_blocks = []
    for g in range(4):
        wih_blocks.append(
            jnp.concatenate([params['wih_f'][:, g * H:(g + 1) * H], zE], axis=0))
        wih_blocks.append(
            jnp.concatenate([zE, params['wih_b'][:, g * H:(g + 1) * H]], axis=0))
    wih = jnp.concatenate(wih_blocks, axis=-1).astype(jnp.bfloat16)   # (2E, 8H)

    b = merge_gate_cols(params['b_f'], params['b_b'])                 # (1, 8H)

    zH = jnp.zeros((H, H), jnp.float32)
    whh_blocks = []
    for g in range(4):
        whh_blocks.append(
            jnp.concatenate([params['whh_f'][:, g * H:(g + 1) * H], zH], axis=0))
        whh_blocks.append(
            jnp.concatenate([zH, params['whh_b'][:, g * H:(g + 1) * H]], axis=0))
    whh = jnp.concatenate(whh_blocks, axis=-1)                        # (2H, 8H) f32

    w = params['emb_w']
    wn = w / jnp.maximum(jnp.linalg.norm(w, axis=-1, keepdims=True), 1e-12)
    wnt = jnp.zeros((E, Vp), jnp.float32).at[:, :V].set(wn.T).astype(jnp.bfloat16)

    vbias = jnp.where(jnp.arange(Vp) < V, 0.0, NEG_INF).astype(jnp.float32)[None, :]

    return dict(emb_w=params['emb_w'], wih=wih, whh=whh, b=b,
                wlin=params['wlin'].astype(jnp.bfloat16), blin=params['blin'],
                wnt=wnt, vbias=vbias, V=V, Vp=Vp)


def lambo_subword_forward(x_char, prep, *, batch_tile=8):
    """x_char: (B, L) int32 character indices -> (B, L, V) log-probabilities."""
    B, L = x_char.shape
    V, Vp = prep['V'], prep['Vp']
    BT = batch_tile                          # batch tile; multiple of 8 (f32 sublanes)
    assert BT % 8 == 0
    Bp = ((B + BT - 1) // BT) * BT
    if Bp != B:
        # pad batch with valid index-0 rows; padded rows are independent and
        # are sliced off before returning to the caller.
        x_char = jnp.pad(x_char, ((0, Bp - B), (0, 0)))

    # time-major gather (no extra transpose of gathered activations), plus the
    # time-reversed copy feeding the backward direction's input lanes.
    idx_t = x_char.T.reshape(-1)                                        # (L*Bp,)
    emb_f = jnp.take(prep['emb_w'], idx_t, axis=0).reshape(L, Bp, E)
    xc = jnp.concatenate([emb_f, emb_f[::-1]], axis=-1)                 # (L, Bp, 2E)

    def wspec(arr):   # whole (small) parameter resident in VMEM every grid step
        return pl.BlockSpec(arr.shape, lambda j: (0, 0))

    # Batch-tile grid: independent tiles, "parallel" for megacore sharding.
    # Default Buffered(2) pipelining on the xc tiles is plenty (the per-tile
    # recurrence is long compared to the tile DMA).
    # TODO(synk): emit bf16 log-probs (out_shape dtype) if downstream allows it.
    kernel = pl.pallas_call(
        lambo_subword_kernel,
        out_shape=jax.ShapeDtypeStruct((L, Bp, Vp), jnp.float32),
        grid=(Bp // BT,),
        in_specs=[pl.BlockSpec((L, BT, 2 * E), lambda j: (0, j, 0)),
                  wspec(prep['wih']), wspec(prep['whh']), wspec(prep['b']),
                  wspec(prep['wlin']), wspec(prep['blin']),
                  wspec(prep['wnt']), wspec(prep['vbias'])],
        out_specs=pl.BlockSpec((L, BT, Vp), lambda j: (0, j, 0)),
        scratch_shapes=[
            pltpu.VMEM((L * BT, 8 * H), jnp.float32),   # interleaved input gates
            pltpu.VMEM((L * BT, 2 * H), jnp.float32),   # step-major hidden
            pltpu.VMEM((L * BT, 2 * H), jnp.float32),   # time-major hidden
        ],
        compiler_params=pltpu.CompilerParams(
            dimension_semantics=("parallel",),
            vmem_limit_bytes=32 * 1024 * 1024),
    )
    out = kernel(xc, prep['wih'], prep['whh'], prep['b'],
                 prep['wlin'], prep['blin'], prep['wnt'], prep['vbias'])
    out = out[:, :B, :V]                    # drop batch + vocab padding
    return jnp.transpose(out, (1, 0, 2))    # (B, L, V)


def ref_forward(x_char, params):
    """Pure-JAX f32 reference matching the PyTorch forward semantics."""
    B = x_char.shape[0]
    emb = params['emb_w'][x_char]                           # (B, L, E)
    xs = jnp.transpose(emb, (1, 0, 2))                      # (L, B, E)

    def run(seq, wih, whh, b):
        def step(carry, x):
            h, c = carry
            g = x @ wih + h @ whh + b
            i = jax.nn.sigmoid(g[:, :H])
            f = jax.nn.sigmoid(g[:, H:2 * H])
            gg = jnp.tanh(g[:, 2 * H:3 * H])
            o = jax.nn.sigmoid(g[:, 3 * H:])
            c = f * c + i * gg
            h = o * jnp.tanh(c)
            return (h, c), h
        init = (jnp.zeros((B, H), jnp.float32), jnp.zeros((B, H), jnp.float32))
        _, hs = jax.lax.scan(step, init, seq)
        return hs                                           # (L, B, H)

    hs_f = run(xs, params['wih_f'], params['whh_f'], params['b_f'][0])
    hs_b = run(xs[::-1], params['wih_b'], params['whh_b'], params['b_b'][0])[::-1]
    hid = jnp.concatenate([hs_f, hs_b], axis=-1)            # (L, B, 2H)
    red = jnp.einsum('lbk,ke->lbe', hid, params['wlin']) + params['blin'][0]
    rn = red / jnp.maximum(jnp.linalg.norm(red, axis=-1, keepdims=True), 1e-12)
    w = params['emb_w']
    wn = w / jnp.maximum(jnp.linalg.norm(w, axis=-1, keepdims=True), 1e-12)
    scores = jnp.einsum('lbe,ve->lbv', rn, wn)
    logp = jax.nn.log_softmax(scores, axis=-1)
    return jnp.transpose(logp, (1, 0, 2))


if __name__ == "__main__":
    B, L, V = 2, 8, 40       # batch, max token length, dictionary size
    PAD = 0                  # dict['<PAD>']

    key = jax.random.PRNGKey(0)
    ks = jax.random.split(key, 12)
    k = 1.0 / jnp.sqrt(jnp.float32(H))
    u = lambda kk, shape: jax.random.uniform(kk, shape, jnp.float32, -k, k)

    # Embedding(len(dict), 64, padding_idx=PAD): N(0,1) init, PAD row zeroed
    emb_w = jax.random.normal(ks[0], (V, E), dtype=jnp.float32)
    emb_w = emb_w.at[PAD].set(0.0)

    params = dict(
        emb_w=emb_w,
        # LSTM weights stored pre-transposed: (E, 4H) / (H, 4H); gate order i,f,g,o
        wih_f=u(ks[1], (4 * H, E)).T,
        whh_f=u(ks[2], (4 * H, H)).T,
        b_f=(u(ks[3], (4 * H,)) + u(ks[4], (4 * H,))).reshape(1, 4 * H),
        wih_b=u(ks[5], (4 * H, E)).T,
        whh_b=u(ks[6], (4 * H, H)).T,
        b_b=(u(ks[7], (4 * H,)) + u(ks[8], (4 * H,))).reshape(1, 4 * H),
        # Linear(2H -> E): weight (E, 2H) pre-transposed to (2H, E)
        wlin=u(ks[9], (E, 2 * H)).T,
        blin=u(ks[10], (E,)).reshape(1, E),
    )

    x_char = jax.random.randint(ks[11], (B, L), 0, V, dtype=jnp.int32)

    prep = prepare_params(params)
    out = jax.block_until_ready(lambo_subword_forward(x_char, prep))
    ref = ref_forward(x_char, params)
    assert out.shape == (B, L, V)
    # Tolerance loosened vs a pure-f32 kernel: the three throughput GEMMs use
    # bf16 operands (f32 accumulation); the recurrence / softmax stay f32.
    assert bool(jnp.allclose(out, ref, rtol=5e-2, atol=5e-2)), (
        float(jnp.max(jnp.abs(out - ref))))
    print("KERNEL_OK")
</pallas_src>

<mosaic_0001>
module attributes {stable_mosaic.version = 11 : i64} {
  func.func @lambo_subword_kernel(%arg0: i32, %arg1: memref<8x8x128xf32, #tpu.memory_space<vmem>>, %arg2: memref<128x512xbf16, #tpu.memory_space<vmem>>, %arg3: memref<128x512xf32, #tpu.memory_space<vmem>>, %arg4: memref<1x512xf32, #tpu.memory_space<vmem>>, %arg5: memref<128x64xbf16, #tpu.memory_space<vmem>>, %arg6: memref<1x64xf32, #tpu.memory_space<vmem>>, %arg7: memref<64x128xbf16, #tpu.memory_space<vmem>>, %arg8: memref<1x128xf32, #tpu.memory_space<vmem>>, %arg9: memref<8x8x128xf32, #tpu.memory_space<vmem>>, %arg10: memref<64x512xf32, #tpu.memory_space<vmem>>, %arg11: memref<64x128xf32, #tpu.memory_space<vmem>>, %arg12: memref<64x128xf32, #tpu.memory_space<vmem>>) attributes {dimension_semantics = [#tpu.dimension_semantics<parallel>], iteration_bounds = array<i64: 1>, scalar_prefetch = 0 : i64, scratch_operands = 3 : i64, tpu.core_type = #tpu.core_type<tc>, window_params = [{transform_indices = @transform_0, window_bounds = array<i64: 8, 8, 128>}, {pipeline_mode = #tpu.pipeline_mode<synchronous>, transform_indices = @transform_1, window_bounds = array<i64: 128, 512>}, {pipeline_mode = #tpu.pipeline_mode<synchronous>, transform_indices = @transform_2, window_bounds = array<i64: 128, 512>}, {pipeline_mode = #tpu.pipeline_mode<synchronous>, transform_indices = @transform_3, window_bounds = array<i64: 1, 512>}, {pipeline_mode = #tpu.pipeline_mode<synchronous>, transform_indices = @transform_4, window_bounds = array<i64: 128, 64>}, {pipeline_mode = #tpu.pipeline_mode<synchronous>, transform_indices = @transform_5, window_bounds = array<i64: 1, 64>}, {pipeline_mode = #tpu.pipeline_mode<synchronous>, transform_indices = @transform_6, window_bounds = array<i64: 64, 128>}, {pipeline_mode = #tpu.pipeline_mode<synchronous>, transform_indices = @transform_7, window_bounds = array<i64: 1, 128>}, {transform_indices = @transform_8, window_bounds = array<i64: 8, 8, 128>}]} {
    %c0 = arith.constant 0 : index
    %c0_0 = arith.constant 0 : index
    %c0_1 = arith.constant 0 : index
    %0 = vector.load %arg1[%c0, %c0_0, %c0_1] : memref<8x8x128xf32, #tpu.memory_space<vmem>>, vector<8x8x128xf32>
    %1 = vector.shape_cast %0 : vector<8x8x128xf32> to vector<64x128xf32>
    %2 = arith.truncf %1 : vector<64x128xf32> to vector<64x128xbf16>
    %c0_2 = arith.constant 0 : index
    %c0_3 = arith.constant 0 : index
    %3 = vector.load %arg2[%c0_2, %c0_3] : memref<128x512xbf16, #tpu.memory_space<vmem>>, vector<128x512xbf16>
    %cst = arith.constant dense<0.000000e+00> : vector<64x512xf32>
    %4 = tpu.matmul %2, %3, %cst {dimension_numbers = #tpu.dot_dimension_numbers<[1], [0], [0], [1], [0, 0, 1, 1], [], []>} : vector<64x128xbf16>, vector<128x512xbf16>, vector<64x512xf32> -> vector<64x512xf32>
    %c0_4 = arith.constant 0 : index
    %c0_5 = arith.constant 0 : index
    %5 = vector.load %arg4[%c0_4, %c0_5] : memref<1x512xf32, #tpu.memory_space<vmem>>, vector<1x512xf32>
    %6 = vector.broadcast %5 : vector<1x512xf32> to vector<64x512xf32>
    %7 = arith.addf %4, %6 : vector<64x512xf32>
    %c0_6 = arith.constant 0 : index
    %c0_7 = arith.constant 0 : index
    %8 = vector.load %arg10[%c0_6, %c0_7] : memref<64x512xf32, #tpu.memory_space<vmem>>, vector<64x512xf32>
    tpu.vector_store %arg10[%c0_6, %c0_7], %7 {strides = array<i32>} : memref<64x512xf32, #tpu.memory_space<vmem>>, vector<64x512xf32>,
    %cst_8 = arith.constant 0.000000e+00 : f32
    %9 = vector.broadcast %cst_8 : f32 to vector<8x128xf32>
    %c0_i32 = arith.constant 0 : i32
    %c8_i32 = arith.constant 8 : i32
    %10 = arith.muli %c0_i32, %c8_i32 : i32
    %11 = tpu.assume_multiple %10, 8 : i32
    %c7_i32 = arith.constant 7 : i32
    %12 = arith.subi %c7_i32, %c0_i32 : i32
    %c8_i32_9 = arith.constant 8 : i32
    %13 = arith.muli %12, %c8_i32_9 : i32
    %14 = tpu.assume_multiple %13, 8 : i32
    %15 = arith.index_cast %11 : i32 to index
    %c0_10 = arith.constant 0 : index
    %16 = vector.load %arg10[%15, %c0_10] : memref<64x512xf32, #tpu.memory_space<vmem>>, vector<8x512xf32>
    %c0_11 = arith.constant 0 : index
    %c0_12 = arith.constant 0 : index
    %17 = vector.load %arg3[%c0_11, %c0_12] : memref<128x512xf32, #tpu.memory_space<vmem>>, vector<128x512xf32>
    %cst_13 = arith.constant dense<0.000000e+00> : vector<8x512xf32>
    %18 = tpu.matmul %9, %17, %cst_13 {dimension_numbers = #tpu.dot_dimension_numbers<[1], [0], [0], [1], [0, 0, 1, 1], [], []>} : vector<8x128xf32>, vector<128x512xf32>, vector<8x512xf32> -> vector<8x512xf32>
    %19 = arith.addf %16, %18 : vector<8x512xf32>
    %20 = vector.extract_strided_slice %19 {offsets = [0, 0], sizes = [8, 128], strides = [1, 1]} : vector<8x512xf32> to vector<8x128xf32>
    %21 = arith.negf %20 : vector<8x128xf32>
    %22 = math.exp %21 : vector<8x128xf32>
    %cst_14 = arith.constant 1.000000e+00 : f32
    %23 = vector.broadcast %cst_14 : f32 to vector<8x128xf32>
    %24 = arith.addf %23, %22 : vector<8x128xf32>
    %25 = arith.divf %23, %24 : vector<8x128xf32>
    %26 = vector.extract_strided_slice %19 {offsets = [0, 128], sizes = [8, 128], strides = [1, 1]} : vector<8x512xf32> to vector<8x128xf32>
    %27 = arith.negf %26 : vector<8x128xf32>
    %28 = math.exp %27 : vector<8x128xf32>
    %cst_15 = arith.constant 1.000000e+00 : f32
    %29 = vector.broadcast %cst_15 : f32 to vector<8x128xf32>
    %30 = arith.addf %29, %28 : vector<8x128xf32>
    %31 = arith.divf %29, %30 : vector<8x128xf32>
    %32 = vector.extract_strided_slice %19 {offsets = [0, 256], sizes = [8, 128], strides = [1, 1]} : vector<8x512xf32> to vector<8x128xf32>
    %33 = math.tanh %32 : vector<8x128xf32>
    %34 = vector.extract_strided_slice %19 {offsets = [0, 384], sizes = [8, 128], strides = [1, 1]} : vector<8x512xf32> to vector<8x128xf32>
    %35 = arith.negf %34 : vector<8x128xf32>
    %36 = math.exp %35 : vector<8x128xf32>
    %cst_16 = arith.constant 1.000000e+00 : f32
    %37 = vector.broadcast %cst_16 : f32 to vector<8x128xf32>
    %38 = arith.addf %37, %36 : vector<8x128xf32>
    %39 = arith.divf %37, %38 : vector<8x128xf32>
    %40 = arith.mulf %31, %9 : vector<8x128xf32>
    %41 = arith.mulf %25, %33 : vector<8x128xf32>
    %42 = arith.addf %40, %41 : vector<8x128xf32>
    %43 = math.tanh %42 : vector<8x128xf32>
    %44 = arith.mulf %39, %43 : vector<8x128xf32>
    %45 = arith.index_cast %11 : i32 to index
    %c0_17 = arith.constant 0 : index
    %46 = vector.load %arg11[%45, %c0_17] : memref<64x128xf32, #tpu.memory_space<vmem>>, vector<8x128xf32>
    tpu.vector_store %arg11[%45, %c0_17], %44 {strides = array<i32>} : memref<64x128xf32, #tpu.memory_space<vmem>>, vector<8x128xf32>,
    %47 = arith.index_cast %14 : i32 to index
    %c0_18 = arith.constant 0 : index
    %48 = vector.load %arg12[%47, %c0_18] : memref<64x128xf32, #tpu.memory_space<vmem>>, vector<8x128xf32>
    tpu.vector_store %arg12[%47, %c0_18], %44 {strides = array<i32>} : memref<64x128xf32, #tpu.memory_space<vmem>>, vector<8x128xf32>,
    %c1_i32 = arith.constant 1 : i32
    %c8_i32_19 = arith.constant 8 : i32
    %49 = arith.muli %c1_i32, %c8_i32_19 : i32
    %50 = tpu.assume_multiple %49, 8 : i32
    %c7_i32_20 = arith.constant 7 : i32
    %51 = arith.subi %c7_i32_20, %c1_i32 : i32
    %c8_i32_21 = arith.constant 8 : i32
    %52 = arith.muli %51, %c8_i32_21 : i32
    %53 = tpu.assume_multiple %52, 8 : i32
    %54 = arith.index_cast %50 : i32 to index
    %c0_22 = arith.constant 0 : index
    %55 = vector.load %arg10[%54, %c0_22] : memref<64x512xf32, #tpu.memory_space<vmem>>, vector<8x512xf32>
    %c0_23 = arith.constant 0 : index
    %c0_24 = arith.constant 0 : index
    %56 = vector.load %arg3[%c0_23, %c0_24] : memref<128x512xf32, #tpu.memory_space<vmem>>, vector<128x512xf32>
    %cst_25 = arith.constant dense<0.000000e+00> : vector<8x512xf32>
    %57 = tpu.matmul %44, %56, %cst_25 {dimension_numbers = #tpu.dot_dimension_numbers<[1], [0], [0], [1], [0, 0, 1, 1], [], []>} : vector<8x128xf32>, vector<128x512xf32>, vector<8x512xf32> -> vector<8x512xf32>
    %58 = arith.addf %55, %57 : vector<8x512xf32>
    %59 = vector.extract_strided_slice %58 {offsets = [0, 0], sizes = [8, 128], strides = [1, 1]} : vector<8x512xf32> to vector<8x128xf32>
    %60 = arith.negf %59 : vector<8x128xf32>
    %61 = math.exp %60 : vector<8x128xf32>
    %cst_26 = arith.constant 1.000000e+00 : f32
    %62 = vector.broadcast %cst_26 : f32 to vector<8x128xf32>
    %63 = arith.addf %62, %61 : vector<8x128xf32>
    %64 = arith.divf %62, %63 : vector<8x128xf32>
    %65 = vector.extract_strided_slice %58 {offsets = [0, 128], sizes = [8, 128], strides = [1, 1]} : vector<8x512xf32> to vector<8x128xf32>
    %66 = arith.negf %65 : vector<8x128xf32>
    %67 = math.exp %66 : vector<8x128xf32>
    %cst_27 = arith.constant 1.000000e+00 : f32
    %68 = vector.broadcast %cst_27 : f32 to vector<8x128xf32>
    %69 = arith.addf %68, %67 : vector<8x128xf32>
    %70 = arith.divf %68, %69 : vector<8x128xf32>
    %71 = vector.extract_strided_slice %58 {offsets = [0, 256], sizes = [8, 128], strides = [1, 1]} : vector<8x512xf32> to vector<8x128xf32>
    %72 = math.tanh %71 : vector<8x128xf32>
    %73 = vector.extract_strided_slice %58 {offsets = [0, 384], sizes = [8, 128], strides = [1, 1]} : vector<8x512xf32> to vector<8x128xf32>
    %74 = arith.negf %73 : vector<8x128xf32>
    %75 = math.exp %74 : vector<8x128xf32>
    %cst_28 = arith.constant 1.000000e+00 : f32
    %76 = vector.broadcast %cst_28 : f32 to vector<8x128xf32>
    %77 = arith.addf %76, %75 : vector<8x128xf32>
    %78 = arith.divf %76, %77 : vector<8x128xf32>
    %79 = arith.mulf %70, %42 : vector<8x128xf32>
    %80 = arith.mulf %64, %72 : vector<8x128xf32>
    %81 = arith.addf %79, %80 : vector<8x128xf32>
    %82 = math.tanh %81 : vector<8x128xf32>
    %83 = arith.mulf %78, %82 : vector<8x128xf32>
    %84 = arith.index_cast %50 : i32 to index
    %c0_29 = arith.constant 0 : index
    %85 = vector.load %arg11[%84, %c0_29] : memref<64x128xf32, #tpu.memory_space<vmem>>, vector<8x128xf32>
    tpu.vector_store %arg11[%84, %c0_29], %83 {strides = array<i32>} : memref<64x128xf32, #tpu.memory_space<vmem>>, vector<8x128xf32>,
    %86 = arith.index_cast %53 : i32 to index
    %c0_30 = arith.constant 0 : index
    %87 = vector.load %arg12[%86, %c0_30] : memref<64x128xf32, #tpu.memory_space<vmem>>, vector<8x128xf32>
    tpu.vector_store %arg12[%86, %c0_30], %83 {strides = array<i32>} : memref<64x128xf32, #tpu.memory_space<vmem>>, vector<8x128xf32>,
    %c2_i32 = arith.constant 2 : i32
    %c8_i32_31 = arith.constant 8 : i32
    %88 = arith.muli %c2_i32, %c8_i32_31 : i32
    %89 = tpu.assume_multiple %88, 8 : i32
    %c7_i32_32 = arith.constant 7 : i32
    %90 = arith.subi %c7_i32_32, %c2_i32 : i32
    %c8_i32_33 = arith.constant 8 : i32
    %91 = arith.muli %90, %c8_i32_33 : i32
    %92 = tpu.assume_multiple %91, 8 : i32
    %93 = arith.index_cast %89 : i32 to index
    %c0_34 = arith.constant 0 : index
    %94 = vector.load %arg10[%93, %c0_34] : memref<64x512xf32, #tpu.memory_space<vmem>>, vector<8x512xf32>
    %c0_35 = arith.constant 0 : index
    %c0_36 = arith.constant 0 : index
    %95 = vector.load %arg3[%c0_35, %c0_36] : memref<128x512xf32, #tpu.memory_space<vmem>>, vector<128x512xf32>
    %cst_37 = arith.constant dense<0.000000e+00> : vector<8x512xf32>
    %96 = tpu.matmul %83, %95, %cst_37 {dimension_numbers = #tpu.dot_dimension_numbers<[1], [0], [0], [1], [0, 0, 1, 1], [], []>} : vector<8x128xf32>, vector<128x512xf32>, vector<8x512xf32> -> vector<8x512xf32>
    %97 = arith.addf %94, %96 : vector<8x512xf32>
    %98 = vector.extract_strided_slice %97 {offsets = [0, 0], sizes = [8, 128], strides = [1, 1]} : vector<8x512xf32> to vector<8x128xf32>
    %99 = arith.negf %98 : vector<8x128xf32>
    %100 = math.exp %99 : vector<8x128xf32>
    %cst_38 = arith.constant 1.000000e+00 : f32
    %101 = vector.broadcast %cst_38 : f32 to vector<8x128xf32>
    %102 = arith.addf %101, %100 : vector<8x128xf32>
    %103 = arith.divf %101, %102 : vector<8x128xf32>
    %104 = vector.extract_strided_slice %97 {offsets = [0, 128], sizes = [8, 128], strides = [1, 1]} : vector<8x512xf32> to vector<8x128xf32>
    %105 = arith.negf %104 : vector<8x128xf32>
    %106 = math.exp %105 : vector<8x128xf32>
    %cst_39 = arith.constant 1.000000e+00 : f32
    %107 = vector.broadcast %cst_39 : f32 to vector<8x128xf32>
    %108 = arith.addf %107, %106 : vector<8x128xf32>
    %109 = arith.divf %107, %108 : vector<8x128xf32>
    %110 = vector.extract_strided_slice %97 {offsets = [0, 256], sizes = [8, 128], strides = [1, 1]} : vector<8x512xf32> to vector<8x128xf32>
    %111 = math.tanh %110 : vector<8x128xf32>
    %112 = vector.extract_strided_slice %97 {offsets = [0, 384], sizes = [8, 128], strides = [1, 1]} : vector<8x512xf32> to vector<8x128xf32>
    %113 = arith.negf %112 : vector<8x128xf32>
    %114 = math.exp %113 : vector<8x128xf32>
    %cst_40 = arith.constant 1.000000e+00 : f32
    %115 = vector.broadcast %cst_40 : f32 to vector<8x128xf32>
    %116 = arith.addf %115, %114 : vector<8x128xf32>
    %117 = arith.divf %115, %116 : vector<8x128xf32>
    %118 = arith.mulf %109, %81 : vector<8x128xf32>
    %119 = arith.mulf %103, %111 : vector<8x128xf32>
    %120 = arith.addf %118, %119 : vector<8x128xf32>
    %121 = math.tanh %120 : vector<8x128xf32>
    %122 = arith.mulf %117, %121 : vector<8x128xf32>
    %123 = arith.index_cast %89 : i32 to index
    %c0_41 = arith.constant 0 : index
    %124 = vector.load %arg11[%123, %c0_41] : memref<64x128xf32, #tpu.memory_space<vmem>>, vector<8x128xf32>
    tpu.vector_store %arg11[%123, %c0_41], %122 {strides = array<i32>} : memref<64x128xf32, #tpu.memory_space<vmem>>, vector<8x128xf32>,
    %125 = arith.index_cast %92 : i32 to index
    %c0_42 = arith.constant 0 : index
    %126 = vector.load %arg12[%125, %c0_42] : memref<64x128xf32, #tpu.memory_space<vmem>>, vector<8x128xf32>
    tpu.vector_store %arg12[%125, %c0_42], %122 {strides = array<i32>} : memref<64x128xf32, #tpu.memory_space<vmem>>, vector<8x128xf32>,
    %c3_i32 = arith.constant 3 : i32
    %c8_i32_43 = arith.constant 8 : i32
    %127 = arith.muli %c3_i32, %c8_i32_43 : i32
    %128 = tpu.assume_multiple %127, 8 : i32
    %c7_i32_44 = arith.constant 7 : i32
    %129 = arith.subi %c7_i32_44, %c3_i32 : i32
    %c8_i32_45 = arith.constant 8 : i32
    %130 = arith.muli %129, %c8_i32_45 : i32
    %131 = tpu.assume_multiple %130, 8 : i32
    %132 = arith.index_cast %128 : i32 to index
    %c0_46 = arith.constant 0 : index
    %133 = vector.load %arg10[%132, %c0_46] : memref<64x512xf32, #tpu.memory_space<vmem>>, vector<8x512xf32>
    %c0_47 = arith.constant 0 : index
    %c0_48 = arith.constant 0 : index
    %134 = vector.load %arg3[%c0_47, %c0_48] : memref<128x512xf32, #tpu.memory_space<vmem>>, vector<128x512xf32>
    %cst_49 = arith.constant dense<0.000000e+00> : vector<8x512xf32>
    %135 = tpu.matmul %122, %134, %cst_49 {dimension_numbers = #tpu.dot_dimension_numbers<[1], [0], [0], [1], [0, 0, 1, 1], [], []>} : vector<8x128xf32>, vector<128x512xf32>, vector<8x512xf32> -> vector<8x512xf32>
    %136 = arith.addf %133, %135 : vector<8x512xf32>
    %137 = vector.extract_strided_slice %136 {offsets = [0, 0], sizes = [8, 128], strides = [1, 1]} : vector<8x512xf32> to vector<8x128xf32>
    %138 = arith.negf %137 : vector<8x128xf32>
    %139 = math.exp %138 : vector<8x128xf32>
    %cst_50 = arith.constant 1.000000e+00 : f32
    %140 = vector.broadcast %cst_50 : f32 to vector<8x128xf32>
    %141 = arith.addf %140, %139 : vector<8x128xf32>
    %142 = arith.divf %140, %141 : vector<8x128xf32>
    %143 = vector.extract_strided_slice %136 {offsets = [0, 128], sizes = [8, 128], strides = [1, 1]} : vector<8x512xf32> to vector<8x128xf32>
    %144 = arith.negf %143 : vector<8x128xf32>
    %145 = math.exp %144 : vector<8x128xf32>
    %cst_51 = arith.constant 1.000000e+00 : f32
    %146 = vector.broadcast %cst_51 : f32 to vector<8x128xf32>
    %147 = arith.addf %146, %145 : vector<8x128xf32>
    %148 = arith.divf %146, %147 : vector<8x128xf32>
    %149 = vector.extract_strided_slice %136 {offsets = [0, 256], sizes = [8, 128], strides = [1, 1]} : vector<8x512xf32> to vector<8x128xf32>
    %150 = math.tanh %149 : vector<8x128xf32>
    %151 = vector.extract_strided_slice %136 {offsets = [0, 384], sizes = [8, 128], strides = [1, 1]} : vector<8x512xf32> to vector<8x128xf32>
    %152 = arith.negf %151 : vector<8x128xf32>
    %153 = math.exp %152 : vector<8x128xf32>
    %cst_52 = arith.constant 1.000000e+00 : f32
    %154 = vector.broadcast %cst_52 : f32 to vector<8x128xf32>
    %155 = arith.addf %154, %153 : vector<8x128xf32>
    %156 = arith.divf %154, %155 : vector<8x128xf32>
    %157 = arith.mulf %148, %120 : vector<8x128xf32>
    %158 = arith.mulf %142, %150 : vector<8x128xf32>
    %159 = arith.addf %157, %158 : vector<8x128xf32>
    %160 = math.tanh %159 : vector<8x128xf32>
    %161 = arith.mulf %156, %160 : vector<8x128xf32>
    %162 = arith.index_cast %128 : i32 to index
    %c0_53 = arith.constant 0 : index
    %163 = vector.load %arg11[%162, %c0_53] : memref<64x128xf32, #tpu.memory_space<vmem>>, vector<8x128xf32>
    tpu.vector_store %arg11[%162, %c0_53], %161 {strides = array<i32>} : memref<64x128xf32, #tpu.memory_space<vmem>>, vector<8x128xf32>,
    %164 = arith.index_cast %131 : i32 to index
    %c0_54 = arith.constant 0 : index
    %165 = vector.load %arg12[%164, %c0_54] : memref<64x128xf32, #tpu.memory_space<vmem>>, vector<8x128xf32>
    tpu.vector_store %arg12[%164, %c0_54], %161 {strides = array<i32>} : memref<64x128xf32, #tpu.memory_space<vmem>>, vector<8x128xf32>,
    %c4_i32 = arith.constant 4 : i32
    %c8_i32_55 = arith.constant 8 : i32
    %166 = arith.muli %c4_i32, %c8_i32_55 : i32
    %167 = tpu.assume_multiple %166, 8 : i32
    %c7_i32_56 = arith.constant 7 : i32
    %168 = arith.subi %c7_i32_56, %c4_i32 : i32
    %c8_i32_57 = arith.constant 8 : i32
    %169 = arith.muli %168, %c8_i32_57 : i32
    %170 = tpu.assume_multiple %169, 8 : i32
    %171 = arith.index_cast %167 : i32 to index
    %c0_58 = arith.constant 0 : index
    %172 = vector.load %arg10[%171, %c0_58] : memref<64x512xf32, #tpu.memory_space<vmem>>, vector<8x512xf32>
    %c0_59 = arith.constant 0 : index
    %c0_60 = arith.constant 0 : index
    %173 = vector.load %arg3[%c0_59, %c0_60] : memref<128x512xf32, #tpu.memory_space<vmem>>, vector<128x512xf32>
    %cst_61 = arith.constant dense<0.000000e+00> : vector<8x512xf32>
    %174 = tpu.matmul %161, %173, %cst_61 {dimension_numbers = #tpu.dot_dimension_numbers<[1], [0], [0], [1], [0, 0, 1, 1], [], []>} : vector<8x128xf32>, vector<128x512xf32>, vector<8x512xf32> -> vector<8x512xf32>
    %175 = arith.addf %172, %174 : vector<8x512xf32>
    %176 = vector.extract_strided_slice %175 {offsets = [0, 0], sizes = [8, 128], strides = [1, 1]} : vector<8x512xf32> to vector<8x128xf32>
    %177 = arith.negf %176 : vector<8x128xf32>
    %178 = math.exp %177 : vector<8x128xf32>
    %cst_62 = arith.constant 1.000000e+00 : f32
    %179 = vector.broadcast %cst_62 : f32 to vector<8x128xf32>
    %180 = arith.addf %179, %178 : vector<8x128xf32>
    %181 = arith.divf %179, %180 : vector<8x128xf32>
    %182 = vector.extract_strided_slice %175 {offsets = [0, 128], sizes = [8, 128], strides = [1, 1]} : vector<8x512xf32> to vector<8x128xf32>
    %183 = arith.negf %182 : vector<8x128xf32>
    %184 = math.exp %183 : vector<8x128xf32>
    %cst_63 = arith.constant 1.000000e+00 : f32
    %185 = vector.broadcast %cst_63 : f32 to vector<8x128xf32>
    %186 = arith.addf %185, %184 : vector<8x128xf32>
    %187 = arith.divf %185, %186 : vector<8x128xf32>
    %188 = vector.extract_strided_slice %175 {offsets = [0, 256], sizes = [8, 128], strides = [1, 1]} : vector<8x512xf32> to vector<8x128xf32>
    %189 = math.tanh %188 : vector<8x128xf32>
    %190 = vector.extract_strided_slice %175 {offsets = [0, 384], sizes = [8, 128], strides = [1, 1]} : vector<8x512xf32> to vector<8x128xf32>
    %191 = arith.negf %190 : vector<8x128xf32>
    %192 = math.exp %191 : vector<8x128xf32>
    %cst_64 = arith.constant 1.000000e+00 : f32
    %193 = vector.broadcast %cst_64 : f32 to vector<8x128xf32>
    %194 = arith.addf %193, %192 : vector<8x128xf32>
    %195 = arith.divf %193, %194 : vector<8x128xf32>
    %196 = arith.mulf %187, %159 : vector<8x128xf32>
    %197 = arith.mulf %181, %189 : vector<8x128xf32>
    %198 = arith.addf %196, %197 : vector<8x128xf32>
    %199 = math.tanh %198 : vector<8x128xf32>
    %200 = arith.mulf %195, %199 : vector<8x128xf32>
    %201 = arith.index_cast %167 : i32 to index
    %c0_65 = arith.constant 0 : index
    %202 = vector.load %arg11[%201, %c0_65] : memref<64x128xf32, #tpu.memory_space<vmem>>, vector<8x128xf32>
    tpu.vector_store %arg11[%201, %c0_65], %200 {strides = array<i32>} : memref<64x128xf32, #tpu.memory_space<vmem>>, vector<8x128xf32>,
    %203 = arith.index_cast %170 : i32 to index
    %c0_66 = arith.constant 0 : index
    %204 = vector.load %arg12[%203, %c0_66] : memref<64x128xf32, #tpu.memory_space<vmem>>, vector<8x128xf32>
    tpu.vector_store %arg12[%203, %c0_66], %200 {strides = array<i32>} : memref<64x128xf32, #tpu.memory_space<vmem>>, vector<8x128xf32>,
    %c5_i32 = arith.constant 5 : i32
    %c8_i32_67 = arith.constant 8 : i32
    %205 = arith.muli %c5_i32, %c8_i32_67 : i32
    %206 = tpu.assume_multiple %205, 8 : i32
    %c7_i32_68 = arith.constant 7 : i32
    %207 = arith.subi %c7_i32_68, %c5_i32 : i32
    %c8_i32_69 = arith.constant 8 : i32
    %208 = arith.muli %207, %c8_i32_69 : i32
    %209 = tpu.assume_multiple %208, 8 : i32
    %210 = arith.index_cast %206 : i32 to index
    %c0_70 = arith.constant 0 : index
    %211 = vector.load %arg10[%210, %c0_70] : memref<64x512xf32, #tpu.memory_space<vmem>>, vector<8x512xf32>
    %c0_71 = arith.constant 0 : index
    %c0_72 = arith.constant 0 : index
    %212 = vector.load %arg3[%c0_71, %c0_72] : memref<128x512xf32, #tpu.memory_space<vmem>>, vector<128x512xf32>
    %cst_73 = arith.constant dense<0.000000e+00> : vector<8x512xf32>
    %213 = tpu.matmul %200, %212, %cst_73 {dimension_numbers = #tpu.dot_dimension_numbers<[1], [0], [0], [1], [0, 0, 1, 1], [], []>} : vector<8x128xf32>, vector<128x512xf32>, vector<8x512xf32> -> vector<8x512xf32>
    %214 = arith.addf %211, %213 : vector<8x512xf32>
    %215 = vector.extract_strided_slice %214 {offsets = [0, 0], sizes = [8, 128], strides = [1, 1]} : vector<8x512xf32> to vector<8x128xf32>
    %216 = arith.negf %215 : vector<8x128xf32>
    %217 = math.exp %216 : vector<8x128xf32>
    %cst_74 = arith.constant 1.000000e+00 : f32
    %218 = vector.broadcast %cst_74 : f32 to vector<8x128xf32>
    %219 = arith.addf %218, %217 : vector<8x128xf32>
    %220 = arith.divf %218, %219 : vector<8x128xf32>
    %221 = vector.extract_strided_slice %214 {offsets = [0, 128], sizes = [8, 128], strides = [1, 1]} : vector<8x512xf32> to vector<8x128xf32>
    %222 = arith.negf %221 : vector<8x128xf32>
    %223 = math.exp %222 : vector<8x128xf32>
    %cst_75 = arith.constant 1.000000e+00 : f32
    %224 = vector.broadcast %cst_75 : f32 to vector<8x128xf32>
    %225 = arith.addf %224, %223 : vector<8x128xf32>
    %226 = arith.divf %224, %225 : vector<8x128xf32>
    %227 = vector.extract_strided_slice %214 {offsets = [0, 256], sizes = [8, 128], strides = [1, 1]} : vector<8x512xf32> to vector<8x128xf32>
    %228 = math.tanh %227 : vector<8x128xf32>
    %229 = vector.extract_strided_slice %214 {offsets = [0, 384], sizes = [8, 128], strides = [1, 1]} : vector<8x512xf32> to vector<8x128xf32>
    %230 = arith.negf %229 : vector<8x128xf32>
    %231 = math.exp %230 : vector<8x128xf32>
    %cst_76 = arith.constant 1.000000e+00 : f32
    %232 = vector.broadcast %cst_76 : f32 to vector<8x128xf32>
    %233 = arith.addf %232, %231 : vector<8x128xf32>
    %234 = arith.divf %232, %233 : vector<8x128xf32>
    %235 = arith.mulf %226, %198 : vector<8x128xf32>
    %236 = arith.mulf %220, %228 : vector<8x128xf32>
    %237 = arith.addf %235, %236 : vector<8x128xf32>
    %238 = math.tanh %237 : vector<8x128xf32>
    %239 = arith.mulf %234, %238 : vector<8x128xf32>
    %240 = arith.index_cast %206 : i32 to index
    %c0_77 = arith.constant 0 : index
    %241 = vector.load %arg11[%240, %c0_77] : memref<64x128xf32, #tpu.memory_space<vmem>>, vector<8x128xf32>
    tpu.vector_store %arg11[%240, %c0_77], %239 {strides = array<i32>} : memref<64x128xf32, #tpu.memory_space<vmem>>, vector<8x128xf32>,
    %242 = arith.index_cast %209 : i32 to index
    %c0_78 = arith.constant 0 : index
    %243 = vector.load %arg12[%242, %c0_78] : memref<64x128xf32, #tpu.memory_space<vmem>>, vector<8x128xf32>
    tpu.vector_store %arg12[%242, %c0_78], %239 {strides = array<i32>} : memref<64x128xf32, #tpu.memory_space<vmem>>, vector<8x128xf32>,
    %c6_i32 = arith.constant 6 : i32
    %c8_i32_79 = arith.constant 8 : i32
    %244 = arith.muli %c6_i32, %c8_i32_79 : i32
    %245 = tpu.assume_multiple %244, 8 : i32
    %c7_i32_80 = arith.constant 7 : i32
    %246 = arith.subi %c7_i32_80, %c6_i32 : i32
    %c8_i32_81 = arith.constant 8 : i32
    %247 = arith.muli %246, %c8_i32_81 : i32
    %248 = tpu.assume_multiple %247, 8 : i32
    %249 = arith.index_cast %245 : i32 to index
    %c0_82 = arith.constant 0 : index
    %250 = vector.load %arg10[%249, %c0_82] : memref<64x512xf32, #tpu.memory_space<vmem>>, vector<8x512xf32>
    %c0_83 = arith.constant 0 : index
    %c0_84 = arith.constant 0 : index
    %251 = vector.load %arg3[%c0_83, %c0_84] : memref<128x512xf32, #tpu.memory_space<vmem>>, vector<128x512xf32>
    %cst_85 = arith.constant dense<0.000000e+00> : vector<8x512xf32>
    %252 = tpu.matmul %239, %251, %cst_85 {dimension_numbers = #tpu.dot_dimension_numbers<[1], [0], [0], [1], [0, 0, 1, 1], [], []>} : vector<8x128xf32>, vector<128x512xf32>, vector<8x512xf32> -> vector<8x512xf32>
    %253 = arith.addf %250, %252 : vector<8x512xf32>
    %254 = vector.extract_strided_slice %253 {offsets = [0, 0], sizes = [8, 128], strides = [1, 1]} : vector<8x512xf32> to vector<8x128xf32>
    %255 = arith.negf %254 : vector<8x128xf32>
    %256 = math.exp %255 : vector<8x128xf32>
    %cst_86 = arith.constant 1.000000e+00 : f32
    %257 = vector.broadcast %cst_86 : f32 to vector<8x128xf32>
    %258 = arith.addf %257, %256 : vector<8x128xf32>
    %259 = arith.divf %257, %258 : vector<8x128xf32>
    %260 = vector.extract_strided_slice %253 {offsets = [0, 128], sizes = [8, 128], strides = [1, 1]} : vector<8x512xf32> to vector<8x128xf32>
    %261 = arith.negf %260 : vector<8x128xf32>
    %262 = math.exp %261 : vector<8x128xf32>
    %cst_87 = arith.constant 1.000000e+00 : f32
    %263 = vector.broadcast %cst_87 : f32 to vector<8x128xf32>
    %264 = arith.addf %263, %262 : vector<8x128xf32>
    %265 = arith.divf %263, %264 : vector<8x128xf32>
    %266 = vector.extract_strided_slice %253 {offsets = [0, 256], sizes = [8, 128], strides = [1, 1]} : vector<8x512xf32> to vector<8x128xf32>
    %267 = math.tanh %266 : vector<8x128xf32>
    %268 = vector.extract_strided_slice %253 {offsets = [0, 384], sizes = [8, 128], strides = [1, 1]} : vector<8x512xf32> to vector<8x128xf32>
    %269 = arith.negf %268 : vector<8x128xf32>
    %270 = math.exp %269 : vector<8x128xf32>
    %cst_88 = arith.constant 1.000000e+00 : f32
    %271 = vector.broadcast %cst_88 : f32 to vector<8x128xf32>
    %272 = arith.addf %271, %270 : vector<8x128xf32>
    %273 = arith.divf %271, %272 : vector<8x128xf32>
    %274 = arith.mulf %265, %237 : vector<8x128xf32>
    %275 = arith.mulf %259, %267 : vector<8x128xf32>
    %276 = arith.addf %274, %275 : vector<8x128xf32>
    %277 = math.tanh %276 : vector<8x128xf32>
    %278 = arith.mulf %273, %277 : vector<8x128xf32>
    %279 = arith.index_cast %245 : i32 to index
    %c0_89 = arith.constant 0 : index
    %280 = vector.load %arg11[%279, %c0_89] : memref<64x128xf32, #tpu.memory_space<vmem>>, vector<8x128xf32>
    tpu.vector_store %arg11[%279, %c0_89], %278 {strides = array<i32>} : memref<64x128xf32, #tpu.memory_space<vmem>>, vector<8x128xf32>,
    %281 = arith.index_cast %248 : i32 to index
    %c0_90 = arith.constant 0 : index
    %282 = vector.load %arg12[%281, %c0_90] : memref<64x128xf32, #tpu.memory_space<vmem>>, vector<8x128xf32>
    tpu.vector_store %arg12[%281, %c0_90], %278 {strides = array<i32>} : memref<64x128xf32, #tpu.memory_space<vmem>>, vector<8x128xf32>,
    %c7_i32_91 = arith.constant 7 : i32
    %c8_i32_92 = arith.constant 8 : i32
    %283 = arith.muli %c7_i32_91, %c8_i32_92 : i32
    %284 = tpu.assume_multiple %283, 8 : i32
    %c7_i32_93 = arith.constant 7 : i32
    %285 = arith.subi %c7_i32_93, %c7_i32_91 : i32
    %c8_i32_94 = arith.constant 8 : i32
    %286 = arith.muli %285, %c8_i32_94 : i32
    %287 = tpu.assume_multiple %286, 8 : i32
    %288 = arith.index_cast %284 : i32 to index
    %c0_95 = arith.constant 0 : index
    %289 = vector.load %arg10[%288, %c0_95] : memref<64x512xf32, #tpu.memory_space<vmem>>, vector<8x512xf32>
    %c0_96 = arith.constant 0 : index
    %c0_97 = arith.constant 0 : index
    %290 = vector.load %arg3[%c0_96, %c0_97] : memref<128x512xf32, #tpu.memory_space<vmem>>, vector<128x512xf32>
    %cst_98 = arith.constant dense<0.000000e+00> : vector<8x512xf32>
    %291 = tpu.matmul %278, %290, %cst_98 {dimension_numbers = #tpu.dot_dimension_numbers<[1], [0], [0], [1], [0, 0, 1, 1], [], []>} : vector<8x128xf32>, vector<128x512xf32>, vector<8x512xf32> -> vector<8x512xf32>
    %292 = arith.addf %289, %291 : vector<8x512xf32>
    %293 = vector.extract_strided_slice %292 {offsets = [0, 0], sizes = [8, 128], strides = [1, 1]} : vector<8x512xf32> to vector<8x128xf32>
    %294 = arith.negf %293 : vector<8x128xf32>
    %295 = math.exp %294 : vector<8x128xf32>
    %cst_99 = arith.constant 1.000000e+00 : f32
    %296 = vector.broadcast %cst_99 : f32 to vector<8x128xf32>
    %297 = arith.addf %296, %295 : vector<8x128xf32>
    %298 = arith.divf %296, %297 : vector<8x128xf32>
    %299 = vector.extract_strided_slice %292 {offsets = [0, 128], sizes = [8, 128], strides = [1, 1]} : vector<8x512xf32> to vector<8x128xf32>
    %300 = arith.negf %299 : vector<8x128xf32>
    %301 = math.exp %300 : vector<8x128xf32>
    %cst_100 = arith.constant 1.000000e+00 : f32
    %302 = vector.broadcast %cst_100 : f32 to vector<8x128xf32>
    %303 = arith.addf %302, %301 : vector<8x128xf32>
    %304 = arith.divf %302, %303 : vector<8x128xf32>
    %305 = vector.extract_strided_slice %292 {offsets = [0, 256], sizes = [8, 128], strides = [1, 1]} : vector<8x512xf32> to vector<8x128xf32>
    %306 = math.tanh %305 : vector<8x128xf32>
    %307 = vector.extract_strided_slice %292 {offsets = [0, 384], sizes = [8, 128], strides = [1, 1]} : vector<8x512xf32> to vector<8x128xf32>
    %308 = arith.negf %307 : vector<8x128xf32>
    %309 = math.exp %308 : vector<8x128xf32>
    %cst_101 = arith.constant 1.000000e+00 : f32
    %310 = vector.broadcast %cst_101 : f32 to vector<8x128xf32>
    %311 = arith.addf %310, %309 : vector<8x128xf32>
    %312 = arith.divf %310, %311 : vector<8x128xf32>
    %313 = arith.mulf %304, %276 : vector<8x128xf32>
    %314 = arith.mulf %298, %306 : vector<8x128xf32>
    %315 = arith.addf %313, %314 : vector<8x128xf32>
    %316 = math.tanh %315 : vector<8x128xf32>
    %317 = arith.mulf %312, %316 : vector<8x128xf32>
    %318 = arith.index_cast %284 : i32 to index
    %c0_102 = arith.constant 0 : index
    %319 = vector.load %arg11[%318, %c0_102] : memref<64x128xf32, #tpu.memory_space<vmem>>, vector<8x128xf32>
    tpu.vector_store %arg11[%318, %c0_102], %317 {strides = array<i32>} : memref<64x128xf32, #tpu.memory_space<vmem>>, vector<8x128xf32>,
    %320 = arith.index_cast %287 : i32 to index
    %c0_103 = arith.constant 0 : index
    %321 = vector.load %arg12[%320, %c0_103] : memref<64x128xf32, #tpu.memory_space<vmem>>, vector<8x128xf32>
    tpu.vector_store %arg12[%320, %c0_103], %317 {strides = array<i32>} : memref<64x128xf32, #tpu.memory_space<vmem>>, vector<8x128xf32>,
    %c8_i32_104 = arith.constant 8 : i32
    %322 = tpu.iota {dimensions = array<i32: 1>} : vector<64x128xi32>
    %c64_i32 = arith.constant 64 : i32
    %323 = vector.broadcast %c64_i32 : i32 to vector<64x128xi32>
    %324 = arith.cmpi slt, %322, %323 : vector<64x128xi32>
    %c0_105 = arith.constant 0 : index
    %c0_106 = arith.constant 0 : index
    %325 = vector.load %arg11[%c0_105, %c0_106] : memref<64x128xf32, #tpu.memory_space<vmem>>, vector<64x128xf32>
    %c0_107 = arith.constant 0 : index
    %c0_108 = arith.constant 0 : index
    %326 = vector.load %arg12[%c0_107, %c0_108] : memref<64x128xf32, #tpu.memory_space<vmem>>, vector<64x128xf32>
    %327 = arith.select %324, %325, %326 : vector<64x128xi1>, vector<64x128xf32>
    %328 = arith.truncf %327 : vector<64x128xf32> to vector<64x128xbf16>
    %c0_109 = arith.constant 0 : index
    %c0_110 = arith.constant 0 : index
    %329 = vector.load %arg5[%c0_109, %c0_110] : memref<128x64xbf16, #tpu.memory_space<vmem>>, vector<128x64xbf16>
    %cst_111 = arith.constant dense<0.000000e+00> : vector<64x64xf32>
    %330 = tpu.matmul %328, %329, %cst_111 {dimension_numbers = #tpu.dot_dimension_numbers<[1], [0], [0], [1], [0, 0, 1, 1], [], []>} : vector<64x128xbf16>, vector<128x64xbf16>, vector<64x64xf32> -> vector<64x64xf32>
    %c0_112 = arith.constant 0 : index
    %c0_113 = arith.constant 0 : index
    %331 = vector.load %arg6[%c0_112, %c0_113] : memref<1x64xf32, #tpu.memory_space<vmem>>, vector<1x64xf32>
    %332 = vector.broadcast %331 : vector<1x64xf32> to vector<64x64xf32>
    %333 = arith.addf %330, %332 : vector<64x64xf32>
    %334 = arith.mulf %333, %333 : vector<64x64xf32>
    %cst_114 = arith.constant dense<0.000000e+00> : vector<64xf32>
    %335 = vector.multi_reduction <add>, %334, %cst_114 [1] : vector<64x64xf32> to vector<64xf32>
    %336 = vector.shape_cast %335 : vector<64xf32> to vector<64x1xf32>
    %cst_115 = arith.constant 1.000000e-24 : f32
    %337 = vector.broadcast %cst_115 : f32 to vector<64x1xf32>
    %338 = arith.maximumf %336, %337 : vector<64x1xf32>
    %339 = math.rsqrt %338 : vector<64x1xf32>
    %340 = vector.broadcast %339 : vector<64x1xf32> to vector<64x64xf32>
    %341 = arith.mulf %333, %340 : vector<64x64xf32>
    %342 = arith.truncf %341 : vector<64x64xf32> to vector<64x64xbf16>
    %c0_116 = arith.constant 0 : index
    %c0_117 = arith.constant 0 : index
    %343 = vector.load %arg7[%c0_116, %c0_117] : memref<64x128xbf16, #tpu.memory_space<vmem>>, vector<64x128xbf16>
    %cst_118 = arith.constant dense<0.000000e+00> : vector<64x128xf32>
    %344 = tpu.matmul %342, %343, %cst_118 {dimension_numbers = #tpu.dot_dimension_numbers<[1], [0], [0], [1], [0, 0, 1, 1], [], []>} : vector<64x64xbf16>, vector<64x128xbf16>, vector<64x128xf32> -> vector<64x128xf32>
    %c0_119 = arith.constant 0 : index
    %c0_120 = arith.constant 0 : index
    %345 = vector.load %arg8[%c0_119, %c0_120] : memref<1x128xf32, #tpu.memory_space<vmem>>, vector<1x128xf32>
    %346 = vector.broadcast %345 : vector<1x128xf32> to vector<64x128xf32>
    %347 = arith.addf %344, %346 : vector<64x128xf32>
    %cst_121 = arith.constant dense<0xFF800000> : vector<64xf32>
    %348 = vector.multi_reduction <maximumf>, %347, %cst_121 [1] : vector<64x128xf32> to vector<64xf32>
    %349 = vector.shape_cast %348 : vector<64xf32> to vector<64x1xf32>
    %350 = vector.broadcast %349 : vector<64x1xf32> to vector<64x128xf32>
    %351 = arith.subf %347, %350 : vector<64x128xf32>
    %352 = math.exp %351 : vector<64x128xf32>
    %cst_122 = arith.constant dense<0.000000e+00> : vector<64xf32>
    %353 = vector.multi_reduction <add>, %352, %cst_122 [1] : vector<64x128xf32> to vector<64xf32>
    %354 = vector.shape_cast %353 : vector<64xf32> to vector<64x1xf32>
    %355 = math.log %354 : vector<64x1xf32>
    %356 = vector.broadcast %355 : vector<64x1xf32> to vector<64x128xf32>
    %357 = arith.subf %351, %356 : vector<64x128xf32>
    %358 = vector.shape_cast %357 : vector<64x128xf32> to vector<8x8x128xf32>
    %c0_123 = arith.constant 0 : index
    %c0_124 = arith.constant 0 : index
    %c0_125 = arith.constant 0 : index
    %359 = vector.load %arg9[%c0_123, %c0_124, %c0_125] : memref<8x8x128xf32, #tpu.memory_space<vmem>>, vector<8x8x128xf32>
    tpu.vector_store %arg9[%c0_123, %c0_124, %c0_125], %358 {strides = array<i32>} : memref<8x8x128xf32, #tpu.memory_space<vmem>>, vector<8x8x128xf32>,
    return
  }
  func.func @transform_0(%arg0: i32) -> (i32, i32, i32) {
    %c0_i32 = arith.constant 0 : i32
    %c0_i32_0 = arith.constant 0 : i32
    %c0_i32_1 = arith.constant 0 : i32
    return %c0_i32, %arg0, %c0_i32_0 : i32, i32, i32
  }
  func.func @transform_1(%arg0: i32) -> (i32, i32) {
    %c0_i32 = arith.constant 0 : i32
    %c0_i32_0 = arith.constant 0 : i32
    %c0_i32_1 = arith.constant 0 : i32
    return %c0_i32, %c0_i32_0 : i32, i32
  }
  func.func @transform_2(%arg0: i32) -> (i32, i32) {
    %c0_i32 = arith.constant 0 : i32
    %c0_i32_0 = arith.constant 0 : i32
    %c0_i32_1 = arith.constant 0 : i32
    return %c0_i32, %c0_i32_0 : i32, i32
  }
  func.func @transform_3(%arg0: i32) -> (i32, i32) {
    %c0_i32 = arith.constant 0 : i32
    %c0_i32_0 = arith.constant 0 : i32
    %c0_i32_1 = arith.constant 0 : i32
    return %c0_i32, %c0_i32_0 : i32, i32
  }
  func.func @transform_4(%arg0: i32) -> (i32, i32) {
    %c0_i32 = arith.constant 0 : i32
    %c0_i32_0 = arith.constant 0 : i32
    %c0_i32_1 = arith.constant 0 : i32
    return %c0_i32, %c0_i32_0 : i32, i32
  }
  func.func @transform_5(%arg0: i32) -> (i32, i32) {
    %c0_i32 = arith.constant 0 : i32
    %c0_i32_0 = arith.constant 0 : i32
    %c0_i32_1 = arith.constant 0 : i32
    return %c0_i32, %c0_i32_0 : i32, i32
  }
  func.func @transform_6(%arg0: i32) -> (i32, i32) {
    %c0_i32 = arith.constant 0 : i32
    %c0_i32_0 = arith.constant 0 : i32
    %c0_i32_1 = arith.constant 0 : i32
    return %c0_i32, %c0_i32_0 : i32, i32
  }
  func.func @transform_7(%arg0: i32) -> (i32, i32) {
    %c0_i32 = arith.constant 0 : i32
    %c0_i32_0 = arith.constant 0 : i32
    %c0_i32_1 = arith.constant 0 : i32
    return %c0_i32, %c0_i32_0 : i32, i32
  }
  func.func @transform_8(%arg0: i32) -> (i32, i32, i32) {
    %c0_i32 = arith.constant 0 : i32
    %c0_i32_0 = arith.constant 0 : i32
    %c0_i32_1 = arith.constant 0 : i32
    return %c0_i32, %arg0, %c0_i32_0 : i32, i32, i32
  }
}

</mosaic_0001>

<llo_original>
// kernel: tpu_custom_call.1
$region0: #{tpu_custom_call.1}
  #allocation0 [shape = 'u32[]', space=smem, size = 0x4, offset = 0x4, fixed_abs, tag = 'smem constant byte address 0x4 - core index']
  #allocation1 [shape = 'u32[144,128]{1,0:T(1,128)}', space=vmem, size = 0x12000, scoped, tag = 'internal scratch']
  #allocation2 [shape = 'f32[64,512]{1,0:T(8,128)}', space=vmem, size = 0x20000, scoped, tag = 'scratch operand']
  #allocation3 [shape = 'f32[64,128]{1,0:T(8,128)}', space=vmem, size = 0x8000, scoped, tag = 'scratch operand']
  #allocation4 [shape = 'f32[64,128]{1,0:T(8,128)}', space=vmem, size = 0x8000, scoped, tag = 'scratch operand']
  %s0 = inlined_call_operand.vmem [shape: f32[8,8,128], index: 0, kind: input, shape index: {}]
  %s1 = inlined_call_operand.hbm [shape: bf16[128,512], index: 1, kind: input, shape index: {}]
  %s2 = inlined_call_operand.hbm [shape: f32[128,512], index: 2, kind: input, shape index: {}]
  %s3 = inlined_call_operand.vmem [shape: f32[1,512], index: 3, kind: input, shape index: {}]
  %s4 = inlined_call_operand.vmem [shape: bf16[128,64], index: 4, kind: input, shape index: {}]
  %s5 = inlined_call_operand.vmem [shape: f32[1,64], index: 5, kind: input, shape index: {}]
  %s6 = inlined_call_operand.vmem [shape: bf16[64,128], index: 6, kind: input, shape index: {}]
  %s7 = inlined_call_operand.vmem [shape: f32[1,128], index: 7, kind: input, shape index: {}]
  %s8 = inlined_call_operand.hbm [shape: f32[8,8,128], index: 8, kind: output, shape index: {}]
  %s9 = sld [smem:[#allocation0]]
  $region50: #{tpu_custom_call.1} parent=0
    _
  %s11 = ssub.s32 1, %s9
  %s12 = scalar_select 0, %s11, %s9
  $region1: #{tpu_custom_call.1} parent=0
    #allocation5 [shape = 'u8[131072]{0}', space=vmem, size = 0x20000, scoped, tag = 'input window, operand 1, single buffered']
    #allocation6 [shape = 's32[1]{0}', space=sflag, size = 0x4, scoped, tag = 'scoped memory for tpu_custom_call.1']
    #allocation7 [shape = 's32[1]{0}', space=sflag, size = 0x4, scoped, tag = 'scoped memory for tpu_custom_call.1']
    #allocation8 [shape = 'u8[262144]{0}', space=vmem, size = 0x40000, scoped, tag = 'input window, operand 2, single buffered']
    #allocation9 [shape = 's32[1]{0}', space=sflag, size = 0x4, scoped, tag = 'scoped memory for tpu_custom_call.1']
    #allocation10 [shape = 'u8[32768]{0}', space=vmem, size = 0x8000, scoped, tag = 'output window, operand 0, single buffered']
    %13 = vsyncpa [#allocation6], 0
    %14 = vsyncpa [#allocation9], 0
    %15 = vsyncpa [#allocation7], 0
    // Predicated region
    $region2: #{tpu_custom_call.1} parent=1 // pred_check
      _
    $region3: #{tpu_custom_call.1} parent=1 // pred_check_branch
      %17 = sbr.rel (0) target = $region5
    $region4: #{tpu_custom_call.1} parent=1 // pred_region
      _
    $region5: #{tpu_custom_call.1} parent=1 // pred_fallthru
      _
    // Predicated region
    $region6: #{tpu_custom_call.1} parent=1 // pred_check
      _
    $region7: #{tpu_custom_call.1} parent=1 // pred_check_branch
      %19 = sbr.rel (0) target = $region9
    $region8: #{tpu_custom_call.1} parent=1 // pred_region
      %s21 = ssub.s32 4096, 4096
      %22 = vsyncadd [#allocation6], %s21
      %s23 = sshll.u32 [#allocation5], 4
      %s24 = int_to_ptr.vmem [resolvable:$true] %s23
      %29 = dma.hbm_to_vmem [thread:$0]  %s1, 4096, %s24, [#allocation6], 256, 256, 16
    $region9: #{tpu_custom_call.1} parent=1 // pred_fallthru
      _
    // Predicated region
    $region10: #{tpu_custom_call.1} parent=1 // pred_check
      _
    $region11: #{tpu_custom_call.1} parent=1 // pred_check_branch
      %31 = sbr.rel (0) target = $region13
    $region12: #{tpu_custom_call.1} parent=1 // pred_region
      %s33 = ssub.s32 8192, 8192
      %34 = vsyncadd [#allocation9], %s33
      %s35 = sshll.u32 [#allocation8], 4
      %s36 = int_to_ptr.vmem [resolvable:$true] %s35
      %41 = dma.hbm_to_vmem [thread:$0]  %s2, 8192, %s36, [#allocation9], 512, 512, 32
    $region13: #{tpu_custom_call.1} parent=1 // pred_fallthru
      _
    // Predicated region
    $region14: #{tpu_custom_call.1} parent=1 // pred_check
      _
    $region15: #{tpu_custom_call.1} parent=1 // pred_check_branch
      %43 = sbr.rel (0) target = $region17
    $region16: #{tpu_custom_call.1} parent=1 // pred_region
      _
    $region17: #{tpu_custom_call.1} parent=1 // pred_fallthru
      _
    // Predicated region
    $region18: #{tpu_custom_call.1} parent=1 // pred_check
      _
    $region19: #{tpu_custom_call.1} parent=1 // pred_check_branch
      %45 = sbr.rel (0) target = $region21
    $region20: #{tpu_custom_call.1} parent=1 // pred_region
      _
    $region21: #{tpu_custom_call.1} parent=1 // pred_fallthru
      _
    // Predicated region
    $region22: #{tpu_custom_call.1} parent=1 // pred_check
      _
    $region23: #{tpu_custom_call.1} parent=1 // pred_check_branch
      %47 = sbr.rel (0) target = $region25
    $region24: #{tpu_custom_call.1} parent=1 // pred_region
      _
    $region25: #{tpu_custom_call.1} parent=1 // pred_fallthru
      _
    // Predicated region
    $region26: #{tpu_custom_call.1} parent=1 // pred_check
      _
    $region27: #{tpu_custom_call.1} parent=1 // pred_check_branch
      %49 = sbr.rel (0) target = $region29
    $region28: #{tpu_custom_call.1} parent=1 // pred_region
      _
    $region29: #{tpu_custom_call.1} parent=1 // pred_fallthru
      _
    // Predicated region
    $region30: #{tpu_custom_call.1} parent=1 // pred_check
      _
    $region31: #{tpu_custom_call.1} parent=1 // pred_check_branch
      %51 = sbr.rel (0) target = $region33
    $region32: #{tpu_custom_call.1} parent=1 // pred_region
      _
    $region33: #{tpu_custom_call.1} parent=1 // pred_fallthru
      _
    // Predicated region
    $region34: #{tpu_custom_call.1} parent=1 // pred_check
      _
    $region35: #{tpu_custom_call.1} parent=1 // pred_check_branch
      %53 = sbr.rel (0) target = $region37
    $region36: #{tpu_custom_call.1} parent=1 // pred_region
      %54 = dma.done [#allocation6], 4096
    $region37: #{tpu_custom_call.1} parent=1 // pred_fallthru
      _
    // Predicated region
    $region38: #{tpu_custom_call.1} parent=1 // pred_check
      _
    $region39: #{tpu_custom_call.1} parent=1 // pred_check_branch
      %56 = sbr.rel (0) target = $region41
    $region40: #{tpu_custom_call.1} parent=1 // pred_region
      %57 = dma.done [#allocation9], 8192
    $region41: #{tpu_custom_call.1} parent=1 // pred_fallthru
      _
    %v59 = vld [vmem:[%s0] sm:$0xff]
    %v60 = vld [vmem:[%s0 + $0x8] sm:$0xff]
    %v61 = vld [vmem:[%s0 + $0x10] sm:$0xff]
    %v62 = vld [vmem:[%s0 + $0x18] sm:$0xff]
    %v63 = vld [vmem:[%s0 + $0x20] sm:$0xff]
    %v64 = vld [vmem:[%s0 + $0x28] sm:$0xff]
    %v65 = vld [vmem:[%s0 + $0x30] sm:$0xff]
    %v66 = vld [vmem:[%s0 + $0x38] sm:$0xff]
    %v67 = vpack.c.bf16 %v60, %v59
    %v68 = vpack.c.bf16 %v62, %v61
    %v69 = vpack.c.bf16 %v64, %v63
    %v70 = vpack.c.bf16 %v66, %v65
    %v71 = vld [vmem:[#allocation5] sm:$0xff]
    %v72 = vld [vmem:[#allocation5 + $0x8] sm:$0xff]
    %v73 = vld [vmem:[#allocation5 + $0x10] sm:$0xff]
    %v74 = vld [vmem:[#allocation5 + $0x18] sm:$0xff]
    %v75 = vld [vmem:[#allocation5 + $0x20] sm:$0xff]
    %v76 = vld [vmem:[#allocation5 + $0x28] sm:$0xff]
    %v77 = vld [vmem:[#allocation5 + $0x30] sm:$0xff]
    %v78 = vld [vmem:[#allocation5 + $0x38] sm:$0xff]
    %v79 = vld [vmem:[#allocation5 + $0x40] sm:$0xff]
    %v80 = vld [vmem:[#allocation5 + $0x48] sm:$0xff]
    %v81 = vld [vmem:[#allocation5 + $0x50] sm:$0xff]
    %v82 = vld [vmem:[#allocation5 + $0x58] sm:$0xff]
    %v83 = vld [vmem:[#allocation5 + $0x60] sm:$0xff]
    %v84 = vld [vmem:[#allocation5 + $0x68] sm:$0xff]
    %v85 = vld [vmem:[#allocation5 + $0x70] sm:$0xff]
    %v86 = vld [vmem:[#allocation5 + $0x78] sm:$0xff]
    %v87 = vld [vmem:[#allocation5 + $0x80] sm:$0xff]
    %v88 = vld [vmem:[#allocation5 + $0x88] sm:$0xff]
    %v89 = vld [vmem:[#allocation5 + $0x90] sm:$0xff]
    %v90 = vld [vmem:[#allocation5 + $0x98] sm:$0xff]
    %v91 = vld [vmem:[#allocation5 + $0xa0] sm:$0xff]
    %v92 = vld [vmem:[#allocation5 + $0xa8] sm:$0xff]
    %v93 = vld [vmem:[#allocation5 + $0xb0] sm:$0xff]
    %v94 = vld [vmem:[#allocation5 + $0xb8] sm:$0xff]
    %v95 = vld [vmem:[#allocation5 + $0xc0] sm:$0xff]
    %v96 = vld [vmem:[#allocation5 + $0xc8] sm:$0xff]
    %v97 = vld [vmem:[#allocation5 + $0xd0] sm:$0xff]
    %v98 = vld [vmem:[#allocation5 + $0xd8] sm:$0xff]
    %v99 = vld [vmem:[#allocation5 + $0xe0] sm:$0xff]
    %v100 = vld [vmem:[#allocation5 + $0xe8] sm:$0xff]
    %v101 = vld [vmem:[#allocation5 + $0xf0] sm:$0xff]
    %v102 = vld [vmem:[#allocation5 + $0xf8] sm:$0xff]
    %v103 = vld [vmem:[%s3] sm:$0xf]
    %v105 = vlaneseq
    %v106 = vshrl.u32 %v105, 7
    %v107 = vsub.s32 0, %v106
    %v108 = vrot.slane %v103, %v107
    %v109 = vlaneseq
    %v110 = vshrl.u32 %v109, 7
    %v111 = vsub.s32 1, %v110
    %v112 = vrot.slane %v103, %v111
    %v113 = vlaneseq
    %v114 = vshrl.u32 %v113, 7
    %v115 = vsub.s32 2, %v114
    %v116 = vrot.slane %v103, %v115
    %v117 = vlaneseq
    %v118 = vshrl.u32 %v117, 7
    %v119 = vsub.s32 3, %v118
    %v120 = vrot.slane %v103, %v119
    %v157 = vunpack.c.l.b16 %v71
    %v158 = vunpack.c.h.b16 %v71
    %v159 = vunpack.c.l.b16 %v72
    %v160 = vunpack.c.h.b16 %v72
    %v161 = vunpack.c.l.b16 %v73
    %v162 = vunpack.c.h.b16 %v73
    %v163 = vunpack.c.l.b16 %v74
    %v164 = vunpack.c.h.b16 %v74
    %v165 = vunpack.c.l.b16 %v75
    %v166 = vunpack.c.h.b16 %v75
    %v167 = vunpack.c.l.b16 %v76
    %v168 = vunpack.c.h.b16 %v76
    %v169 = vunpack.c.l.b16 %v77
    %v170 = vunpack.c.h.b16 %v77
    %v171 = vunpack.c.l.b16 %v78
    %v172 = vunpack.c.h.b16 %v78
    %v173 = vunpack.c.l.b16 %v79
    %v174 = vunpack.c.h.b16 %v79
    %v175 = vunpack.c.l.b16 %v80
    %v176 = vunpack.c.h.b16 %v80
    %v177 = vunpack.c.l.b16 %v81
    %v178 = vunpack.c.h.b16 %v81
    %v179 = vunpack.c.l.b16 %v82
    %v180 = vunpack.c.h.b16 %v82
    %v181 = vunpack.c.l.b16 %v83
    %v182 = vunpack.c.h.b16 %v83
    %v183 = vunpack.c.l.b16 %v84
    %v184 = vunpack.c.h.b16 %v84
    %v185 = vunpack.c.l.b16 %v85
    %v186 = vunpack.c.h.b16 %v85
    %v187 = vunpack.c.l.b16 %v86
    %v188 = vunpack.c.h.b16 %v86
    %v189 = vunpack.c.l.b16 %v87
    %v190 = vunpack.c.h.b16 %v87
    %v191 = vunpack.c.l.b16 %v88
    %v192 = vunpack.c.h.b16 %v88
    %v193 = vunpack.c.l.b16 %v89
    %v194 = vunpack.c.h.b16 %v89
    %v195 = vunpack.c.l.b16 %v90
    %v196 = vunpack.c.h.b16 %v90
    %v197 = vunpack.c.l.b16 %v91
    %v198 = vunpack.c.h.b16 %v91
    %v199 = vunpack.c.l.b16 %v92
    %v200 = vunpack.c.h.b16 %v92
    %v201 = vunpack.c.l.b16 %v93
    %v202 = vunpack.c.h.b16 %v93
    %v203 = vunpack.c.l.b16 %v94
    %v204 = vunpack.c.h.b16 %v94
    %v205 = vunpack.c.l.b16 %v95
    %v206 = vunpack.c.h.b16 %v95
    %v207 = vunpack.c.l.b16 %v96
    %v208 = vunpack.c.h.b16 %v96
    %v209 = vunpack.c.l.b16 %v97
    %v210 = vunpack.c.h.b16 %v97
    %v211 = vunpack.c.l.b16 %v98
    %v212 = vunpack.c.h.b16 %v98
    %v213 = vunpack.c.l.b16 %v99
    %v214 = vunpack.c.h.b16 %v99
    %v215 = vunpack.c.l.b16 %v100
    %v216 = vunpack.c.h.b16 %v100
    %v217 = vunpack.c.l.b16 %v101
    %v218 = vunpack.c.h.b16 %v101
    %v219 = vunpack.c.l.b16 %v102
    %v220 = vunpack.c.h.b16 %v102
    %v221 = vpack.c.b16 %v161, %v157
    %v222 = vpack.c.b16 %v162, %v158
    %v223 = vpack.c.b16 %v163, %v159
    %v224 = vpack.c.b16 %v164, %v160
    %v225 = vpack.c.b16 %v169, %v165
    %v226 = vpack.c.b16 %v170, %v166
    %v227 = vpack.c.b16 %v171, %v167
    %v228 = vpack.c.b16 %v172, %v168
    %v229 = vpack.c.b16 %v177, %v173
    %v230 = vpack.c.b16 %v178, %v174
    %v231 = vpack.c.b16 %v179, %v175
    %v232 = vpack.c.b16 %v180, %v176
    %v233 = vpack.c.b16 %v185, %v181
    %v234 = vpack.c.b16 %v186, %v182
    %v235 = vpack.c.b16 %v187, %v183
    %v236 = vpack.c.b16 %v188, %v184
    %v237 = vpack.c.b16 %v193, %v189
    %v238 = vpack.c.b16 %v194, %v190
    %v239 = vpack.c.b16 %v195, %v191
    %v240 = vpack.c.b16 %v196, %v192
    %v241 = vpack.c.b16 %v201, %v197
    %v242 = vpack.c.b16 %v202, %v198
    %v243 = vpack.c.b16 %v203, %v199
    %v244 = vpack.c.b16 %v204, %v200
    %v245 = vpack.c.b16 %v209, %v205
    %v246 = vpack.c.b16 %v210, %v206
    %v247 = vpack.c.b16 %v211, %v207
    %v248 = vpack.c.b16 %v212, %v208
    %v249 = vpack.c.b16 %v217, %v213
    %v250 = vpack.c.b16 %v218, %v214
    %v251 = vpack.c.b16 %v219, %v215
    %v252 = vpack.c.b16 %v220, %v216
    %285 = vmatprep.subr.bf16.mxu0 %v222
    %286 = vmatpush1.bf16.msra.mxu0 %v221
    %287 = vmatprep.subr.bf16.mxu0 %v226
    %288 = vmatpush1.bf16.msra.mxu0 %v225
    %289 = vmatprep.subr.bf16.mxu0 %v230
    %290 = vmatpush1.bf16.msra.mxu0 %v229
    %291 = vmatprep.subr.bf16.mxu0 %v234
    %292 = vmatpush1.bf16.msra.mxu0 %v233
    %293 = vmatprep.subr.bf16.mxu0 %v238
    %294 = vmatpush1.bf16.msra.mxu0 %v237
    %295 = vmatprep.subr.bf16.mxu0 %v242
    %296 = vmatpush1.bf16.msra.mxu0 %v241
    %297 = vmatprep.subr.bf16.mxu0 %v246
    %298 = vmatpush1.bf16.msra.mxu0 %v245
    %299 = vmatprep.subr.bf16.mxu0 %v250
    %300 = vmatpush1.bf16.msra.mxu0 %v249
    %301 = vmatprep.subr.bf16.mxu0 0
    %302 = vmatpush1.bf16.msra.mxu0 0
    %303 = vmatprep.subr.bf16.mxu0 0
    %304 = vmatpush1.bf16.msra.mxu0 0
    %305 = vmatprep.subr.bf16.mxu0 0
    %306 = vmatpush1.bf16.msra.mxu0 0
    %307 = vmatprep.subr.bf16.mxu0 0
    %308 = vmatpush1.bf16.msra.mxu0 0
    %309 = vmatprep.subr.bf16.mxu0 0
    %310 = vmatpush1.bf16.msra.mxu0 0
    %311 = vmatprep.subr.bf16.mxu0 0
    %312 = vmatpush1.bf16.msra.mxu0 0
    %313 = vmatprep.subr.bf16.mxu0 0
    %314 = vmatpush1.bf16.msra.mxu0 0
    %315 = vmatprep.subr.bf16.mxu0 0
    %316 = vmatpush1.bf16.msra.mxu0 0
    %317 = vmatprep.mubr.bf16.mxu0 0
    %318 = vmatmul.mubr.bf16.gmra.mrb[0].mxu0 %v67
    %v319 = vpop.f32.mrb[0].mxu0
    %v320 = vadd.f32 %v108, %v319
    %v321 = vpop.f32.mrb[0].mxu0
    %v322 = vadd.f32 %v112, %v321
    %v323 = vpop.f32.mrb[0].mxu0
    %v324 = vadd.f32 %v108, %v323
    %v325 = vpop.f32.mrb[0].mxu0
    %v326 = vadd.f32 %v112, %v325
    %327 = vmatprep.mubr.bf16.mxu0 0
    %328 = vmatmul.mubr.bf16.gmra.mrb[0].mxu0 %v68
    %v329 = vpop.f32.mrb[0].mxu0
    %v330 = vadd.f32 %v108, %v329
    %v331 = vpop.f32.mrb[0].mxu0
    %v332 = vadd.f32 %v112, %v331
    %v333 = vpop.f32.mrb[0].mxu0
    %v334 = vadd.f32 %v108, %v333
    %v335 = vpop.f32.mrb[0].mxu0
    %v336 = vadd.f32 %v112, %v335
    %337 = vmatprep.mubr.bf16.mxu0 0
    %338 = vmatmul.mubr.bf16.gmra.mrb[0].mxu0 %v69
    %v339 = vpop.f32.mrb[0].mxu0
    %v340 = vadd.f32 %v108, %v339
    %v341 = vpop.f32.mrb[0].mxu0
    %v342 = vadd.f32 %v112, %v341
    %v343 = vpop.f32.mrb[0].mxu0
    %v344 = vadd.f32 %v108, %v343
    %v345 = vpop.f32.mrb[0].mxu0
    %v346 = vadd.f32 %v112, %v345
    %347 = vmatprep.mubr.bf16.mxu0 0
    %348 = vmatmul.mubr.bf16.gmra.mrb[0].mxu0 %v70
    %v349 = vpop.f32.mrb[0].mxu0
    %v350 = vadd.f32 %v108, %v349
    %v351 = vpop.f32.mrb[0].mxu0
    %v352 = vadd.f32 %v112, %v351
    %v353 = vpop.f32.mrb[0].mxu0
    %v354 = vadd.f32 %v108, %v353
    %v355 = vpop.f32.mrb[0].mxu0
    %v356 = vadd.f32 %v112, %v355
    %357 = vdwg.mxu0
    %358 = vmatprep.subr.bf16.mxu0 %v224
    %359 = vmatpush1.bf16.msra.mxu0 %v223
    %360 = vmatprep.subr.bf16.mxu0 %v228
    %361 = vmatpush1.bf16.msra.mxu0 %v227
    %362 = vmatprep.subr.bf16.mxu0 %v232
    %363 = vmatpush1.bf16.msra.mxu0 %v231
    %364 = vmatprep.subr.bf16.mxu0 %v236
    %365 = vmatpush1.bf16.msra.mxu0 %v235
    %366 = vmatprep.subr.bf16.mxu0 %v240
    %367 = vmatpush1.bf16.msra.mxu0 %v239
    %368 = vmatprep.subr.bf16.mxu0 %v244
    %369 = vmatpush1.bf16.msra.mxu0 %v243
    %370 = vmatprep.subr.bf16.mxu0 %v248
    %371 = vmatpush1.bf16.msra.mxu0 %v247
    %372 = vmatprep.subr.bf16.mxu0 %v252
    %373 = vmatpush1.bf16.msra.mxu0 %v251
    %374 = vmatprep.subr.bf16.mxu0 0
    %375 = vmatpush1.bf16.msra.mxu0 0
    %376 = vmatprep.subr.bf16.mxu0 0
    %377 = vmatpush1.bf16.msra.mxu0 0
    %378 = vmatprep.subr.bf16.mxu0 0
    %379 = vmatpush1.bf16.msra.mxu0 0
    %380 = vmatprep.subr.bf16.mxu0 0
    %381 = vmatpush1.bf16.msra.mxu0 0
    %382 = vmatprep.subr.bf16.mxu0 0
    %383 = vmatpush1.bf16.msra.mxu0 0
    %384 = vmatprep.subr.bf16.mxu0 0
    %385 = vmatpush1.bf16.msra.mxu0 0
    %386 = vmatprep.subr.bf16.mxu0 0
    %387 = vmatpush1.bf16.msra.mxu0 0
    %388 = vmatprep.subr.bf16.mxu0 0
    %389 = vmatpush1.bf16.msra.mxu0 0
    %390 = vmatprep.mubr.bf16.mxu0 0
    %391 = vmatmul.mubr.bf16.gmra.mrb[0].mxu0 %v67
    %v392 = vpop.f32.mrb[0].mxu0
    %v393 = vadd.f32 %v116, %v392
    %v394 = vpop.f32.mrb[0].mxu0
    %v395 = vadd.f32 %v120, %v394
    %v396 = vpop.f32.mrb[0].mxu0
    %v397 = vadd.f32 %v116, %v396
    %v398 = vpop.f32.mrb[0].mxu0
    %v399 = vadd.f32 %v120, %v398
    %400 = vmatprep.mubr.bf16.mxu0 0
    %401 = vmatmul.mubr.bf16.gmra.mrb[0].mxu0 %v68
    %v402 = vpop.f32.mrb[0].mxu0
    %v403 = vadd.f32 %v116, %v402
    %v404 = vpop.f32.mrb[0].mxu0
    %v405 = vadd.f32 %v120, %v404
    %v406 = vpop.f32.mrb[0].mxu0
    %v407 = vadd.f32 %v116, %v406
    %v408 = vpop.f32.mrb[0].mxu0
    %v409 = vadd.f32 %v120, %v408
    %410 = vmatprep.mubr.bf16.mxu0 0
    %411 = vmatmul.mubr.bf16.gmra.mrb[0].mxu0 %v69
    %v412 = vpop.f32.mrb[0].mxu0
    %v413 = vadd.f32 %v116, %v412
    %v414 = vpop.f32.mrb[0].mxu0
    %v415 = vadd.f32 %v120, %v414
    %v416 = vpop.f32.mrb[0].mxu0
    %v417 = vadd.f32 %v116, %v416
    %v418 = vpop.f32.mrb[0].mxu0
    %v419 = vadd.f32 %v120, %v418
    %420 = vmatprep.mubr.bf16.mxu0 0
    %421 = vmatmul.mubr.bf16.gmra.mrb[0].mxu0 %v70
    %v422 = vpop.f32.mrb[0].mxu0
    %v423 = vadd.f32 %v116, %v422
    %v424 = vpop.f32.mrb[0].mxu0
    %v425 = vadd.f32 %v120, %v424
    %v426 = vpop.f32.mrb[0].mxu0
    %v427 = vadd.f32 %v116, %v426
    %v428 = vpop.f32.mrb[0].mxu0
    %v429 = vadd.f32 %v120, %v428
    %430 = vdwg.mxu0
    %431 = vst [vmem:[#allocation2] sm:$0xff] %v320
    %432 = vst [vmem:[#allocation2 + $0x8] sm:$0xff] %v322
    %433 = vst [vmem:[#allocation2 + $0x10] sm:$0xff] %v393
    %434 = vst [vmem:[#allocation2 + $0x18] sm:$0xff] %v395
    %435 = vst [vmem:[#allocation2 + $0x20] sm:$0xff] %v324
    %436 = vst [vmem:[#allocation2 + $0x28] sm:$0xff] %v326
    %437 = vst [vmem:[#allocation2 + $0x30] sm:$0xff] %v397
    %438 = vst [vmem:[#allocation2 + $0x38] sm:$0xff] %v399
    %439 = vst [vmem:[#allocation2 + $0x40] sm:$0xff] %v330
    %440 = vst [vmem:[#allocation2 + $0x48] sm:$0xff] %v332
    %441 = vst [vmem:[#allocation2 + $0x50] sm:$0xff] %v403
    %442 = vst [vmem:[#allocation2 + $0x58] sm:$0xff] %v405
    %443 = vst [vmem:[#allocation2 + $0x60] sm:$0xff] %v334
    %444 = vst [vmem:[#allocation2 + $0x68] sm:$0xff] %v336
    %445 = vst [vmem:[#allocation2 + $0x70] sm:$0xff] %v407
    %446 = vst [vmem:[#allocation2 + $0x78] sm:$0xff] %v409
    %447 = vst [vmem:[#allocation2 + $0x80] sm:$0xff] %v340
    %448 = vst [vmem:[#allocation2 + $0x88] sm:$0xff] %v342
    %449 = vst [vmem:[#allocation2 + $0x90] sm:$0xff] %v413
    %450 = vst [vmem:[#allocation2 + $0x98] sm:$0xff] %v415
    %451 = vst [vmem:[#allocation2 + $0xa0] sm:$0xff] %v344
    %452 = vst [vmem:[#allocation2 + $0xa8] sm:$0xff] %v346
    %453 = vst [vmem:[#allocation2 + $0xb0] sm:$0xff] %v417
    %454 = vst [vmem:[#allocation2 + $0xb8] sm:$0xff] %v419
    %455 = vst [vmem:[#allocation2 + $0xc0] sm:$0xff] %v350
    %456 = vst [vmem:[#allocation2 + $0xc8] sm:$0xff] %v352
    %457 = vst [vmem:[#allocation2 + $0xd0] sm:$0xff] %v423
    %458 = vst [vmem:[#allocation2 + $0xd8] sm:$0xff] %v425
    %459 = vst [vmem:[#allocation2 + $0xe0] sm:$0xff] %v354
    %460 = vst [vmem:[#allocation2 + $0xe8] sm:$0xff] %v356
    %461 = vst [vmem:[#allocation2 + $0xf0] sm:$0xff] %v427
    %462 = vst [vmem:[#allocation2 + $0xf8] sm:$0xff] %v429
    %s463 = smul.u32 0, 4
    %s464 = smul.addr %s463, 8
    %s465 = scalar_lea.vmem [#allocation2], %s464
    %v466 = vld [vmem:[%s465] sm:$0xff]
    %v467 = vld [vmem:[%s465 + $0x8] sm:$0xff]
    %v468 = vld [vmem:[%s465 + $0x10] sm:$0xff]
    %v469 = vld [vmem:[%s465 + $0x18] sm:$0xff]
    %v470 = vld [vmem:[#allocation8] sm:$0xff]
    %v471 = vld [vmem:[#allocation8 + $0x8] sm:$0xff]
    %v472 = vld [vmem:[#allocation8 + $0x10] sm:$0xff]
    %v473 = vld [vmem:[#allocation8 + $0x18] sm:$0xff]
    %v474 = vld [vmem:[#allocation8 + $0x20] sm:$0xff]
    %v475 = vld [vmem:[#allocation8 + $0x28] sm:$0xff]
    %v476 = vld [vmem:[#allocation8 + $0x30] sm:$0xff]
    %v477 = vld [vmem:[#allocation8 + $0x38] sm:$0xff]
    %v478 = vld [vmem:[#allocation8 + $0x40] sm:$0xff]
    %v479 = vld [vmem:[#allocation8 + $0x48] sm:$0xff]
    %v480 = vld [vmem:[#allocation8 + $0x50] sm:$0xff]
    %v481 = vld [vmem:[#allocation8 + $0x58] sm:$0xff]
    %v482 = vld [vmem:[#allocation8 + $0x60] sm:$0xff]
    %v483 = vld [vmem:[#allocation8 + $0x68] sm:$0xff]
    %v484 = vld [vmem:[#allocation8 + $0x70] sm:$0xff]
    %v485 = vld [vmem:[#allocation8 + $0x78] sm:$0xff]
    %v486 = vld [vmem:[#allocation8 + $0x80] sm:$0xff]
    %v487 = vld [vmem:[#allocation8 + $0x88] sm:$0xff]
    %v488 = vld [vmem:[#allocation8 + $0x90] sm:$0xff]
    %v489 = vld [vmem:[#allocation8 + $0x98] sm:$0xff]
    %v490 = vld [vmem:[#allocation8 + $0xa0] sm:$0xff]
    %v491 = vld [vmem:[#allocation8 + $0xa8] sm:$0xff]
    %v492 = vld [vmem:[#allocation8 + $0xb0] sm:$0xff]
    %v493 = vld [vmem:[#allocation8 + $0xb8] sm:$0xff]
    %v494 = vld [vmem:[#allocation8 + $0xc0] sm:$0xff]
    %v495 = vld [vmem:[#allocation8 + $0xc8] sm:$0xff]
    %v496 = vld [vmem:[#allocation8 + $0xd0] sm:$0xff]
    %v497 = vld [vmem:[#allocation8 + $0xd8] sm:$0xff]
    %v498 = vld [vmem:[#allocation8 + $0xe0] sm:$0xff]
    %v499 = vld [vmem:[#allocation8 + $0xe8] sm:$0xff]
    %v500 = vld [vmem:[#allocation8 + $0xf0] sm:$0xff]
    %v501 = vld [vmem:[#allocation8 + $0xf8] sm:$0xff]
    %v502 = vld [vmem:[#allocation8 + $0x100] sm:$0xff]
    %v503 = vld [vmem:[#allocation8 + $0x108] sm:$0xff]
    %v504 = vld [vmem:[#allocation8 + $0x110] sm:$0xff]
    %v505 = vld [vmem:[#allocation8 + $0x118] sm:$0xff]
    %v506 = vld [vmem:[#allocation8 + $0x120] sm:$0xff]
    %v507 = vld [vmem:[#allocation8 + $0x128] sm:$0xff]
    %v508 = vld [vmem:[#allocation8 + $0x130] sm:$0xff]
    %v509 = vld [vmem:[#allocation8 + $0x138] sm:$0xff]
    %v510 = vld [vmem:[#allocation8 + $0x140] sm:$0xff]
    %v511 = vld [vmem:[#allocation8 + $0x148] sm:$0xff]
    %v512 = vld [vmem:[#allocation8 + $0x150] sm:$0xff]
    %v513 = vld [vmem:[#allocation8 + $0x158] sm:$0xff]
    %v514 = vld [vmem:[#allocation8 + $0x160] sm:$0xff]
    %v515 = vld [vmem:[#allocation8 + $0x168] sm:$0xff]
    %v516 = vld [vmem:[#allocation8 + $0x170] sm:$0xff]
    %v517 = vld [vmem:[#allocation8 + $0x178] sm:$0xff]
    %v518 = vld [vmem:[#allocation8 + $0x180] sm:$0xff]
    %v519 = vld [vmem:[#allocation8 + $0x188] sm:$0xff]
    %v520 = vld [vmem:[#allocation8 + $0x190] sm:$0xff]
    %v521 = vld [vmem:[#allocation8 + $0x198] sm:$0xff]
    %v522 = vld [vmem:[#allocation8 + $0x1a0] sm:$0xff]
    %v523 = vld [vmem:[#allocation8 + $0x1a8] sm:$0xff]
    %v524 = vld [vmem:[#allocation8 + $0x1b0] sm:$0xff]
    %v525 = vld [vmem:[#allocation8 + $0x1b8] sm:$0xff]
    %v526 = vld [vmem:[#allocation8 + $0x1c0] sm:$0xff]
    %v527 = vld [vmem:[#allocation8 + $0x1c8] sm:$0xff]
    %v528 = vld [vmem:[#allocation8 + $0x1d0] sm:$0xff]
    %v529 = vld [vmem:[#allocation8 + $0x1d8] sm:$0xff]
    %v530 = vld [vmem:[#allocation8 + $0x1e0] sm:$0xff]
    %v531 = vld [vmem:[#allocation8 + $0x1e8] sm:$0xff]
    %v532 = vld [vmem:[#allocation8 + $0x1f0] sm:$0xff]
    %v533 = vld [vmem:[#allocation8 + $0x1f8] sm:$0xff]
    %534 = vmatprep.subr.mxu0 %v471
    %535 = vmatpush1.msra.mxu0 %v470
    %536 = vmatprep.subr.mxu0 %v475
    %537 = vmatpush1.msra.mxu0 %v474
    %538 = vmatprep.subr.mxu0 %v479
    %539 = vmatpush1.msra.mxu0 %v478
    %540 = vmatprep.subr.mxu0 %v483
    %541 = vmatpush1.msra.mxu0 %v482
    %542 = vmatprep.subr.mxu0 %v487
    %543 = vmatpush1.msra.mxu0 %v486
    %544 = vmatprep.subr.mxu0 %v491
    %545 = vmatpush1.msra.mxu0 %v490
    %546 = vmatprep.subr.mxu0 %v495
    %547 = vmatpush1.msra.mxu0 %v494
    %548 = vmatprep.subr.mxu0 %v499
    %549 = vmatpush1.msra.mxu0 %v498
    %550 = vmatprep.subr.mxu0 %v503
    %551 = vmatpush1.msra.mxu0 %v502
    %552 = vmatprep.subr.mxu0 %v507
    %553 = vmatpush1.msra.mxu0 %v506
    %554 = vmatprep.subr.mxu0 %v511
    %555 = vmatpush1.msra.mxu0 %v510
    %556 = vmatprep.subr.mxu0 %v515
    %557 = vmatpush1.msra.mxu0 %v514
    %558 = vmatprep.subr.mxu0 %v519
    %559 = vmatpush1.msra.mxu0 %v518
    %560 = vmatprep.subr.mxu0 %v523
    %561 = vmatpush1.msra.mxu0 %v522
    %562 = vmatprep.subr.mxu0 %v527
    %563 = vmatpush1.msra.mxu0 %v526
    %564 = vmatprep.subr.mxu0 %v531
    %565 = vmatpush1.msra.mxu0 %v530
    %566 = vmatprep.subr.mxu0 0.0
    %567 = vmatpush1.msra.mxu0 0.0
    %568 = vmatprep.subr.mxu0 0.0
    %569 = vmatpush1.msra.mxu0 0.0
    %570 = vmatprep.subr.mxu0 0.0
    %571 = vmatpush1.msra.mxu0 0.0
    %572 = vmatprep.subr.mxu0 0.0
    %573 = vmatpush1.msra.mxu0 0.0
    %574 = vmatprep.subr.mxu0 0.0
    %575 = vmatpush1.msra.mxu0 0.0
    %576 = vmatprep.subr.mxu0 0.0
    %577 = vmatpush1.msra.mxu0 0.0
    %578 = vmatprep.subr.mxu0 0.0
    %579 = vmatpush1.msra.mxu0 0.0
    %580 = vmatprep.subr.mxu0 0.0
    %581 = vmatpush1.msra.mxu0 0.0
    %582 = vmatprep.subr.mxu0 0.0
    %583 = vmatpush1.msra.mxu0 0.0
    %584 = vmatprep.subr.mxu0 0.0
    %585 = vmatpush1.msra.mxu0 0.0
    %586 = vmatprep.subr.mxu0 0.0
    %587 = vmatpush1.msra.mxu0 0.0
    %588 = vmatprep.subr.mxu0 0.0
    %589 = vmatpush1.msra.mxu0 0.0
    %590 = vmatprep.subr.mxu0 0.0
    %591 = vmatpush1.msra.mxu0 0.0
    %592 = vmatprep.subr.mxu0 0.0
    %593 = vmatpush1.msra.mxu0 0.0
    %594 = vmatprep.subr.mxu0 0.0
    %595 = vmatpush1.msra.mxu0 0.0
    %596 = vmatprep.subr.mxu0 0.0
    %597 = vmatpush1.msra.mxu0 0.0
    %598 = vmatprep.mubr.f32.mxu0 0.0
    %599 = vmatmul.mubr.f32.gmra.mrb[0].mxu0 0.0
    %v600 = vpop.f32.mrb[0].mxu0
    %v601 = vadd.f32 0.0, %v600
    %v602 = vpop.f32.mrb[0].mxu0
    %v603 = vadd.f32 0.0, %v602
    %604 = vdwg.mxu0
    %605 = vmatprep.subr.mxu0 %v473
    %606 = vmatpush1.msra.mxu0 %v472
    %607 = vmatprep.subr.mxu0 %v477
    %608 = vmatpush1.msra.mxu0 %v476
    %609 = vmatprep.subr.mxu0 %v481
    %610 = vmatpush1.msra.mxu0 %v480
    %611 = vmatprep.subr.mxu0 %v485
    %612 = vmatpush1.msra.mxu0 %v484
    %613 = vmatprep.subr.mxu0 %v489
    %614 = vmatpush1.msra.mxu0 %v488
    %615 = vmatprep.subr.mxu0 %v493
    %616 = vmatpush1.msra.mxu0 %v492
    %617 = vmatprep.subr.mxu0 %v497
    %618 = vmatpush1.msra.mxu0 %v496
    %619 = vmatprep.subr.mxu0 %v501
    %620 = vmatpush1.msra.mxu0 %v500
    %621 = vmatprep.subr.mxu0 %v505
    %622 = vmatpush1.msra.mxu0 %v504
    %623 = vmatprep.subr.mxu0 %v509
    %624 = vmatpush1.msra.mxu0 %v508
    %625 = vmatprep.subr.mxu0 %v513
    %626 = vmatpush1.msra.mxu0 %v512
    %627 = vmatprep.subr.mxu0 %v517
    %628 = vmatpush1.msra.mxu0 %v516
    %629 = vmatprep.subr.mxu0 %v521
    %630 = vmatpush1.msra.mxu0 %v520
    %631 = vmatprep.subr.mxu0 %v525
    %632 = vmatpush1.msra.mxu0 %v524
    %633 = vmatprep.subr.mxu0 %v529
    %634 = vmatpush1.msra.mxu0 %v528
    %635 = vmatprep.subr.mxu0 %v533
    %636 = vmatpush1.msra.mxu0 %v532
    %637 = vmatprep.subr.mxu0 0.0
    %638 = vmatpush1.msra.mxu0 0.0
    %639 = vmatprep.subr.mxu0 0.0
    %640 = vmatpush1.msra.mxu0 0.0
    %641 = vmatprep.subr.mxu0 0.0
    %642 = vmatpush1.msra.mxu0 0.0
    %643 = vmatprep.subr.mxu0 0.0
    %644 = vmatpush1.msra.mxu0 0.0
    %645 = vmatprep.subr.mxu0 0.0
    %646 = vmatpush1.msra.mxu0 0.0
    %647 = vmatprep.subr.mxu0 0.0
    %648 = vmatpush1.msra.mxu0 0.0
    %649 = vmatprep.subr.mxu0 0.0
    %650 = vmatpush1.msra.mxu0 0.0
    %651 = vmatprep.subr.mxu0 0.0
    %652 = vmatpush1.msra.mxu0 0.0
    %653 = vmatprep.subr.mxu0 0.0
    %654 = vmatpush1.msra.mxu0 0.0
    %655 = vmatprep.subr.mxu0 0.0
    %656 = vmatpush1.msra.mxu0 0.0
    %657 = vmatprep.subr.mxu0 0.0
    %658 = vmatpush1.msra.mxu0 0.0
    %659 = vmatprep.subr.mxu0 0.0
    %660 = vmatpush1.msra.mxu0 0.0
    %661 = vmatprep.subr.mxu0 0.0
    %662 = vmatpush1.msra.mxu0 0.0
    %663 = vmatprep.subr.mxu0 0.0
    %664 = vmatpush1.msra.mxu0 0.0
    %665 = vmatprep.subr.mxu0 0.0
    %666 = vmatpush1.msra.mxu0 0.0
    %667 = vmatprep.subr.mxu0 0.0
    %668 = vmatpush1.msra.mxu0 0.0
    %669 = vmatprep.mubr.f32.mxu0 0.0
    %670 = vmatmul.mubr.f32.gmra.mrb[0].mxu0 0.0
    %v671 = vpop.f32.mrb[0].mxu0
    %v672 = vadd.f32 0.0, %v671
    %v673 = vpop.f32.mrb[0].mxu0
    %v674 = vadd.f32 0.0, %v673
    %675 = vdwg.mxu0
    %v676 = vadd.f32 %v466, %v601
    %v677 = vadd.f32 %v467, %v603
    %v678 = vadd.f32 %v468, %v672
    %v679 = vadd.f32 %v469, %v674
    %v680 = vxor.u32 %v676, 2147483648
    %v681 = vmul.f32 %v680, 1.442695
    %v682 = vpow.pop %v681
    %v683 = vadd.f32 %v682, 1.0
    %v684 = vrcp.pop %v683
    %v685 = vmul.f32 1.0, %v684
    %v686 = vxor.u32 %v677, 2147483648
    %v687 = vmul.f32 %v686, 1.442695
    %v688 = vpow.pop %v687
    %v689 = vadd.f32 %v688, 1.0
    %v690 = vrcp.pop %v689
    %v691 = vmul.f32 1.0, %v690
    %v692 = vtanh.pop %v678
    %v693 = vxor.u32 %v679, 2147483648
    %v694 = vmul.f32 %v693, 1.442695
    %v695 = vpow.pop %v694
    %v696 = vadd.f32 %v695, 1.0
    %v697 = vrcp.pop %v696
    %v698 = vmul.f32 1.0, %v697
    %v699 = vmul.f32 %v691, 0.0
    %v700 = vmul.f32 %v685, %v692
    %v701 = vadd.f32 %v699, %v700
    %v702 = vtanh.pop %v701
    %v703 = vmul.f32 %v698, %v702
    %704 = vst [vmem:[#allocation3] sm:$0xff] %v703
    %s705 = scalar_lea.vmem [#allocation4], 56
    %706 = vst [vmem:[%s705] sm:$0xff] %v703
    %s707 = smul.u32 1, 4
    %s708 = smul.addr %s707, 8
    %s709 = scalar_lea.vmem [#allocation2], %s708
    %v710 = vld [vmem:[%s709] sm:$0xff]
    %v711 = vld [vmem:[%s709 + $0x8] sm:$0xff]
    %v712 = vld [vmem:[%s709 + $0x10] sm:$0xff]
    %v713 = vld [vmem:[%s709 + $0x18] sm:$0xff]
    %v714 = vld [vmem:[#allocation8] sm:$0xff]
    %v715 = vld [vmem:[#allocation8 + $0x8] sm:$0xff]
    %v716 = vld [vmem:[#allocation8 + $0x10] sm:$0xff]
    %v717 = vld [vmem:[#allocation8 + $0x18] sm:$0xff]
    %v718 = vld [vmem:[#allocation8 + $0x20] sm:$0xff]
    %v719 = vld [vmem:[#allocation8 + $0x28] sm:$0xff]
    %v720 = vld [vmem:[#allocation8 + $0x30] sm:$0xff]
    %v721 = vld [vmem:[#allocation8 + $0x38] sm:$0xff]
    %v722 = vld [vmem:[#allocation8 + $0x40] sm:$0xff]
    %v723 = vld [vmem:[#allocation8 + $0x48] sm:$0xff]
    %v724 = vld [vmem:[#allocation8 + $0x50] sm:$0xff]
    %v725 = vld [vmem:[#allocation8 + $0x58] sm:$0xff]
    %v726 = vld [vmem:[#allocation8 + $0x60] sm:$0xff]
    %v727 = vld [vmem:[#allocation8 + $0x68] sm:$0xff]
    %v728 = vld [vmem:[#allocation8 + $0x70] sm:$0xff]
    %v729 = vld [vmem:[#allocation8 + $0x78] sm:$0xff]
    %v730 = vld [vmem:[#allocation8 + $0x80] sm:$0xff]
    %v731 = vld [vmem:[#allocation8 + $0x88] sm:$0xff]
    %v732 = vld [vmem:[#allocation8 + $0x90] sm:$0xff]
    %v733 = vld [vmem:[#allocation8 + $0x98] sm:$0xff]
    %v734 = vld [vmem:[#allocation8 + $0xa0] sm:$0xff]
    %v735 = vld [vmem:[#allocation8 + $0xa8] sm:$0xff]
    %v736 = vld [vmem:[#allocation8 + $0xb0] sm:$0xff]
    %v737 = vld [vmem:[#allocation8 + $0xb8] sm:$0xff]
    %v738 = vld [vmem:[#allocation8 + $0xc0] sm:$0xff]
    %v739 = vld [vmem:[#allocation8 + $0xc8] sm:$0xff]
    %v740 = vld [vmem:[#allocation8 + $0xd0] sm:$0xff]
    %v741 = vld [vmem:[#allocation8 + $0xd8] sm:$0xff]
    %v742 = vld [vmem:[#allocation8 + $0xe0] sm:$0xff]
    %v743 = vld [vmem:[#allocation8 + $0xe8] sm:$0xff]
    %v744 = vld [vmem:[#allocation8 + $0xf0] sm:$0xff]
    %v745 = vld [vmem:[#allocation8 + $0xf8] sm:$0xff]
    %v746 = vld [vmem:[#allocation8 + $0x100] sm:$0xff]
    %v747 = vld [vmem:[#allocation8 + $0x108] sm:$0xff]
    %v748 = vld [vmem:[#allocation8 + $0x110] sm:$0xff]
    %v749 = vld [vmem:[#allocation8 + $0x118] sm:$0xff]
    %v750 = vld [vmem:[#allocation8 + $0x120] sm:$0xff]
    %v751 = vld [vmem:[#allocation8 + $0x128] sm:$0xff]
    %v752 = vld [vmem:[#allocation8 + $0x130] sm:$0xff]
    %v753 = vld [vmem:[#allocation8 + $0x138] sm:$0xff]
    %v754 = vld [vmem:[#allocation8 + $0x140] sm:$0xff]
    %v755 = vld [vmem:[#allocation8 + $0x148] sm:$0xff]
    %v756 = vld [vmem:[#allocation8 + $0x150] sm:$0xff]
    %v757 = vld [vmem:[#allocation8 + $0x158] sm:$0xff]
    %v758 = vld [vmem:[#allocation8 + $0x160] sm:$0xff]
    %v759 = vld [vmem:[#allocation8 + $0x168] sm:$0xff]
    %v760 = vld [vmem:[#allocation8 + $0x170] sm:$0xff]
    %v761 = vld [vmem:[#allocation8 + $0x178] sm:$0xff]
    %v762 = vld [vmem:[#allocation8 + $0x180] sm:$0xff]
    %v763 = vld [vmem:[#allocation8 + $0x188] sm:$0xff]
    %v764 = vld [vmem:[#allocation8 + $0x190] sm:$0xff]
    %v765 = vld [vmem:[#allocation8 + $0x198] sm:$0xff]
    %v766 = vld [vmem:[#allocation8 + $0x1a0] sm:$0xff]
    %v767 = vld [vmem:[#allocation8 + $0x1a8] sm:$0xff]
    %v768 = vld [vmem:[#allocation8 + $0x1b0] sm:$0xff]
    %v769 = vld [vmem:[#allocation8 + $0x1b8] sm:$0xff]
    %v770 = vld [vmem:[#allocation8 + $0x1c0] sm:$0xff]
    %v771 = vld [vmem:[#allocation8 + $0x1c8] sm:$0xff]
    %v772 = vld [vmem:[#allocation8 + $0x1d0] sm:$0xff]
    %v773 = vld [vmem:[#allocation8 + $0x1d8] sm:$0xff]
    %v774 = vld [vmem:[#allocation8 + $0x1e0] sm:$0xff]
    %v775 = vld [vmem:[#allocation8 + $0x1e8] sm:$0xff]
    %v776 = vld [vmem:[#allocation8 + $0x1f0] sm:$0xff]
    %v777 = vld [vmem:[#allocation8 + $0x1f8] sm:$0xff]
    %778 = vmatprep.subr.mxu0 %v715
    %779 = vmatpush1.msra.mxu0 %v714
    %780 = vmatprep.subr.mxu0 %v719
    %781 = vmatpush1.msra.mxu0 %v718
    %782 = vmatprep.subr.mxu0 %v723
    %783 = vmatpush1.msra.mxu0 %v722
    %784 = vmatprep.subr.mxu0 %v727
    %785 = vmatpush1.msra.mxu0 %v726
    %786 = vmatprep.subr.mxu0 %v731
    %787 = vmatpush1.msra.mxu0 %v730
    %788 = vmatprep.subr.mxu0 %v735
    %789 = vmatpush1.msra.mxu0 %v734
    %790 = vmatprep.subr.mxu0 %v739
    %791 = vmatpush1.msra.mxu0 %v738
    %792 = vmatprep.subr.mxu0 %v743
    %793 = vmatpush1.msra.mxu0 %v742
    %794 = vmatprep.subr.mxu0 %v747
    %795 = vmatpush1.msra.mxu0 %v746
    %796 = vmatprep.subr.mxu0 %v751
    %797 = vmatpush1.msra.mxu0 %v750
    %798 = vmatprep.subr.mxu0 %v755
    %799 = vmatpush1.msra.mxu0 %v754
    %800 = vmatprep.subr.mxu0 %v759
    %801 = vmatpush1.msra.mxu0 %v758
    %802 = vmatprep.subr.mxu0 %v763
    %803 = vmatpush1.msra.mxu0 %v762
    %804 = vmatprep.subr.mxu0 %v767
    %805 = vmatpush1.msra.mxu0 %v766
    %806 = vmatprep.subr.mxu0 %v771
    %807 = vmatpush1.msra.mxu0 %v770
    %808 = vmatprep.subr.mxu0 %v775
    %809 = vmatpush1.msra.mxu0 %v774
    %810 = vmatprep.subr.mxu0 0.0
    %811 = vmatpush1.msra.mxu0 0.0
    %812 = vmatprep.subr.mxu0 0.0
    %813 = vmatpush1.msra.mxu0 0.0
    %814 = vmatprep.subr.mxu0 0.0
    %815 = vmatpush1.msra.mxu0 0.0
    %816 = vmatprep.subr.mxu0 0.0
    %817 = vmatpush1.msra.mxu0 0.0
    %818 = vmatprep.subr.mxu0 0.0
    %819 = vmatpush1.msra.mxu0 0.0
    %820 = vmatprep.subr.mxu0 0.0
    %821 = vmatpush1.msra.mxu0 0.0
    %822 = vmatprep.subr.mxu0 0.0
    %823 = vmatpush1.msra.mxu0 0.0
    %824 = vmatprep.subr.mxu0 0.0
    %825 = vmatpush1.msra.mxu0 0.0
    %826 = vmatprep.subr.mxu0 0.0
    %827 = vmatpush1.msra.mxu0 0.0
    %828 = vmatprep.subr.mxu0 0.0
    %829 = vmatpush1.msra.mxu0 0.0
    %830 = vmatprep.subr.mxu0 0.0
    %831 = vmatpush1.msra.mxu0 0.0
    %832 = vmatprep.subr.mxu0 0.0
    %833 = vmatpush1.msra.mxu0 0.0
    %834 = vmatprep.subr.mxu0 0.0
    %835 = vmatpush1.msra.mxu0 0.0
    %836 = vmatprep.subr.mxu0 0.0
    %837 = vmatpush1.msra.mxu0 0.0
    %838 = vmatprep.subr.mxu0 0.0
    %839 = vmatpush1.msra.mxu0 0.0
    %840 = vmatprep.subr.mxu0 0.0
    %841 = vmatpush1.msra.mxu0 0.0
    %842 = vmatprep.mubr.f32.mxu0 0.0
    %843 = vmatmul.mubr.f32.gmra.mrb[0].mxu0 %v703
    %v844 = vpop.f32.mrb[0].mxu0
    %v845 = vadd.f32 0.0, %v844
    %v846 = vpop.f32.mrb[0].mxu0
    %v847 = vadd.f32 0.0, %v846
    %848 = vdwg.mxu0
    %849 = vmatprep.subr.mxu0 %v717
    %850 = vmatpush1.msra.mxu0 %v716
    %851 = vmatprep.subr.mxu0 %v721
    %852 = vmatpush1.msra.mxu0 %v720
    %853 = vmatprep.subr.mxu0 %v725
    %854 = vmatpush1.msra.mxu0 %v724
    %855 = vmatprep.subr.mxu0 %v729
    %856 = vmatpush1.msra.mxu0 %v728
    %857 = vmatprep.subr.mxu0 %v733
    %858 = vmatpush1.msra.mxu0 %v732
    %859 = vmatprep.subr.mxu0 %v737
    %860 = vmatpush1.msra.mxu0 %v736
    %861 = vmatprep.subr.mxu0 %v741
    %862 = vmatpush1.msra.mxu0 %v740
    %863 = vmatprep.subr.mxu0 %v745
    %864 = vmatpush1.msra.mxu0 %v744
    %865 = vmatprep.subr.mxu0 %v749
    %866 = vmatpush1.msra.mxu0 %v748
    %867 = vmatprep.subr.mxu0 %v753
    %868 = vmatpush1.msra.mxu0 %v752
    %869 = vmatprep.subr.mxu0 %v757
    %870 = vmatpush1.msra.mxu0 %v756
    %871 = vmatprep.subr.mxu0 %v761
    %872 = vmatpush1.msra.mxu0 %v760
    %873 = vmatprep.subr.mxu0 %v765
    %874 = vmatpush1.msra.mxu0 %v764
    %875 = vmatprep.subr.mxu0 %v769
    %876 = vmatpush1.msra.mxu0 %v768
    %877 = vmatprep.subr.mxu0 %v773
    %878 = vmatpush1.msra.mxu0 %v772
    %879 = vmatprep.subr.mxu0 %v777
    %880 = vmatpush1.msra.mxu0 %v776
    %881 = vmatprep.subr.mxu0 0.0
    %882 = vmatpush1.msra.mxu0 0.0
    %883 = vmatprep.subr.mxu0 0.0
    %884 = vmatpush1.msra.mxu0 0.0
    %885 = vmatprep.subr.mxu0 0.0
    %886 = vmatpush1.msra.mxu0 0.0
    %887 = vmatprep.subr.mxu0 0.0
    %888 = vmatpush1.msra.mxu0 0.0
    %889 = vmatprep.subr.mxu0 0.0
    %890 = vmatpush1.msra.mxu0 0.0
    %891 = vmatprep.subr.mxu0 0.0
    %892 = vmatpush1.msra.mxu0 0.0
    %893 = vmatprep.subr.mxu0 0.0
    %894 = vmatpush1.msra.mxu0 0.0
    %895 = vmatprep.subr.mxu0 0.0
    %896 = vmatpush1.msra.mxu0 0.0
    %897 = vmatprep.subr.mxu0 0.0
    %898 = vmatpush1.msra.mxu0 0.0
    %899 = vmatprep.subr.mxu0 0.0
    %900 = vmatpush1.msra.mxu0 0.0
    %901 = vmatprep.subr.mxu0 0.0
    %902 = vmatpush1.msra.mxu0 0.0
    %903 = vmatprep.subr.mxu0 0.0
    %904 = vmatpush1.msra.mxu0 0.0
    %905 = vmatprep.subr.mxu0 0.0
    %906 = vmatpush1.msra.mxu0 0.0
    %907 = vmatprep.subr.mxu0 0.0
    %908 = vmatpush1.msra.mxu0 0.0
    %909 = vmatprep.subr.mxu0 0.0
    %910 = vmatpush1.msra.mxu0 0.0
    %911 = vmatprep.subr.mxu0 0.0
    %912 = vmatpush1.msra.mxu0 0.0
    %913 = vmatprep.mubr.f32.mxu0 0.0
    %914 = vmatmul.mubr.f32.gmra.mrb[0].mxu0 %v703
    %v915 = vpop.f32.mrb[0].mxu0
    %v916 = vadd.f32 0.0, %v915
    %v917 = vpop.f32.mrb[0].mxu0
    %v918 = vadd.f32 0.0, %v917
    %919 = vdwg.mxu0
    %v920 = vadd.f32 %v710, %v845
    %v921 = vadd.f32 %v711, %v847
    %v922 = vadd.f32 %v712, %v916
    %v923 = vadd.f32 %v713, %v918
    %v924 = vxor.u32 %v920, 2147483648
    %v925 = vmul.f32 %v924, 1.442695
    %v926 = vpow.pop %v925
    %v927 = vadd.f32 %v926, 1.0
    %v928 = vrcp.pop %v927
    %v929 = vmul.f32 1.0, %v928
    %v930 = vxor.u32 %v921, 2147483648
    %v931 = vmul.f32 %v930, 1.442695
    %v932 = vpow.pop %v931
    %v933 = vadd.f32 %v932, 1.0
    %v934 = vrcp.pop %v933
    %v935 = vmul.f32 1.0, %v934
    %v936 = vtanh.pop %v922
    %v937 = vxor.u32 %v923, 2147483648
    %v938 = vmul.f32 %v937, 1.442695
    %v939 = vpow.pop %v938
    %v940 = vadd.f32 %v939, 1.0
    %v941 = vrcp.pop %v940
    %v942 = vmul.f32 1.0, %v941
    %v943 = vmul.f32 %v935, %v701
    %v944 = vmul.f32 %v929, %v936
    %v945 = vadd.f32 %v943, %v944
    %v946 = vtanh.pop %v945
    %v947 = vmul.f32 %v942, %v946
    %s948 = scalar_lea.vmem [#allocation3], 8
    %949 = vst [vmem:[%s948] sm:$0xff] %v947
    %s950 = scalar_lea.vmem [#allocation4], 48
    %951 = vst [vmem:[%s950] sm:$0xff] %v947
    %s952 = smul.u32 2, 4
    %s953 = smul.addr %s952, 8
    %s954 = scalar_lea.vmem [#allocation2], %s953
    %v955 = vld [vmem:[%s954] sm:$0xff]
    %v956 = vld [vmem:[%s954 + $0x8] sm:$0xff]
    %v957 = vld [vmem:[%s954 + $0x10] sm:$0xff]
    %v958 = vld [vmem:[%s954 + $0x18] sm:$0xff]
    %v959 = vld [vmem:[#allocation8] sm:$0xff]
    %v960 = vld [vmem:[#allocation8 + $0x8] sm:$0xff]
    %v961 = vld [vmem:[#allocation8 + $0x10] sm:$0xff]
    %v962 = vld [vmem:[#allocation8 + $0x18] sm:$0xff]
    %v963 = vld [vmem:[#allocation8 + $0x20] sm:$0xff]
    %v964 = vld [vmem:[#allocation8 + $0x28] sm:$0xff]
    %v965 = vld [vmem:[#allocation8 + $0x30] sm:$0xff]
    %v966 = vld [vmem:[#allocation8 + $0x38] sm:$0xff]
    %v967 = vld [vmem:[#allocation8 + $0x40] sm:$0xff]
    %v968 = vld [vmem:[#allocation8 + $0x48] sm:$0xff]
    %v969 = vld [vmem:[#allocation8 + $0x50] sm:$0xff]
    %v970 = vld [vmem:[#allocation8 + $0x58] sm:$0xff]
    %v971 = vld [vmem:[#allocation8 + $0x60] sm:$0xff]
    %v972 = vld [vmem:[#allocation8 + $0x68] sm:$0xff]
    %v973 = vld [vmem:[#allocation8 + $0x70] sm:$0xff]
    %v974 = vld [vmem:[#allocation8 + $0x78] sm:$0xff]
    %v975 = vld [vmem:[#allocation8 + $0x80] sm:$0xff]
    %v976 = vld [vmem:[#allocation8 + $0x88] sm:$0xff]
    %v977 = vld [vmem:[#allocation8 + $0x90] sm:$0xff]
    %v978 = vld [vmem:[#allocation8 + $0x98] sm:$0xff]
    %v979 = vld [vmem:[#allocation8 + $0xa0] sm:$0xff]
    %v980 = vld [vmem:[#allocation8 + $0xa8] sm:$0xff]
    %v981 = vld [vmem:[#allocation8 + $0xb0] sm:$0xff]
    %v982 = vld [vmem:[#allocation8 + $0xb8] sm:$0xff]
    %v983 = vld [vmem:[#allocation8 + $0xc0] sm:$0xff]
    %v984 = vld [vmem:[#allocation8 + $0xc8] sm:$0xff]
    %v985 = vld [vmem:[#allocation8 + $0xd0] sm:$0xff]
    %v986 = vld [vmem:[#allocation8 + $0xd8] sm:$0xff]
    %v987 = vld [vmem:[#allocation8 + $0xe0] sm:$0xff]
    %v988 = vld [vmem:[#allocation8 + $0xe8] sm:$0xff]
    %v989 = vld [vmem:[#allocation8 + $0xf0] sm:$0xff]
    %v990 = vld [vmem:[#allocation8 + $0xf8] sm:$0xff]
    %v991 = vld [vmem:[#allocation8 + $0x100] sm:$0xff]
    %v992 = vld [vmem:[#allocation8 + $0x108] sm:$0xff]
    %v993 = vld [vmem:[#allocation8 + $0x110] sm:$0xff]
    %v994 = vld [vmem:[#allocation8 + $0x118] sm:$0xff]
    %v995 = vld [vmem:[#allocation8 + $0x120] sm:$0xff]
    %v996 = vld [vmem:[#allocation8 + $0x128] sm:$0xff]
    %v997 = vld [vmem:[#allocation8 + $0x130] sm:$0xff]
    %v998 = vld [vmem:[#allocation8 + $0x138] sm:$0xff]
    %v999 = vld [vmem:[#allocation8 + $0x140] sm:$0xff]
    %v1000 = vld [vmem:[#allocation8 + $0x148] sm:$0xff]
    %v1001 = vld [vmem:[#allocation8 + $0x150] sm:$0xff]
    %v1002 = vld [vmem:[#allocation8 + $0x158] sm:$0xff]
    %v1003 = vld [vmem:[#allocation8 + $0x160] sm:$0xff]
    %v1004 = vld [vmem:[#allocation8 + $0x168] sm:$0xff]
    %v1005 = vld [vmem:[#allocation8 + $0x170] sm:$0xff]
    %v1006 = vld [vmem:[#allocation8 + $0x178] sm:$0xff]
    %v1007 = vld [vmem:[#allocation8 + $0x180] sm:$0xff]
    %v1008 = vld [vmem:[#allocation8 + $0x188] sm:$0xff]
    %v1009 = vld [vmem:[#allocation8 + $0x190] sm:$0xff]
    %v1010 = vld [vmem:[#allocation8 + $0x198] sm:$0xff]
    %v1011 = vld [vmem:[#allocation8 + $0x1a0] sm:$0xff]
    %v1012 = vld [vmem:[#allocation8 + $0x1a8] sm:$0xff]
    %v1013 = vld [vmem:[#allocation8 + $0x1b0] sm:$0xff]
    %v1014 = vld [vmem:[#allocation8 + $0x1b8] sm:$0xff]
    %v1015 = vld [vmem:[#allocation8 + $0x1c0] sm:$0xff]
    %v1016 = vld [vmem:[#allocation8 + $0x1c8] sm:$0xff]
    %v1017 = vld [vmem:[#allocation8 + $0x1d0] sm:$0xff]
    %v1018 = vld [vmem:[#allocation8 + $0x1d8] sm:$0xff]
    %v1019 = vld [vmem:[#allocation8 + $0x1e0] sm:$0xff]
    %v1020 = vld [vmem:[#allocation8 + $0x1e8] sm:$0xff]
    %v1021 = vld [vmem:[#allocation8 + $0x1f0] sm:$0xff]
    %v1022 = vld [vmem:[#allocation8 + $0x1f8] sm:$0xff]
    %1023 = vmatprep.subr.mxu0 %v960
    %1024 = vmatpush1.msra.mxu0 %v959
    %1025 = vmatprep.subr.mxu0 %v964
    %1026 = vmatpush1.msra.mxu0 %v963
    %1027 = vmatprep.subr.mxu0 %v968
    %1028 = vmatpush1.msra.mxu0 %v967
    %1029 = vmatprep.subr.mxu0 %v972
    %1030 = vmatpush1.msra.mxu0 %v971
    %1031 = vmatprep.subr.mxu0 %v976
    %1032 = vmatpush1.msra.mxu0 %v975
    %1033 = vmatprep.subr.mxu0 %v980
    %1034 = vmatpush1.msra.mxu0 %v979
    %1035 = vmatprep.subr.mxu0 %v984
    %1036 = vmatpush1.msra.mxu0 %v983
    %1037 = vmatprep.subr.mxu0 %v988
    %1038 = vmatpush1.msra.mxu0 %v987
    %1039 = vmatprep.subr.mxu0 %v992
    %1040 = vmatpush1.msra.mxu0 %v991
    %1041 = vmatprep.subr.mxu0 %v996
    %1042 = vmatpush1.msra.mxu0 %v995
    %1043 = vmatprep.subr.mxu0 %v1000
    %1044 = vmatpush1.msra.mxu0 %v999
    %1045 = vmatprep.subr.mxu0 %v1004
    %1046 = vmatpush1.msra.mxu0 %v1003
    %1047 = vmatprep.subr.mxu0 %v1008
    %1048 = vmatpush1.msra.mxu0 %v1007
    %1049 = vmatprep.subr.mxu0 %v1012
    %1050 = vmatpush1.msra.mxu0 %v1011
    %1051 = vmatprep.subr.mxu0 %v1016
    %1052 = vmatpush1.msra.mxu0 %v1015
    %1053 = vmatprep.subr.mxu0 %v1020
    %1054 = vmatpush1.msra.mxu0 %v1019
    %1055 = vmatprep.subr.mxu0 0.0
    %1056 = vmatpush1.msra.mxu0 0.0
    %1057 = vmatprep.subr.mxu0 0.0
    %1058 = vmatpush1.msra.mxu0 0.0
    %1059 = vmatprep.subr.mxu0 0.0
    %1060 = vmatpush1.msra.mxu0 0.0
    %1061 = vmatprep.subr.mxu0 0.0
    %1062 = vmatpush1.msra.mxu0 0.0
    %1063 = vmatprep.subr.mxu0 0.0
    %1064 = vmatpush1.msra.mxu0 0.0
    %1065 = vmatprep.subr.mxu0 0.0
    %1066 = vmatpush1.msra.mxu0 0.0
    %1067 = vmatprep.subr.mxu0 0.0
    %1068 = vmatpush1.msra.mxu0 0.0
    %1069 = vmatprep.subr.mxu0 0.0
    %1070 = vmatpush1.msra.mxu0 0.0
    %1071 = vmatprep.subr.mxu0 0.0
    %1072 = vmatpush1.msra.mxu0 0.0
    %1073 = vmatprep.subr.mxu0 0.0
    %1074 = vmatpush1.msra.mxu0 0.0
    %1075 = vmatprep.subr.mxu0 0.0
    %1076 = vmatpush1.msra.mxu0 0.0
    %1077 = vmatprep.subr.mxu0 0.0
    %1078 = vmatpush1.msra.mxu0 0.0
    %1079 = vmatprep.subr.mxu0 0.0
    %1080 = vmatpush1.msra.mxu0 0.0
    %1081 = vmatprep.subr.mxu0 0.0
    %1082 = vmatpush1.msra.mxu0 0.0
    %1083 = vmatprep.subr.mxu0 0.0
    %1084 = vmatpush1.msra.mxu0 0.0
    %1085 = vmatprep.subr.mxu0 0.0
    %1086 = vmatpush1.msra.mxu0 0.0
    %1087 = vmatprep.mubr.f32.mxu0 0.0
    %1088 = vmatmul.mubr.f32.gmra.mrb[0].mxu0 %v947
    %v1089 = vpop.f32.mrb[0].mxu0
    %v1090 = vadd.f32 0.0, %v1089
    %v1091 = vpop.f32.mrb[0].mxu0
    %v1092 = vadd.f32 0.0, %v1091
    %1093 = vdwg.mxu0
    %1094 = vmatprep.subr.mxu0 %v962
    %1095 = vmatpush1.msra.mxu0 %v961
    %1096 = vmatprep.subr.mxu0 %v966
    %1097 = vmatpush1.msra.mxu0 %v965
    %1098 = vmatprep.subr.mxu0 %v970
    %1099 = vmatpush1.msra.mxu0 %v969
    %1100 = vmatprep.subr.mxu0 %v974
    %1101 = vmatpush1.msra.mxu0 %v973
    %1102 = vmatprep.subr.mxu0 %v978
    %1103 = vmatpush1.msra.mxu0 %v977
    %1104 = vmatprep.subr.mxu0 %v982
    %1105 = vmatpush1.msra.mxu0 %v981
    %1106 = vmatprep.subr.mxu0 %v986
    %1107 = vmatpush1.msra.mxu0 %v985
    %1108 = vmatprep.subr.mxu0 %v990
    %1109 = vmatpush1.msra.mxu0 %v989
    %1110 = vmatprep.subr.mxu0 %v994
    %1111 = vmatpush1.msra.mxu0 %v993
    %1112 = vmatprep.subr.mxu0 %v998
    %1113 = vmatpush1.msra.mxu0 %v997
    %1114 = vmatprep.subr.mxu0 %v1002
    %1115 = vmatpush1.msra.mxu0 %v1001
    %1116 = vmatprep.subr.mxu0 %v1006
    %1117 = vmatpush1.msra.mxu0 %v1005
    %1118 = vmatprep.subr.mxu0 %v1010
    %1119 = vmatpush1.msra.mxu0 %v1009
    %1120 = vmatprep.subr.mxu0 %v1014
    %1121 = vmatpush1.msra.mxu0 %v1013
    %1122 = vmatprep.subr.mxu0 %v1018
    %1123 = vmatpush1.msra.mxu0 %v1017
    %1124 = vmatprep.subr.mxu0 %v1022
    %1125 = vmatpush1.msra.mxu0 %v1021
    %1126 = vmatprep.subr.mxu0 0.0
    %1127 = vmatpush1.msra.mxu0 0.0
    %1128 = vmatprep.subr.mxu0 0.0
    %1129 = vmatpush1.msra.mxu0 0.0
    %1130 = vmatprep.subr.mxu0 0.0
    %1131 = vmatpush1.msra.mxu0 0.0
    %1132 = vmatprep.subr.mxu0 0.0
    %1133 = vmatpush1.msra.mxu0 0.0
    %1134 = vmatprep.subr.mxu0 0.0
    %1135 = vmatpush1.msra.mxu0 0.0
    %1136 = vmatprep.subr.mxu0 0.0
    %1137 = vmatpush1.msra.mxu0 0.0
    %1138 = vmatprep.subr.mxu0 0.0
    %1139 = vmatpush1.msra.mxu0 0.0
    %1140 = vmatprep.subr.mxu0 0.0
    %1141 = vmatpush1.msra.mxu0 0.0
    %1142 = vmatprep.subr.mxu0 0.0
    %1143 = vmatpush1.msra.mxu0 0.0
    %1144 = vmatprep.subr.mxu0 0.0
    %1145 = vmatpush1.msra.mxu0 0.0
    %1146 = vmatprep.subr.mxu0 0.0
    %1147 = vmatpush1.msra.mxu0 0.0
    %1148 = vmatprep.subr.mxu0 0.0
    %1149 = vmatpush1.msra.mxu0 0.0
    %1150 = vmatprep.subr.mxu0 0.0
    %1151 = vmatpush1.msra.mxu0 0.0
    %1152 = vmatprep.subr.mxu0 0.0
    %1153 = vmatpush1.msra.mxu0 0.0
    %1154 = vmatprep.subr.mxu0 0.0
    %1155 = vmatpush1.msra.mxu0 0.0
    %1156 = vmatprep.subr.mxu0 0.0
    %1157 = vmatpush1.msra.mxu0 0.0
    %1158 = vmatprep.mubr.f32.mxu0 0.0
    %1159 = vmatmul.mubr.f32.gmra.mrb[0].mxu0 %v947
    %v1160 = vpop.f32.mrb[0].mxu0
    %v1161 = vadd.f32 0.0, %v1160
    %v1162 = vpop.f32.mrb[0].mxu0
    %v1163 = vadd.f32 0.0, %v1162
    %1164 = vdwg.mxu0
    %v1165 = vadd.f32 %v955, %v1090
    %v1166 = vadd.f32 %v956, %v1092
    %v1167 = vadd.f32 %v957, %v1161
    %v1168 = vadd.f32 %v958, %v1163
    %v1169 = vxor.u32 %v1165, 2147483648
    %v1170 = vmul.f32 %v1169, 1.442695
    %v1171 = vpow.pop %v1170
    %v1172 = vadd.f32 %v1171, 1.0
    %v1173 = vrcp.pop %v1172
    %v1174 = vmul.f32 1.0, %v1173
    %v1175 = vxor.u32 %v1166, 2147483648
    %v1176 = vmul.f32 %v1175, 1.442695
    %v1177 = vpow.pop %v1176
    %v1178 = vadd.f32 %v1177, 1.0
    %v1179 = vrcp.pop %v1178
    %v1180 = vmul.f32 1.0, %v1179
    %v1181 = vtanh.pop %v1167
    %v1182 = vxor.u32 %v1168, 2147483648
    %v1183 = vmul.f32 %v1182, 1.442695
    %v1184 = vpow.pop %v1183
    %v1185 = vadd.f32 %v1184, 1.0
    %v1186 = vrcp.pop %v1185
    %v1187 = vmul.f32 1.0, %v1186
    %v1188 = vmul.f32 %v1180, %v945
    %v1189 = vmul.f32 %v1174, %v1181
    %v1190 = vadd.f32 %v1188, %v1189
    %v1191 = vtanh.pop %v1190
    %v1192 = vmul.f32 %v1187, %v1191
    %s1193 = scalar_lea.vmem [#allocation3], 16
    %1194 = vst [vmem:[%s1193] sm:$0xff] %v1192
    %s1195 = scalar_lea.vmem [#allocation4], 40
    %1196 = vst [vmem:[%s1195] sm:$0xff] %v1192
    %s1197 = smul.u32 3, 4
    %s1198 = smul.addr %s1197, 8
    %s1199 = scalar_lea.vmem [#allocation2], %s1198
    %v1200 = vld [vmem:[%s1199] sm:$0xff]
    %v1201 = vld [vmem:[%s1199 + $0x8] sm:$0xff]
    %v1202 = vld [vmem:[%s1199 + $0x10] sm:$0xff]
    %v1203 = vld [vmem:[%s1199 + $0x18] sm:$0xff]
    %v1204 = vld [vmem:[#allocation8] sm:$0xff]
    %v1205 = vld [vmem:[#allocation8 + $0x8] sm:$0xff]
    %v1206 = vld [vmem:[#allocation8 + $0x10] sm:$0xff]
    %v1207 = vld [vmem:[#allocation8 + $0x18] sm:$0xff]
    %v1208 = vld [vmem:[#allocation8 + $0x20] sm:$0xff]
    %v1209 = vld [vmem:[#allocation8 + $0x28] sm:$0xff]
    %v1210 = vld [vmem:[#allocation8 + $0x30] sm:$0xff]
    %v1211 = vld [vmem:[#allocation8 + $0x38] sm:$0xff]
    %v1212 = vld [vmem:[#allocation8 + $0x40] sm:$0xff]
    %v1213 = vld [vmem:[#allocation8 + $0x48] sm:$0xff]
    %v1214 = vld [vmem:[#allocation8 + $0x50] sm:$0xff]
    %v1215 = vld [vmem:[#allocation8 + $0x58] sm:$0xff]
    %v1216 = vld [vmem:[#allocation8 + $0x60] sm:$0xff]
    %v1217 = vld [vmem:[#allocation8 + $0x68] sm:$0xff]
    %v1218 = vld [vmem:[#allocation8 + $0x70] sm:$0xff]
    %v1219 = vld [vmem:[#allocation8 + $0x78] sm:$0xff]
    %v1220 = vld [vmem:[#allocation8 + $0x80] sm:$0xff]
    %v1221 = vld [vmem:[#allocation8 + $0x88] sm:$0xff]
    %v1222 = vld [vmem:[#allocation8 + $0x90] sm:$0xff]
    %v1223 = vld [vmem:[#allocation8 + $0x98] sm:$0xff]
    %v1224 = vld [vmem:[#allocation8 + $0xa0] sm:$0xff]
    %v1225 = vld [vmem:[#allocation8 + $0xa8] sm:$0xff]
    %v1226 = vld [vmem:[#allocation8 + $0xb0] sm:$0xff]
    %v1227 = vld [vmem:[#allocation8 + $0xb8] sm:$0xff]
    %v1228 = vld [vmem:[#allocation8 + $0xc0] sm:$0xff]
    %v1229 = vld [vmem:[#allocation8 + $0xc8] sm:$0xff]
    %v1230 = vld [vmem:[#allocation8 + $0xd0] sm:$0xff]
    %v1231 = vld [vmem:[#allocation8 + $0xd8] sm:$0xff]
    %v1232 = vld [vmem:[#allocation8 + $0xe0] sm:$0xff]
    %v1233 = vld [vmem:[#allocation8 + $0xe8] sm:$0xff]
    %v1234 = vld [vmem:[#allocation8 + $0xf0] sm:$0xff]
    %v1235 = vld [vmem:[#allocation8 + $0xf8] sm:$0xff]
    %v1236 = vld [vmem:[#allocation8 + $0x100] sm:$0xff]
    %v1237 = vld [vmem:[#allocation8 + $0x108] sm:$0xff]
    %v1238 = vld [vmem:[#allocation8 + $0x110] sm:$0xff]
    %v1239 = vld [vmem:[#allocation8 + $0x118] sm:$0xff]
    %v1240 = vld [vmem:[#allocation8 + $0x120] sm:$0xff]
    %v1241 = vld [vmem:[#allocation8 + $0x128] sm:$0xff]
    %v1242 = vld [vmem:[#allocation8 + $0x130] sm:$0xff]
    %v1243 = vld [vmem:[#allocation8 + $0x138] sm:$0xff]
    %v1244 = vld [vmem:[#allocation8 + $0x140] sm:$0xff]
    %v1245 = vld [vmem:[#allocation8 + $0x148] sm:$0xff]
    %v1246 = vld [vmem:[#allocation8 + $0x150] sm:$0xff]
    %v1247 = vld [vmem:[#allocation8 + $0x158] sm:$0xff]
    %v1248 = vld [vmem:[#allocation8 + $0x160] sm:$0xff]
    %v1249 = vld [vmem:[#allocation8 + $0x168] sm:$0xff]
    %v1250 = vld [vmem:[#allocation8 + $0x170] sm:$0xff]
    %v1251 = vld [vmem:[#allocation8 + $0x178] sm:$0xff]
    %v1252 = vld [vmem:[#allocation8 + $0x180] sm:$0xff]
    %v1253 = vld [vmem:[#allocation8 + $0x188] sm:$0xff]
    %v1254 = vld [vmem:[#allocation8 + $0x190] sm:$0xff]
    %v1255 = vld [vmem:[#allocation8 + $0x198] sm:$0xff]
    %v1256 = vld [vmem:[#allocation8 + $0x1a0] sm:$0xff]
    %v1257 = vld [vmem:[#allocation8 + $0x1a8] sm:$0xff]
    %v1258 = vld [vmem:[#allocation8 + $0x1b0] sm:$0xff]
    %v1259 = vld [vmem:[#allocation8 + $0x1b8] sm:$0xff]
    %v1260 = vld [vmem:[#allocation8 + $0x1c0] sm:$0xff]
    %v1261 = vld [vmem:[#allocation8 + $0x1c8] sm:$0xff]
    %v1262 = vld [vmem:[#allocation8 + $0x1d0] sm:$0xff]
    %v1263 = vld [vmem:[#allocation8 + $0x1d8] sm:$0xff]
    %v1264 = vld [vmem:[#allocation8 + $0x1e0] sm:$0xff]
    %v1265 = vld [vmem:[#allocation8 + $0x1e8] sm:$0xff]
    %v1266 = vld [vmem:[#allocation8 + $0x1f0] sm:$0xff]
    %v1267 = vld [vmem:[#allocation8 + $0x1f8] sm:$0xff]
    %1268 = vmatprep.subr.mxu0 %v1205
    %1269 = vmatpush1.msra.mxu0 %v1204
    %1270 = vmatprep.subr.mxu0 %v1209
    %1271 = vmatpush1.msra.mxu0 %v1208
    %1272 = vmatprep.subr.mxu0 %v1213
    %1273 = vmatpush1.msra.mxu0 %v1212
    %1274 = vmatprep.subr.mxu0 %v1217
    %1275 = vmatpush1.msra.mxu0 %v1216
    %1276 = vmatprep.subr.mxu0 %v1221
    %1277 = vmatpush1.msra.mxu0 %v1220
    %1278 = vmatprep.subr.mxu0 %v1225
    %1279 = vmatpush1.msra.mxu0 %v1224
    %1280 = vmatprep.subr.mxu0 %v1229
    %1281 = vmatpush1.msra.mxu0 %v1228
    %1282 = vmatprep.subr.mxu0 %v1233
    %1283 = vmatpush1.msra.mxu0 %v1232
    %1284 = vmatprep.subr.mxu0 %v1237
    %1285 = vmatpush1.msra.mxu0 %v1236
    %1286 = vmatprep.subr.mxu0 %v1241
    %1287 = vmatpush1.msra.mxu0 %v1240
    %1288 = vmatprep.subr.mxu0 %v1245
    %1289 = vmatpush1.msra.mxu0 %v1244
    %1290 = vmatprep.subr.mxu0 %v1249
    %1291 = vmatpush1.msra.mxu0 %v1248
    %1292 = vmatprep.subr.mxu0 %v1253
    %1293 = vmatpush1.msra.mxu0 %v1252
    %1294 = vmatprep.subr.mxu0 %v1257
    %1295 = vmatpush1.msra.mxu0 %v1256
    %1296 = vmatprep.subr.mxu0 %v1261
    %1297 = vmatpush1.msra.mxu0 %v1260
    %1298 = vmatprep.subr.mxu0 %v1265
    %1299 = vmatpush1.msra.mxu0 %v1264
    %1300 = vmatprep.subr.mxu0 0.0
    %1301 = vmatpush1.msra.mxu0 0.0
    %1302 = vmatprep.subr.mxu0 0.0
    %1303 = vmatpush1.msra.mxu0 0.0
    %1304 = vmatprep.subr.mxu0 0.0
    %1305 = vmatpush1.msra.mxu0 0.0
    %1306 = vmatprep.subr.mxu0 0.0
    %1307 = vmatpush1.msra.mxu0 0.0
    %1308 = vmatprep.subr.mxu0 0.0
    %1309 = vmatpush1.msra.mxu0 0.0
    %1310 = vmatprep.subr.mxu0 0.0
    %1311 = vmatpush1.msra.mxu0 0.0
    %1312 = vmatprep.subr.mxu0 0.0
    %1313 = vmatpush1.msra.mxu0 0.0
    %1314 = vmatprep.subr.mxu0 0.0
    %1315 = vmatpush1.msra.mxu0 0.0
    %1316 = vmatprep.subr.mxu0 0.0
    %1317 = vmatpush1.msra.mxu0 0.0
    %1318 = vmatprep.subr.mxu0 0.0
    %1319 = vmatpush1.msra.mxu0 0.0
    %1320 = vmatprep.subr.mxu0 0.0
    %1321 = vmatpush1.msra.mxu0 0.0
    %1322 = vmatprep.subr.mxu0 0.0
    %1323 = vmatpush1.msra.mxu0 0.0
    %1324 = vmatprep.subr.mxu0 0.0
    %1325 = vmatpush1.msra.mxu0 0.0
    %1326 = vmatprep.subr.mxu0 0.0
    %1327 = vmatpush1.msra.mxu0 0.0
    %1328 = vmatprep.subr.mxu0 0.0
    %1329 = vmatpush1.msra.mxu0 0.0
    %1330 = vmatprep.subr.mxu0 0.0
    %1331 = vmatpush1.msra.mxu0 0.0
    %1332 = vmatprep.mubr.f32.mxu0 0.0
    %1333 = vmatmul.mubr.f32.gmra.mrb[0].mxu0 %v1192
    %v1334 = vpop.f32.mrb[0].mxu0
    %v1335 = vadd.f32 0.0, %v1334
    %v1336 = vpop.f32.mrb[0].mxu0
    %v1337 = vadd.f32 0.0, %v1336
    %1338 = vdwg.mxu0
    %1339 = vmatprep.subr.mxu0 %v1207
    %1340 = vmatpush1.msra.mxu0 %v1206
    %1341 = vmatprep.subr.mxu0 %v1211
    %1342 = vmatpush1.msra.mxu0 %v1210
    %1343 = vmatprep.subr.mxu0 %v1215
    %1344 = vmatpush1.msra.mxu0 %v1214
    %1345 = vmatprep.subr.mxu0 %v1219
    %1346 = vmatpush1.msra.mxu0 %v1218
    %1347 = vmatprep.subr.mxu0 %v1223
    %1348 = vmatpush1.msra.mxu0 %v1222
    %1349 = vmatprep.subr.mxu0 %v1227
    %1350 = vmatpush1.msra.mxu0 %v1226
    %1351 = vmatprep.subr.mxu0 %v1231
    %1352 = vmatpush1.msra.mxu0 %v1230
    %1353 = vmatprep.subr.mxu0 %v1235
    %1354 = vmatpush1.msra.mxu0 %v1234
    %1355 = vmatprep.subr.mxu0 %v1239
    %1356 = vmatpush1.msra.mxu0 %v1238
    %1357 = vmatprep.subr.mxu0 %v1243
    %1358 = vmatpush1.msra.mxu0 %v1242
    %1359 = vmatprep.subr.mxu0 %v1247
    %1360 = vmatpush1.msra.mxu0 %v1246
    %1361 = vmatprep.subr.mxu0 %v1251
    %1362 = vmatpush1.msra.mxu0 %v1250
    %1363 = vmatprep.subr.mxu0 %v1255
    %1364 = vmatpush1.msra.mxu0 %v1254
    %1365 = vmatprep.subr.mxu0 %v1259
    %1366 = vmatpush1.msra.mxu0 %v1258
    %1367 = vmatprep.subr.mxu0 %v1263
    %1368 = vmatpush1.msra.mxu0 %v1262
    %1369 = vmatprep.subr.mxu0 %v1267
    %1370 = vmatpush1.msra.mxu0 %v1266
    %1371 = vmatprep.subr.mxu0 0.0
    %1372 = vmatpush1.msra.mxu0 0.0
    %1373 = vmatprep.subr.mxu0 0.0
    %1374 = vmatpush1.msra.mxu0 0.0
    %1375 = vmatprep.subr.mxu0 0.0
    %1376 = vmatpush1.msra.mxu0 0.0
    %1377 = vmatprep.subr.mxu0 0.0
    %1378 = vmatpush1.msra.mxu0 0.0
    %1379 = vmatprep.subr.mxu0 0.0
    %1380 = vmatpush1.msra.mxu0 0.0
    %1381 = vmatprep.subr.mxu0 0.0
    %1382 = vmatpush1.msra.mxu0 0.0
    %1383 = vmatprep.subr.mxu0 0.0
    %1384 = vmatpush1.msra.mxu0 0.0
    %1385 = vmatprep.subr.mxu0 0.0
    %1386 = vmatpush1.msra.mxu0 0.0
    %1387 = vmatprep.subr.mxu0 0.0
    %1388 = vmatpush1.msra.mxu0 0.0
    %1389 = vmatprep.subr.mxu0 0.0
    %1390 = vmatpush1.msra.mxu0 0.0
    %1391 = vmatprep.subr.mxu0 0.0
    %1392 = vmatpush1.msra.mxu0 0.0
    %1393 = vmatprep.subr.mxu0 0.0
    %1394 = vmatpush1.msra.mxu0 0.0
    %1395 = vmatprep.subr.mxu0 0.0
    %1396 = vmatpush1.msra.mxu0 0.0
    %1397 = vmatprep.subr.mxu0 0.0
    %1398 = vmatpush1.msra.mxu0 0.0
    %1399 = vmatprep.subr.mxu0 0.0
    %1400 = vmatpush1.msra.mxu0 0.0
    %1401 = vmatprep.subr.mxu0 0.0
    %1402 = vmatpush1.msra.mxu0 0.0
    %1403 = vmatprep.mubr.f32.mxu0 0.0
    %1404 = vmatmul.mubr.f32.gmra.mrb[0].mxu0 %v1192
    %v1405 = vpop.f32.mrb[0].mxu0
    %v1406 = vadd.f32 0.0, %v1405
    %v1407 = vpop.f32.mrb[0].mxu0
    %v1408 = vadd.f32 0.0, %v1407
    %1409 = vdwg.mxu0
    %v1410 = vadd.f32 %v1200, %v1335
    %v1411 = vadd.f32 %v1201, %v1337
    %v1412 = vadd.f32 %v1202, %v1406
    %v1413 = vadd.f32 %v1203, %v1408
    %v1414 = vxor.u32 %v1410, 2147483648
    %v1415 = vmul.f32 %v1414, 1.442695
    %v1416 = vpow.pop %v1415
    %v1417 = vadd.f32 %v1416, 1.0
    %v1418 = vrcp.pop %v1417
    %v1419 = vmul.f32 1.0, %v1418
    %v1420 = vxor.u32 %v1411, 2147483648
    %v1421 = vmul.f32 %v1420, 1.442695
    %v1422 = vpow.pop %v1421
    %v1423 = vadd.f32 %v1422, 1.0
    %v1424 = vrcp.pop %v1423
    %v1425 = vmul.f32 1.0, %v1424
    %v1426 = vtanh.pop %v1412
    %v1427 = vxor.u32 %v1413, 2147483648
    %v1428 = vmul.f32 %v1427, 1.442695
    %v1429 = vpow.pop %v1428
    %v1430 = vadd.f32 %v1429, 1.0
    %v1431 = vrcp.pop %v1430
    %v1432 = vmul.f32 1.0, %v1431
    %v1433 = vmul.f32 %v1425, %v1190
    %v1434 = vmul.f32 %v1419, %v1426
    %v1435 = vadd.f32 %v1433, %v1434
    %v1436 = vtanh.pop %v1435
    %v1437 = vmul.f32 %v1432, %v1436
    %s1438 = scalar_lea.vmem [#allocation3], 24
    %1439 = vst [vmem:[%s1438] sm:$0xff] %v1437
    %s1440 = scalar_lea.vmem [#allocation4], 32
    %1441 = vst [vmem:[%s1440] sm:$0xff] %v1437
    %s1442 = smul.u32 4, 4
    %s1443 = smul.addr %s1442, 8
    %s1444 = scalar_lea.vmem [#allocation2], %s1443
    %v1445 = vld [vmem:[%s1444] sm:$0xff]
    %v1446 = vld [vmem:[%s1444 + $0x8] sm:$0xff]
    %v1447 = vld [vmem:[%s1444 + $0x10] sm:$0xff]
    %v1448 = vld [vmem:[%s1444 + $0x18] sm:$0xff]
    %v1449 = vld [vmem:[#allocation8] sm:$0xff]
    %v1450 = vld [vmem:[#allocation8 + $0x8] sm:$0xff]
    %v1451 = vld [vmem:[#allocation8 + $0x10] sm:$0xff]
    %v1452 = vld [vmem:[#allocation8 + $0x18] sm:$0xff]
    %v1453 = vld [vmem:[#allocation8 + $0x20] sm:$0xff]
    %v1454 = vld [vmem:[#allocation8 + $0x28] sm:$0xff]
    %v1455 = vld [vmem:[#allocation8 + $0x30] sm:$0xff]
    %v1456 = vld [vmem:[#allocation8 + $0x38] sm:$0xff]
    %v1457 = vld [vmem:[#allocation8 + $0x40] sm:$0xff]
    %v1458 = vld [vmem:[#allocation8 + $0x48] sm:$0xff]
    %v1459 = vld [vmem:[#allocation8 + $0x50] sm:$0xff]
    %v1460 = vld [vmem:[#allocation8 + $0x58] sm:$0xff]
    %v1461 = vld [vmem:[#allocation8 + $0x60] sm:$0xff]
    %v1462 = vld [vmem:[#allocation8 + $0x68] sm:$0xff]
    %v1463 = vld [vmem:[#allocation8 + $0x70] sm:$0xff]
    %v1464 = vld [vmem:[#allocation8 + $0x78] sm:$0xff]
    %v1465 = vld [vmem:[#allocation8 + $0x80] sm:$0xff]
    %v1466 = vld [vmem:[#allocation8 + $0x88] sm:$0xff]
    %v1467 = vld [vmem:[#allocation8 + $0x90] sm:$0xff]
    %v1468 = vld [vmem:[#allocation8 + $0x98] sm:$0xff]
    %v1469 = vld [vmem:[#allocation8 + $0xa0] sm:$0xff]
    %v1470 = vld [vmem:[#allocation8 + $0xa8] sm:$0xff]
    %v1471 = vld [vmem:[#allocation8 + $0xb0] sm:$0xff]
    %v1472 = vld [vmem:[#allocation8 + $0xb8] sm:$0xff]
    %v1473 = vld [vmem:[#allocation8 + $0xc0] sm:$0xff]
    %v1474 = vld [vmem:[#allocation8 + $0xc8] sm:$0xff]
    %v1475 = vld [vmem:[#allocation8 + $0xd0] sm:$0xff]
    %v1476 = vld [vmem:[#allocation8 + $0xd8] sm:$0xff]
    %v1477 = vld [vmem:[#allocation8 + $0xe0] sm:$0xff]
    %v1478 = vld [vmem:[#allocation8 + $0xe8] sm:$0xff]
    %v1479 = vld [vmem:[#allocation8 + $0xf0] sm:$0xff]
    %v1480 = vld [vmem:[#allocation8 + $0xf8] sm:$0xff]
    %v1481 = vld [vmem:[#allocation8 + $0x100] sm:$0xff]
    %v1482 = vld [vmem:[#allocation8 + $0x108] sm:$0xff]
    %v1483 = vld [vmem:[#allocation8 + $0x110] sm:$0xff]
    %v1484 = vld [vmem:[#allocation8 + $0x118] sm:$0xff]
    %v1485 = vld [vmem:[#allocation8 + $0x120] sm:$0xff]
    %v1486 = vld [vmem:[#allocation8 + $0x128] sm:$0xff]
    %v1487 = vld [vmem:[#allocation8 + $0x130] sm:$0xff]
    %v1488 = vld [vmem:[#allocation8 + $0x138] sm:$0xff]
    %v1489 = vld [vmem:[#allocation8 + $0x140] sm:$0xff]
    %v1490 = vld [vmem:[#allocation8 + $0x148] sm:$0xff]
    %v1491 = vld [vmem:[#allocation8 + $0x150] sm:$0xff]
    %v1492 = vld [vmem:[#allocation8 + $0x158] sm:$0xff]
    %v1493 = vld [vmem:[#allocation8 + $0x160] sm:$0xff]
    %v1494 = vld [vmem:[#allocation8 + $0x168] sm:$0xff]
    %v1495 = vld [vmem:[#allocation8 + $0x170] sm:$0xff]
    %v1496 = vld [vmem:[#allocation8 + $0x178] sm:$0xff]
    %v1497 = vld [vmem:[#allocation8 + $0x180] sm:$0xff]
    %v1498 = vld [vmem:[#allocation8 + $0x188] sm:$0xff]
    %v1499 = vld [vmem:[#allocation8 + $0x190] sm:$0xff]
    %v1500 = vld [vmem:[#allocation8 + $0x198] sm:$0xff]
    %v1501 = vld [vmem:[#allocation8 + $0x1a0] sm:$0xff]
    %v1502 = vld [vmem:[#allocation8 + $0x1a8] sm:$0xff]
    %v1503 = vld [vmem:[#allocation8 + $0x1b0] sm:$0xff]
    %v1504 = vld [vmem:[#allocation8 + $0x1b8] sm:$0xff]
    %v1505 = vld [vmem:[#allocation8 + $0x1c0] sm:$0xff]
    %v1506 = vld [vmem:[#allocation8 + $0x1c8] sm:$0xff]
    %v1507 = vld [vmem:[#allocation8 + $0x1d0] sm:$0xff]
    %v1508 = vld [vmem:[#allocation8 + $0x1d8] sm:$0xff]
    %v1509 = vld [vmem:[#allocation8 + $0x1e0] sm:$0xff]
    %v1510 = vld [vmem:[#allocation8 + $0x1e8] sm:$0xff]
    %v1511 = vld [vmem:[#allocation8 + $0x1f0] sm:$0xff]
    %v1512 = vld [vmem:[#allocation8 + $0x1f8] sm:$0xff]
    %1513 = vmatprep.subr.mxu0 %v1450
    %1514 = vmatpush1.msra.mxu0 %v1449
    %1515 = vmatprep.subr.mxu0 %v1454
    %1516 = vmatpush1.msra.mxu0 %v1453
    %1517 = vmatprep.subr.mxu0 %v1458
    %1518 = vmatpush1.msra.mxu0 %v1457
    %1519 = vmatprep.subr.mxu0 %v1462
    %1520 = vmatpush1.msra.mxu0 %v1461
    %1521 = vmatprep.subr.mxu0 %v1466
    %1522 = vmatpush1.msra.mxu0 %v1465
    %1523 = vmatprep.subr.mxu0 %v1470
    %1524 = vmatpush1.msra.mxu0 %v1469
    %1525 = vmatprep.subr.mxu0 %v1474
    %1526 = vmatpush1.msra.mxu0 %v1473
    %1527 = vmatprep.subr.mxu0 %v1478
    %1528 = vmatpush1.msra.mxu0 %v1477
    %1529 = vmatprep.subr.mxu0 %v1482
    %1530 = vmatpush1.msra.mxu0 %v1481
    %1531 = vmatprep.subr.mxu0 %v1486
    %1532 = vmatpush1.msra.mxu0 %v1485
    %1533 = vmatprep.subr.mxu0 %v1490
    %1534 = vmatpush1.msra.mxu0 %v1489
    %1535 = vmatprep.subr.mxu0 %v1494
    %1536 = vmatpush1.msra.mxu0 %v1493
    %1537 = vmatprep.subr.mxu0 %v1498
    %1538 = vmatpush1.msra.mxu0 %v1497
    %1539 = vmatprep.subr.mxu0 %v1502
    %1540 = vmatpush1.msra.mxu0 %v1501
    %1541 = vmatprep.subr.mxu0 %v1506
    %1542 = vmatpush1.msra.mxu0 %v1505
    %1543 = vmatprep.subr.mxu0 %v1510
    %1544 = vmatpush1.msra.mxu0 %v1509
    %1545 = vmatprep.subr.mxu0 0.0
    %1546 = vmatpush1.msra.mxu0 0.0
    %1547 = vmatprep.subr.mxu0 0.0
    %1548 = vmatpush1.msra.mxu0 0.0
    %1549 = vmatprep.subr.mxu0 0.0
    %1550 = vmatpush1.msra.mxu0 0.0
    %1551 = vmatprep.subr.mxu0 0.0
    %1552 = vmatpush1.msra.mxu0 0.0
    %1553 = vmatprep.subr.mxu0 0.0
    %1554 = vmatpush1.msra.mxu0 0.0
    %1555 = vmatprep.subr.mxu0 0.0
    %1556 = vmatpush1.msra.mxu0 0.0
    %1557 = vmatprep.subr.mxu0 0.0
    %1558 = vmatpush1.msra.mxu0 0.0
    %1559 = vmatprep.subr.mxu0 0.0
    %1560 = vmatpush1.msra.mxu0 0.0
    %1561 = vmatprep.subr.mxu0 0.0
    %1562 = vmatpush1.msra.mxu0 0.0
    %1563 = vmatprep.subr.mxu0 0.0
    %1564 = vmatpush1.msra.mxu0 0.0
    %1565 = vmatprep.subr.mxu0 0.0
    %1566 = vmatpush1.msra.mxu0 0.0
    %1567 = vmatprep.subr.mxu0 0.0
    %1568 = vmatpush1.msra.mxu0 0.0
    %1569 = vmatprep.subr.mxu0 0.0
    %1570 = vmatpush1.msra.mxu0 0.0
    %1571 = vmatprep.subr.mxu0 0.0
    %1572 = vmatpush1.msra.mxu0 0.0
    %1573 = vmatprep.subr.mxu0 0.0
    %1574 = vmatpush1.msra.mxu0 0.0
    %1575 = vmatprep.subr.mxu0 0.0
    %1576 = vmatpush1.msra.mxu0 0.0
    %1577 = vmatprep.mubr.f32.mxu0 0.0
    %1578 = vmatmul.mubr.f32.gmra.mrb[0].mxu0 %v1437
    %v1579 = vpop.f32.mrb[0].mxu0
    %v1580 = vadd.f32 0.0, %v1579
    %v1581 = vpop.f32.mrb[0].mxu0
    %v1582 = vadd.f32 0.0, %v1581
    %1583 = vdwg.mxu0
    %1584 = vmatprep.subr.mxu0 %v1452
    %1585 = vmatpush1.msra.mxu0 %v1451
    %1586 = vmatprep.subr.mxu0 %v1456
    %1587 = vmatpush1.msra.mxu0 %v1455
    %1588 = vmatprep.subr.mxu0 %v1460
    %1589 = vmatpush1.msra.mxu0 %v1459
    %1590 = vmatprep.subr.mxu0 %v1464
    %1591 = vmatpush1.msra.mxu0 %v1463
    %1592 = vmatprep.subr.mxu0 %v1468
    %1593 = vmatpush1.msra.mxu0 %v1467
    %1594 = vmatprep.subr.mxu0 %v1472
    %1595 = vmatpush1.msra.mxu0 %v1471
    %1596 = vmatprep.subr.mxu0 %v1476
    %1597 = vmatpush1.msra.mxu0 %v1475
    %1598 = vmatprep.subr.mxu0 %v1480
    %1599 = vmatpush1.msra.mxu0 %v1479
    %1600 = vmatprep.subr.mxu0 %v1484
    %1601 = vmatpush1.msra.mxu0 %v1483
    %1602 = vmatprep.subr.mxu0 %v1488
    %1603 = vmatpush1.msra.mxu0 %v1487
    %1604 = vmatprep.subr.mxu0 %v1492
    %1605 = vmatpush1.msra.mxu0 %v1491
    %1606 = vmatprep.subr.mxu0 %v1496
    %1607 = vmatpush1.msra.mxu0 %v1495
    %1608 = vmatprep.subr.mxu0 %v1500
    %1609 = vmatpush1.msra.mxu0 %v1499
    %1610 = vmatprep.subr.mxu0 %v1504
    %1611 = vmatpush1.msra.mxu0 %v1503
    %1612 = vmatprep.subr.mxu0 %v1508
    %1613 = vmatpush1.msra.mxu0 %v1507
    %1614 = vmatprep.subr.mxu0 %v1512
    %1615 = vmatpush1.msra.mxu0 %v1511
    %1616 = vmatprep.subr.mxu0 0.0
    %1617 = vmatpush1.msra.mxu0 0.0
    %1618 = vmatprep.subr.mxu0 0.0
    %1619 = vmatpush1.msra.mxu0 0.0
    %1620 = vmatprep.subr.mxu0 0.0
    %1621 = vmatpush1.msra.mxu0 0.0
    %1622 = vmatprep.subr.mxu0 0.0
    %1623 = vmatpush1.msra.mxu0 0.0
    %1624 = vmatprep.subr.mxu0 0.0
    %1625 = vmatpush1.msra.mxu0 0.0
    %1626 = vmatprep.subr.mxu0 0.0
    %1627 = vmatpush1.msra.mxu0 0.0
    %1628 = vmatprep.subr.mxu0 0.0
    %1629 = vmatpush1.msra.mxu0 0.0
    %1630 = vmatprep.subr.mxu0 0.0
    %1631 = vmatpush1.msra.mxu0 0.0
    %1632 = vmatprep.subr.mxu0 0.0
    %1633 = vmatpush1.msra.mxu0 0.0
    %1634 = vmatprep.subr.mxu0 0.0
    %1635 = vmatpush1.msra.mxu0 0.0
    %1636 = vmatprep.subr.mxu0 0.0
    %1637 = vmatpush1.msra.mxu0 0.0
    %1638 = vmatprep.subr.mxu0 0.0
    %1639 = vmatpush1.msra.mxu0 0.0
    %1640 = vmatprep.subr.mxu0 0.0
    %1641 = vmatpush1.msra.mxu0 0.0
    %1642 = vmatprep.subr.mxu0 0.0
    %1643 = vmatpush1.msra.mxu0 0.0
    %1644 = vmatprep.subr.mxu0 0.0
    %1645 = vmatpush1.msra.mxu0 0.0
    %1646 = vmatprep.subr.mxu0 0.0
    %1647 = vmatpush1.msra.mxu0 0.0
    %1648 = vmatprep.mubr.f32.mxu0 0.0
    %1649 = vmatmul.mubr.f32.gmra.mrb[0].mxu0 %v1437
    %v1650 = vpop.f32.mrb[0].mxu0
    %v1651 = vadd.f32 0.0, %v1650
    %v1652 = vpop.f32.mrb[0].mxu0
    %v1653 = vadd.f32 0.0, %v1652
    %1654 = vdwg.mxu0
    %v1655 = vadd.f32 %v1445, %v1580
    %v1656 = vadd.f32 %v1446, %v1582
    %v1657 = vadd.f32 %v1447, %v1651
    %v1658 = vadd.f32 %v1448, %v1653
    %v1659 = vxor.u32 %v1655, 2147483648
    %v1660 = vmul.f32 %v1659, 1.442695
    %v1661 = vpow.pop %v1660
    %v1662 = vadd.f32 %v1661, 1.0
    %v1663 = vrcp.pop %v1662
    %v1664 = vmul.f32 1.0, %v1663
    %v1665 = vxor.u32 %v1656, 2147483648
    %v1666 = vmul.f32 %v1665, 1.442695
    %v1667 = vpow.pop %v1666
    %v1668 = vadd.f32 %v1667, 1.0
    %v1669 = vrcp.pop %v1668
    %v1670 = vmul.f32 1.0, %v1669
    %v1671 = vtanh.pop %v1657
    %v1672 = vxor.u32 %v1658, 2147483648
    %v1673 = vmul.f32 %v1672, 1.442695
    %v1674 = vpow.pop %v1673
    %v1675 = vadd.f32 %v1674, 1.0
    %v1676 = vrcp.pop %v1675
    %v1677 = vmul.f32 1.0, %v1676
    %v1678 = vmul.f32 %v1670, %v1435
    %v1679 = vmul.f32 %v1664, %v1671
    %v1680 = vadd.f32 %v1678, %v1679
    %v1681 = vtanh.pop %v1680
    %v1682 = vmul.f32 %v1677, %v1681
    %s1683 = scalar_lea.vmem [#allocation3], 32
    %1684 = vst [vmem:[%s1683] sm:$0xff] %v1682
    %s1685 = scalar_lea.vmem [#allocation4], 24
    %1686 = vst [vmem:[%s1685] sm:$0xff] %v1682
    %s1687 = smul.u32 5, 4
    %s1688 = smul.addr %s1687, 8
    %s1689 = scalar_lea.vmem [#allocation2], %s1688
    %v1690 = vld [vmem:[%s1689] sm:$0xff]
    %v1691 = vld [vmem:[%s1689 + $0x8] sm:$0xff]
    %v1692 = vld [vmem:[%s1689 + $0x10] sm:$0xff]
    %v1693 = vld [vmem:[%s1689 + $0x18] sm:$0xff]
    %v1694 = vld [vmem:[#allocation8] sm:$0xff]
    %v1695 = vld [vmem:[#allocation8 + $0x8] sm:$0xff]
    %v1696 = vld [vmem:[#allocation8 + $0x10] sm:$0xff]
    %v1697 = vld [vmem:[#allocation8 + $0x18] sm:$0xff]
    %v1698 = vld [vmem:[#allocation8 + $0x20] sm:$0xff]
    %v1699 = vld [vmem:[#allocation8 + $0x28] sm:$0xff]
    %v1700 = vld [vmem:[#allocation8 + $0x30] sm:$0xff]
    %v1701 = vld [vmem:[#allocation8 + $0x38] sm:$0xff]
    %v1702 = vld [vmem:[#allocation8 + $0x40] sm:$0xff]
    %v1703 = vld [vmem:[#allocation8 + $0x48] sm:$0xff]
    %v1704 = vld [vmem:[#allocation8 + $0x50] sm:$0xff]
    %v1705 = vld [vmem:[#allocation8 + $0x58] sm:$0xff]
    %v1706 = vld [vmem:[#allocation8 + $0x60] sm:$0xff]
    %v1707 = vld [vmem:[#allocation8 + $0x68] sm:$0xff]
    %v1708 = vld [vmem:[#allocation8 + $0x70] sm:$0xff]
    %v1709 = vld [vmem:[#allocation8 + $0x78] sm:$0xff]
    %v1710 = vld [vmem:[#allocation8 + $0x80] sm:$0xff]
    %v1711 = vld [vmem:[#allocation8 + $0x88] sm:$0xff]
    %v1712 = vld [vmem:[#allocation8 + $0x90] sm:$0xff]
    %v1713 = vld [vmem:[#allocation8 + $0x98] sm:$0xff]
    %v1714 = vld [vmem:[#allocation8 + $0xa0] sm:$0xff]
    %v1715 = vld [vmem:[#allocation8 + $0xa8] sm:$0xff]
    %v1716 = vld [vmem:[#allocation8 + $0xb0] sm:$0xff]
    %v1717 = vld [vmem:[#allocation8 + $0xb8] sm:$0xff]
    %v1718 = vld [vmem:[#allocation8 + $0xc0] sm:$0xff]
    %v1719 = vld [vmem:[#allocation8 + $0xc8] sm:$0xff]
    %v1720 = vld [vmem:[#allocation8 + $0xd0] sm:$0xff]
    %v1721 = vld [vmem:[#allocation8 + $0xd8] sm:$0xff]
    %v1722 = vld [vmem:[#allocation8 + $0xe0] sm:$0xff]
    %v1723 = vld [vmem:[#allocation8 + $0xe8] sm:$0xff]
    %v1724 = vld [vmem:[#allocation8 + $0xf0] sm:$0xff]
    %v1725 = vld [vmem:[#allocation8 + $0xf8] sm:$0xff]
    %v1726 = vld [vmem:[#allocation8 + $0x100] sm:$0xff]
    %v1727 = vld [vmem:[#allocation8 + $0x108] sm:$0xff]
    %v1728 = vld [vmem:[#allocation8 + $0x110] sm:$0xff]
    %v1729 = vld [vmem:[#allocation8 + $0x118] sm:$0xff]
    %v1730 = vld [vmem:[#allocation8 + $0x120] sm:$0xff]
    %v1731 = vld [vmem:[#allocation8 + $0x128] sm:$0xff]
    %v1732 = vld [vmem:[#allocation8 + $0x130] sm:$0xff]
    %v1733 = vld [vmem:[#allocation8 + $0x138] sm:$0xff]
    %v1734 = vld [vmem:[#allocation8 + $0x140] sm:$0xff]
    %v1735 = vld [vmem:[#allocation8 + $0x148] sm:$0xff]
    %v1736 = vld [vmem:[#allocation8 + $0x150] sm:$0xff]
    %v1737 = vld [vmem:[#allocation8 + $0x158] sm:$0xff]
    %v1738 = vld [vmem:[#allocation8 + $0x160] sm:$0xff]
    %v1739 = vld [vmem:[#allocation8 + $0x168] sm:$0xff]
    %v1740 = vld [vmem:[#allocation8 + $0x170] sm:$0xff]
    %v1741 = vld [vmem:[#allocation8 + $0x178] sm:$0xff]
    %v1742 = vld [vmem:[#allocation8 + $0x180] sm:$0xff]
    %v1743 = vld [vmem:[#allocation8 + $0x188] sm:$0xff]
    %v1744 = vld [vmem:[#allocation8 + $0x190] sm:$0xff]
    %v1745 = vld [vmem:[#allocation8 + $0x198] sm:$0xff]
    %v1746 = vld [vmem:[#allocation8 + $0x1a0] sm:$0xff]
    %v1747 = vld [vmem:[#allocation8 + $0x1a8] sm:$0xff]
    %v1748 = vld [vmem:[#allocation8 + $0x1b0] sm:$0xff]
    %v1749 = vld [vmem:[#allocation8 + $0x1b8] sm:$0xff]
    %v1750 = vld [vmem:[#allocation8 + $0x1c0] sm:$0xff]
    %v1751 = vld [vmem:[#allocation8 + $0x1c8] sm:$0xff]
    %v1752 = vld [vmem:[#allocation8 + $0x1d0] sm:$0xff]
    %v1753 = vld [vmem:[#allocation8 + $0x1d8] sm:$0xff]
    %v1754 = vld [vmem:[#allocation8 + $0x1e0] sm:$0xff]
    %v1755 = vld [vmem:[#allocation8 + $0x1e8] sm:$0xff]
    %v1756 = vld [vmem:[#allocation8 + $0x1f0] sm:$0xff]
    %v1757 = vld [vmem:[#allocation8 + $0x1f8] sm:$0xff]
    %1758 = vmatprep.subr.mxu0 %v1695
    %1759 = vmatpush1.msra.mxu0 %v1694
    %1760 = vmatprep.subr.mxu0 %v1699
    %1761 = vmatpush1.msra.mxu0 %v1698
    %1762 = vmatprep.subr.mxu0 %v1703
    %1763 = vmatpush1.msra.mxu0 %v1702
    %1764 = vmatprep.subr.mxu0 %v1707
    %1765 = vmatpush1.msra.mxu0 %v1706
    %1766 = vmatprep.subr.mxu0 %v1711
    %1767 = vmatpush1.msra.mxu0 %v1710
    %1768 = vmatprep.subr.mxu0 %v1715
    %1769 = vmatpush1.msra.mxu0 %v1714
    %1770 = vmatprep.subr.mxu0 %v1719
    %1771 = vmatpush1.msra.mxu0 %v1718
    %1772 = vmatprep.subr.mxu0 %v1723
    %1773 = vmatpush1.msra.mxu0 %v1722
    %1774 = vmatprep.subr.mxu0 %v1727
    %1775 = vmatpush1.msra.mxu0 %v1726
    %1776 = vmatprep.subr.mxu0 %v1731
    %1777 = vmatpush1.msra.mxu0 %v1730
    %1778 = vmatprep.subr.mxu0 %v1735
    %1779 = vmatpush1.msra.mxu0 %v1734
    %1780 = vmatprep.subr.mxu0 %v1739
    %1781 = vmatpush1.msra.mxu0 %v1738
    %1782 = vmatprep.subr.mxu0 %v1743
    %1783 = vmatpush1.msra.mxu0 %v1742
    %1784 = vmatprep.subr.mxu0 %v1747
    %1785 = vmatpush1.msra.mxu0 %v1746
    %1786 = vmatprep.subr.mxu0 %v1751
    %1787 = vmatpush1.msra.mxu0 %v1750
    %1788 = vmatprep.subr.mxu0 %v1755
    %1789 = vmatpush1.msra.mxu0 %v1754
    %1790 = vmatprep.subr.mxu0 0.0
    %1791 = vmatpush1.msra.mxu0 0.0
    %1792 = vmatprep.subr.mxu0 0.0
    %1793 = vmatpush1.msra.mxu0 0.0
    %1794 = vmatprep.subr.mxu0 0.0
    %1795 = vmatpush1.msra.mxu0 0.0
    %1796 = vmatprep.subr.mxu0 0.0
    %1797 = vmatpush1.msra.mxu0 0.0
    %1798 = vmatprep.subr.mxu0 0.0
    %1799 = vmatpush1.msra.mxu0 0.0
    %1800 = vmatprep.subr.mxu0 0.0
    %1801 = vmatpush1.msra.mxu0 0.0
    %1802 = vmatprep.subr.mxu0 0.0
    %1803 = vmatpush1.msra.mxu0 0.0
    %1804 = vmatprep.subr.mxu0 0.0
    %1805 = vmatpush1.msra.mxu0 0.0
    %1806 = vmatprep.subr.mxu0 0.0
    %1807 = vmatpush1.msra.mxu0 0.0
    %1808 = vmatprep.subr.mxu0 0.0
    %1809 = vmatpush1.msra.mxu0 0.0
    %1810 = vmatprep.subr.mxu0 0.0
    %1811 = vmatpush1.msra.mxu0 0.0
    %1812 = vmatprep.subr.mxu0 0.0
    %1813 = vmatpush1.msra.mxu0 0.0
    %1814 = vmatprep.subr.mxu0 0.0
    %1815 = vmatpush1.msra.mxu0 0.0
    %1816 = vmatprep.subr.mxu0 0.0
    %1817 = vmatpush1.msra.mxu0 0.0
    %1818 = vmatprep.subr.mxu0 0.0
    %1819 = vmatpush1.msra.mxu0 0.0
    %1820 = vmatprep.subr.mxu0 0.0
    %1821 = vmatpush1.msra.mxu0 0.0
    %1822 = vmatprep.mubr.f32.mxu0 0.0
    %1823 = vmatmul.mubr.f32.gmra.mrb[0].mxu0 %v1682
    %v1824 = vpop.f32.mrb[0].mxu0
    %v1825 = vadd.f32 0.0, %v1824
    %v1826 = vpop.f32.mrb[0].mxu0
    %v1827 = vadd.f32 0.0, %v1826
    %1828 = vdwg.mxu0
    %1829 = vmatprep.subr.mxu0 %v1697
    %1830 = vmatpush1.msra.mxu0 %v1696
    %1831 = vmatprep.subr.mxu0 %v1701
    %1832 = vmatpush1.msra.mxu0 %v1700
    %1833 = vmatprep.subr.mxu0 %v1705
    %1834 = vmatpush1.msra.mxu0 %v1704
    %1835 = vmatprep.subr.mxu0 %v1709
    %1836 = vmatpush1.msra.mxu0 %v1708
    %1837 = vmatprep.subr.mxu0 %v1713
    %1838 = vmatpush1.msra.mxu0 %v1712
    %1839 = vmatprep.subr.mxu0 %v1717
    %1840 = vmatpush1.msra.mxu0 %v1716
    %1841 = vmatprep.subr.mxu0 %v1721
    %1842 = vmatpush1.msra.mxu0 %v1720
    %1843 = vmatprep.subr.mxu0 %v1725
    %1844 = vmatpush1.msra.mxu0 %v1724
    %1845 = vmatprep.subr.mxu0 %v1729
    %1846 = vmatpush1.msra.mxu0 %v1728
    %1847 = vmatprep.subr.mxu0 %v1733
    %1848 = vmatpush1.msra.mxu0 %v1732
    %1849 = vmatprep.subr.mxu0 %v1737
    %1850 = vmatpush1.msra.mxu0 %v1736
    %1851 = vmatprep.subr.mxu0 %v1741
    %1852 = vmatpush1.msra.mxu0 %v1740
    %1853 = vmatprep.subr.mxu0 %v1745
    %1854 = vmatpush1.msra.mxu0 %v1744
    %1855 = vmatprep.subr.mxu0 %v1749
    %1856 = vmatpush1.msra.mxu0 %v1748
    %1857 = vmatprep.subr.mxu0 %v1753
    %1858 = vmatpush1.msra.mxu0 %v1752
    %1859 = vmatprep.subr.mxu0 %v1757
    %1860 = vmatpush1.msra.mxu0 %v1756
    %1861 = vmatprep.subr.mxu0 0.0
    %1862 = vmatpush1.msra.mxu0 0.0
    %1863 = vmatprep.subr.mxu0 0.0
    %1864 = vmatpush1.msra.mxu0 0.0
    %1865 = vmatprep.subr.mxu0 0.0
    %1866 = vmatpush1.msra.mxu0 0.0
    %1867 = vmatprep.subr.mxu0 0.0
    %1868 = vmatpush1.msra.mxu0 0.0
    %1869 = vmatprep.subr.mxu0 0.0
    %1870 = vmatpush1.msra.mxu0 0.0
    %1871 = vmatprep.subr.mxu0 0.0
    %1872 = vmatpush1.msra.mxu0 0.0
    %1873 = vmatprep.subr.mxu0 0.0
    %1874 = vmatpush1.msra.mxu0 0.0
    %1875 = vmatprep.subr.mxu0 0.0
    %1876 = vmatpush1.msra.mxu0 0.0
    %1877 = vmatprep.subr.mxu0 0.0
    %1878 = vmatpush1.msra.mxu0 0.0
    %1879 = vmatprep.subr.mxu0 0.0
    %1880 = vmatpush1.msra.mxu0 0.0
    %1881 = vmatprep.subr.mxu0 0.0
    %1882 = vmatpush1.msra.mxu0 0.0
    %1883 = vmatprep.subr.mxu0 0.0
    %1884 = vmatpush1.msra.mxu0 0.0
    %1885 = vmatprep.subr.mxu0 0.0
    %1886 = vmatpush1.msra.mxu0 0.0
    %1887 = vmatprep.subr.mxu0 0.0
    %1888 = vmatpush1.msra.mxu0 0.0
    %1889 = vmatprep.subr.mxu0 0.0
    %1890 = vmatpush1.msra.mxu0 0.0
    %1891 = vmatprep.subr.mxu0 0.0
    %1892 = vmatpush1.msra.mxu0 0.0
    %1893 = vmatprep.mubr.f32.mxu0 0.0
    %1894 = vmatmul.mubr.f32.gmra.mrb[0].mxu0 %v1682
    %v1895 = vpop.f32.mrb[0].mxu0
    %v1896 = vadd.f32 0.0, %v1895
    %v1897 = vpop.f32.mrb[0].mxu0
    %v1898 = vadd.f32 0.0, %v1897
    %1899 = vdwg.mxu0
    %v1900 = vadd.f32 %v1690, %v1825
    %v1901 = vadd.f32 %v1691, %v1827
    %v1902 = vadd.f32 %v1692, %v1896
    %v1903 = vadd.f32 %v1693, %v1898
    %v1904 = vxor.u32 %v1900, 2147483648
    %v1905 = vmul.f32 %v1904, 1.442695
    %v1906 = vpow.pop %v1905
    %v1907 = vadd.f32 %v1906, 1.0
    %v1908 = vrcp.pop %v1907
    %v1909 = vmul.f32 1.0, %v1908
    %v1910 = vxor.u32 %v1901, 2147483648
    %v1911 = vmul.f32 %v1910, 1.442695
    %v1912 = vpow.pop %v1911
    %v1913 = vadd.f32 %v1912, 1.0
    %v1914 = vrcp.pop %v1913
    %v1915 = vmul.f32 1.0, %v1914
    %v1916 = vtanh.pop %v1902
    %v1917 = vxor.u32 %v1903, 2147483648
    %v1918 = vmul.f32 %v1917, 1.442695
    %v1919 = vpow.pop %v1918
    %v1920 = vadd.f32 %v1919, 1.0
    %v1921 = vrcp.pop %v1920
    %v1922 = vmul.f32 1.0, %v1921
    %v1923 = vmul.f32 %v1915, %v1680
    %v1924 = vmul.f32 %v1909, %v1916
    %v1925 = vadd.f32 %v1923, %v1924
    %v1926 = vtanh.pop %v1925
    %v1927 = vmul.f32 %v1922, %v1926
    %s1928 = scalar_lea.vmem [#allocation3], 40
    %1929 = vst [vmem:[%s1928] sm:$0xff] %v1927
    %s1930 = scalar_lea.vmem [#allocation4], 16
    %1931 = vst [vmem:[%s1930] sm:$0xff] %v1927
    %s1932 = smul.u32 6, 4
    %s1933 = smul.addr %s1932, 8
    %s1934 = scalar_lea.vmem [#allocation2], %s1933
    %v1935 = vld [vmem:[%s1934] sm:$0xff]
    %v1936 = vld [vmem:[%s1934 + $0x8] sm:$0xff]
    %v1937 = vld [vmem:[%s1934 + $0x10] sm:$0xff]
    %v1938 = vld [vmem:[%s1934 + $0x18] sm:$0xff]
    %v1939 = vld [vmem:[#allocation8] sm:$0xff]
    %v1940 = vld [vmem:[#allocation8 + $0x8] sm:$0xff]
    %v1941 = vld [vmem:[#allocation8 + $0x10] sm:$0xff]
    %v1942 = vld [vmem:[#allocation8 + $0x18] sm:$0xff]
    %v1943 = vld [vmem:[#allocation8 + $0x20] sm:$0xff]
    %v1944 = vld [vmem:[#allocation8 + $0x28] sm:$0xff]
    %v1945 = vld [vmem:[#allocation8 + $0x30] sm:$0xff]
    %v1946 = vld [vmem:[#allocation8 + $0x38] sm:$0xff]
    %v1947 = vld [vmem:[#allocation8 + $0x40] sm:$0xff]
    %v1948 = vld [vmem:[#allocation8 + $0x48] sm:$0xff]
    %v1949 = vld [vmem:[#allocation8 + $0x50] sm:$0xff]
    %v1950 = vld [vmem:[#allocation8 + $0x58] sm:$0xff]
    %v1951 = vld [vmem:[#allocation8 + $0x60] sm:$0xff]
    %v1952 = vld [vmem:[#allocation8 + $0x68] sm:$0xff]
    %v1953 = vld [vmem:[#allocation8 + $0x70] sm:$0xff]
    %v1954 = vld [vmem:[#allocation8 + $0x78] sm:$0xff]
    %v1955 = vld [vmem:[#allocation8 + $0x80] sm:$0xff]
    %v1956 = vld [vmem:[#allocation8 + $0x88] sm:$0xff]
    %v1957 = vld [vmem:[#allocation8 + $0x90] sm:$0xff]
    %v1958 = vld [vmem:[#allocation8 + $0x98] sm:$0xff]
    %v1959 = vld [vmem:[#allocation8 + $0xa0] sm:$0xff]
    %v1960 = vld [vmem:[#allocation8 + $0xa8] sm:$0xff]
    %v1961 = vld [vmem:[#allocation8 + $0xb0] sm:$0xff]
    %v1962 = vld [vmem:[#allocation8 + $0xb8] sm:$0xff]
    %v1963 = vld [vmem:[#allocation8 + $0xc0] sm:$0xff]
    %v1964 = vld [vmem:[#allocation8 + $0xc8] sm:$0xff]
    %v1965 = vld [vmem:[#allocation8 + $0xd0] sm:$0xff]
    %v1966 = vld [vmem:[#allocation8 + $0xd8] sm:$0xff]
    %v1967 = vld [vmem:[#allocation8 + $0xe0] sm:$0xff]
    %v1968 = vld [vmem:[#allocation8 + $0xe8] sm:$0xff]
    %v1969 = vld [vmem:[#allocation8 + $0xf0] sm:$0xff]
    %v1970 = vld [vmem:[#allocation8 + $0xf8] sm:$0xff]
    %v1971 = vld [vmem:[#allocation8 + $0x100] sm:$0xff]
    %v1972 = vld [vmem:[#allocation8 + $0x108] sm:$0xff]
    %v1973 = vld [vmem:[#allocation8 + $0x110] sm:$0xff]
    %v1974 = vld [vmem:[#allocation8 + $0x118] sm:$0xff]
    %v1975 = vld [vmem:[#allocation8 + $0x120] sm:$0xff]
    %v1976 = vld [vmem:[#allocation8 + $0x128] sm:$0xff]
    %v1977 = vld [vmem:[#allocation8 + $0x130] sm:$0xff]
    %v1978 = vld [vmem:[#allocation8 + $0x138] sm:$0xff]
    %v1979 = vld [vmem:[#allocation8 + $0x140] sm:$0xff]
    %v1980 = vld [vmem:[#allocation8 + $0x148] sm:$0xff]
    %v1981 = vld [vmem:[#allocation8 + $0x150] sm:$0xff]
    %v1982 = vld [vmem:[#allocation8 + $0x158] sm:$0xff]
    %v1983 = vld [vmem:[#allocation8 + $0x160] sm:$0xff]
    %v1984 = vld [vmem:[#allocation8 + $0x168] sm:$0xff]
    %v1985 = vld [vmem:[#allocation8 + $0x170] sm:$0xff]
    %v1986 = vld [vmem:[#allocation8 + $0x178] sm:$0xff]
    %v1987 = vld [vmem:[#allocation8 + $0x180] sm:$0xff]
    %v1988 = vld [vmem:[#allocation8 + $0x188] sm:$0xff]
    %v1989 = vld [vmem:[#allocation8 + $0x190] sm:$0xff]
    %v1990 = vld [vmem:[#allocation8 + $0x198] sm:$0xff]
    %v1991 = vld [vmem:[#allocation8 + $0x1a0] sm:$0xff]
    %v1992 = vld [vmem:[#allocation8 + $0x1a8] sm:$0xff]
    %v1993 = vld [vmem:[#allocation8 + $0x1b0] sm:$0xff]
    %v1994 = vld [vmem:[#allocation8 + $0x1b8] sm:$0xff]
    %v1995 = vld [vmem:[#allocation8 + $0x1c0] sm:$0xff]
    %v1996 = vld [vmem:[#allocation8 + $0x1c8] sm:$0xff]
    %v1997 = vld [vmem:[#allocation8 + $0x1d0] sm:$0xff]
    %v1998 = vld [vmem:[#allocation8 + $0x1d8] sm:$0xff]
    %v1999 = vld [vmem:[#allocation8 + $0x1e0] sm:$0xff]
    %v2000 = vld [vmem:[#allocation8 + $0x1e8] sm:$0xff]
    %v2001 = vld [vmem:[#allocation8 + $0x1f0] sm:$0xff]
    %v2002 = vld [vmem:[#allocation8 + $0x1f8] sm:$0xff]
    %2003 = vmatprep.subr.mxu0 %v1940
    %2004 = vmatpush1.msra.mxu0 %v1939
    %2005 = vmatprep.subr.mxu0 %v1944
    %2006 = vmatpush1.msra.mxu0 %v1943
    %2007 = vmatprep.subr.mxu0 %v1948
    %2008 = vmatpush1.msra.mxu0 %v1947
    %2009 = vmatprep.subr.mxu0 %v1952
    %2010 = vmatpush1.msra.mxu0 %v1951
    %2011 = vmatprep.subr.mxu0 %v1956
    %2012 = vmatpush1.msra.mxu0 %v1955
    %2013 = vmatprep.subr.mxu0 %v1960
    %2014 = vmatpush1.msra.mxu0 %v1959
    %2015 = vmatprep.subr.mxu0 %v1964
    %2016 = vmatpush1.msra.mxu0 %v1963
    %2017 = vmatprep.subr.mxu0 %v1968
    %2018 = vmatpush1.msra.mxu0 %v1967
    %2019 = vmatprep.subr.mxu0 %v1972
    %2020 = vmatpush1.msra.mxu0 %v1971
    %2021 = vmatprep.subr.mxu0 %v1976
    %2022 = vmatpush1.msra.mxu0 %v1975
    %2023 = vmatprep.subr.mxu0 %v1980
    %2024 = vmatpush1.msra.mxu0 %v1979
    %2025 = vmatprep.subr.mxu0 %v1984
    %2026 = vmatpush1.msra.mxu0 %v1983
    %2027 = vmatprep.subr.mxu0 %v1988
    %2028 = vmatpush1.msra.mxu0 %v1987
    %2029 = vmatprep.subr.mxu0 %v1992
    %2030 = vmatpush1.msra.mxu0 %v1991
    %2031 = vmatprep.subr.mxu0 %v1996
    %2032 = vmatpush1.msra.mxu0 %v1995
    %2033 = vmatprep.subr.mxu0 %v2000
    %2034 = vmatpush1.msra.mxu0 %v1999
    %2035 = vmatprep.subr.mxu0 0.0
    %2036 = vmatpush1.msra.mxu0 0.0
    %2037 = vmatprep.subr.mxu0 0.0
    %2038 = vmatpush1.msra.mxu0 0.0
    %2039 = vmatprep.subr.mxu0 0.0
    %2040 = vmatpush1.msra.mxu0 0.0
    %2041 = vmatprep.subr.mxu0 0.0
    %2042 = vmatpush1.msra.mxu0 0.0
    %2043 = vmatprep.subr.mxu0 0.0
    %2044 = vmatpush1.msra.mxu0 0.0
    %2045 = vmatprep.subr.mxu0 0.0
    %2046 = vmatpush1.msra.mxu0 0.0
    %2047 = vmatprep.subr.mxu0 0.0
    %2048 = vmatpush1.msra.mxu0 0.0
    %2049 = vmatprep.subr.mxu0 0.0
    %2050 = vmatpush1.msra.mxu0 0.0
    %2051 = vmatprep.subr.mxu0 0.0
    %2052 = vmatpush1.msra.mxu0 0.0
    %2053 = vmatprep.subr.mxu0 0.0
    %2054 = vmatpush1.msra.mxu0 0.0
    %2055 = vmatprep.subr.mxu0 0.0
    %2056 = vmatpush1.msra.mxu0 0.0
    %2057 = vmatprep.subr.mxu0 0.0
    %2058 = vmatpush1.msra.mxu0 0.0
    %2059 = vmatprep.subr.mxu0 0.0
    %2060 = vmatpush1.msra.mxu0 0.0
    %2061 = vmatprep.subr.mxu0 0.0
    %2062 = vmatpush1.msra.mxu0 0.0
    %2063 = vmatprep.subr.mxu0 0.0
    %2064 = vmatpush1.msra.mxu0 0.0
    %2065 = vmatprep.subr.mxu0 0.0
    %2066 = vmatpush1.msra.mxu0 0.0
    %2067 = vmatprep.mubr.f32.mxu0 0.0
    %2068 = vmatmul.mubr.f32.gmra.mrb[0].mxu0 %v1927
    %v2069 = vpop.f32.mrb[0].mxu0
    %v2070 = vadd.f32 0.0, %v2069
    %v2071 = vpop.f32.mrb[0].mxu0
    %v2072 = vadd.f32 0.0, %v2071
    %2073 = vdwg.mxu0
    %2074 = vmatprep.subr.mxu0 %v1942
    %2075 = vmatpush1.msra.mxu0 %v1941
    %2076 = vmatprep.subr.mxu0 %v1946
    %2077 = vmatpush1.msra.mxu0 %v1945
    %2078 = vmatprep.subr.mxu0 %v1950
    %2079 = vmatpush1.msra.mxu0 %v1949
    %2080 = vmatprep.subr.mxu0 %v1954
    %2081 = vmatpush1.msra.mxu0 %v1953
    %2082 = vmatprep.subr.mxu0 %v1958
    %2083 = vmatpush1.msra.mxu0 %v1957
    %2084 = vmatprep.subr.mxu0 %v1962
    %2085 = vmatpush1.msra.mxu0 %v1961
    %2086 = vmatprep.subr.mxu0 %v1966
    %2087 = vmatpush1.msra.mxu0 %v1965
    %2088 = vmatprep.subr.mxu0 %v1970
    %2089 = vmatpush1.msra.mxu0 %v1969
    %2090 = vmatprep.subr.mxu0 %v1974
    %2091 = vmatpush1.msra.mxu0 %v1973
    %2092 = vmatprep.subr.mxu0 %v1978
    %2093 = vmatpush1.msra.mxu0 %v1977
    %2094 = vmatprep.subr.mxu0 %v1982
    %2095 = vmatpush1.msra.mxu0 %v1981
    %2096 = vmatprep.subr.mxu0 %v1986
    %2097 = vmatpush1.msra.mxu0 %v1985
    %2098 = vmatprep.subr.mxu0 %v1990
    %2099 = vmatpush1.msra.mxu0 %v1989
    %2100 = vmatprep.subr.mxu0 %v1994
    %2101 = vmatpush1.msra.mxu0 %v1993
    %2102 = vmatprep.subr.mxu0 %v1998
    %2103 = vmatpush1.msra.mxu0 %v1997
    %2104 = vmatprep.subr.mxu0 %v2002
    %2105 = vmatpush1.msra.mxu0 %v2001
    %2106 = vmatprep.subr.mxu0 0.0
    %2107 = vmatpush1.msra.mxu0 0.0
    %2108 = vmatprep.subr.mxu0 0.0
    %2109 = vmatpush1.msra.mxu0 0.0
    %2110 = vmatprep.subr.mxu0 0.0
    %2111 = vmatpush1.msra.mxu0 0.0
    %2112 = vmatprep.subr.mxu0 0.0
    %2113 = vmatpush1.msra.mxu0 0.0
    %2114 = vmatprep.subr.mxu0 0.0
    %2115 = vmatpush1.msra.mxu0 0.0
    %2116 = vmatprep.subr.mxu0 0.0
    %2117 = vmatpush1.msra.mxu0 0.0
    %2118 = vmatprep.subr.mxu0 0.0
    %2119 = vmatpush1.msra.mxu0 0.0
    %2120 = vmatprep.subr.mxu0 0.0
    %2121 = vmatpush1.msra.mxu0 0.0
    %2122 = vmatprep.subr.mxu0 0.0
    %2123 = vmatpush1.msra.mxu0 0.0
    %2124 = vmatprep.subr.mxu0 0.0
    %2125 = vmatpush1.msra.mxu0 0.0
    %2126 = vmatprep.subr.mxu0 0.0
    %2127 = vmatpush1.msra.mxu0 0.0
    %2128 = vmatprep.subr.mxu0 0.0
    %2129 = vmatpush1.msra.mxu0 0.0
    %2130 = vmatprep.subr.mxu0 0.0
    %2131 = vmatpush1.msra.mxu0 0.0
    %2132 = vmatprep.subr.mxu0 0.0
    %2133 = vmatpush1.msra.mxu0 0.0
    %2134 = vmatprep.subr.mxu0 0.0
    %2135 = vmatpush1.msra.mxu0 0.0
    %2136 = vmatprep.subr.mxu0 0.0
    %2137 = vmatpush1.msra.mxu0 0.0
    %2138 = vmatprep.mubr.f32.mxu0 0.0
    %2139 = vmatmul.mubr.f32.gmra.mrb[0].mxu0 %v1927
    %v2140 = vpop.f32.mrb[0].mxu0
    %v2141 = vadd.f32 0.0, %v2140
    %v2142 = vpop.f32.mrb[0].mxu0
    %v2143 = vadd.f32 0.0, %v2142
    %2144 = vdwg.mxu0
    %v2145 = vadd.f32 %v1935, %v2070
    %v2146 = vadd.f32 %v1936, %v2072
    %v2147 = vadd.f32 %v1937, %v2141
    %v2148 = vadd.f32 %v1938, %v2143
    %v2149 = vxor.u32 %v2145, 2147483648
    %v2150 = vmul.f32 %v2149, 1.442695
    %v2151 = vpow.pop %v2150
    %v2152 = vadd.f32 %v2151, 1.0
    %v2153 = vrcp.pop %v2152
    %v2154 = vmul.f32 1.0, %v2153
    %v2155 = vxor.u32 %v2146, 2147483648
    %v2156 = vmul.f32 %v2155, 1.442695
    %v2157 = vpow.pop %v2156
    %v2158 = vadd.f32 %v2157, 1.0
    %v2159 = vrcp.pop %v2158
    %v2160 = vmul.f32 1.0, %v2159
    %v2161 = vtanh.pop %v2147
    %v2162 = vxor.u32 %v2148, 2147483648
    %v2163 = vmul.f32 %v2162, 1.442695
    %v2164 = vpow.pop %v2163
    %v2165 = vadd.f32 %v2164, 1.0
    %v2166 = vrcp.pop %v2165
    %v2167 = vmul.f32 1.0, %v2166
    %v2168 = vmul.f32 %v2160, %v1925
    %v2169 = vmul.f32 %v2154, %v2161
    %v2170 = vadd.f32 %v2168, %v2169
    %v2171 = vtanh.pop %v2170
    %v2172 = vmul.f32 %v2167, %v2171
    %s2173 = scalar_lea.vmem [#allocation3], 48
    %2174 = vst [vmem:[%s2173] sm:$0xff] %v2172
    %s2175 = scalar_lea.vmem [#allocation4], 8
    %2176 = vst [vmem:[%s2175] sm:$0xff] %v2172
    %s2177 = smul.u32 7, 4
    %s2178 = smul.addr %s2177, 8
    %s2179 = scalar_lea.vmem [#allocation2], %s2178
    %v2180 = vld [vmem:[%s2179] sm:$0xff]
    %v2181 = vld [vmem:[%s2179 + $0x8] sm:$0xff]
    %v2182 = vld [vmem:[%s2179 + $0x10] sm:$0xff]
    %v2183 = vld [vmem:[%s2179 + $0x18] sm:$0xff]
    %v2184 = vld [vmem:[#allocation8] sm:$0xff]
    %v2185 = vld [vmem:[#allocation8 + $0x8] sm:$0xff]
    %v2186 = vld [vmem:[#allocation8 + $0x10] sm:$0xff]
    %v2187 = vld [vmem:[#allocation8 + $0x18] sm:$0xff]
    %v2188 = vld [vmem:[#allocation8 + $0x20] sm:$0xff]
    %v2189 = vld [vmem:[#allocation8 + $0x28] sm:$0xff]
    %v2190 = vld [vmem:[#allocation8 + $0x30] sm:$0xff]
    %v2191 = vld [vmem:[#allocation8 + $0x38] sm:$0xff]
    %v2192 = vld [vmem:[#allocation8 + $0x40] sm:$0xff]
    %v2193 = vld [vmem:[#allocation8 + $0x48] sm:$0xff]
    %v2194 = vld [vmem:[#allocation8 + $0x50] sm:$0xff]
    %v2195 = vld [vmem:[#allocation8 + $0x58] sm:$0xff]
    %v2196 = vld [vmem:[#allocation8 + $0x60] sm:$0xff]
    %v2197 = vld [vmem:[#allocation8 + $0x68] sm:$0xff]
    %v2198 = vld [vmem:[#allocation8 + $0x70] sm:$0xff]
    %v2199 = vld [vmem:[#allocation8 + $0x78] sm:$0xff]
    %v2200 = vld [vmem:[#allocation8 + $0x80] sm:$0xff]
    %v2201 = vld [vmem:[#allocation8 + $0x88] sm:$0xff]
    %v2202 = vld [vmem:[#allocation8 + $0x90] sm:$0xff]
    %v2203 = vld [vmem:[#allocation8 + $0x98] sm:$0xff]
    %v2204 = vld [vmem:[#allocation8 + $0xa0] sm:$0xff]
    %v2205 = vld [vmem:[#allocation8 + $0xa8] sm:$0xff]
    %v2206 = vld [vmem:[#allocation8 + $0xb0] sm:$0xff]
    %v2207 = vld [vmem:[#allocation8 + $0xb8] sm:$0xff]
    %v2208 = vld [vmem:[#allocation8 + $0xc0] sm:$0xff]
    %v2209 = vld [vmem:[#allocation8 + $0xc8] sm:$0xff]
    %v2210 = vld [vmem:[#allocation8 + $0xd0] sm:$0xff]
    %v2211 = vld [vmem:[#allocation8 + $0xd8] sm:$0xff]
    %v2212 = vld [vmem:[#allocation8 + $0xe0] sm:$0xff]
    %v2213 = vld [vmem:[#allocation8 + $0xe8] sm:$0xff]
    %v2214 = vld [vmem:[#allocation8 + $0xf0] sm:$0xff]
    %v2215 = vld [vmem:[#allocation8 + $0xf8] sm:$0xff]
    %v2216 = vld [vmem:[#allocation8 + $0x100] sm:$0xff]
    %v2217 = vld [vmem:[#allocation8 + $0x108] sm:$0xff]
    %v2218 = vld [vmem:[#allocation8 + $0x110] sm:$0xff]
    %v2219 = vld [vmem:[#allocation8 + $0x118] sm:$0xff]
    %v2220 = vld [vmem:[#allocation8 + $0x120] sm:$0xff]
    %v2221 = vld [vmem:[#allocation8 + $0x128] sm:$0xff]
    %v2222 = vld [vmem:[#allocation8 + $0x130] sm:$0xff]
    %v2223 = vld [vmem:[#allocation8 + $0x138] sm:$0xff]
    %v2224 = vld [vmem:[#allocation8 + $0x140] sm:$0xff]
    %v2225 = vld [vmem:[#allocation8 + $0x148] sm:$0xff]
    %v2226 = vld [vmem:[#allocation8 + $0x150] sm:$0xff]
    %v2227 = vld [vmem:[#allocation8 + $0x158] sm:$0xff]
    %v2228 = vld [vmem:[#allocation8 + $0x160] sm:$0xff]
    %v2229 = vld [vmem:[#allocation8 + $0x168] sm:$0xff]
    %v2230 = vld [vmem:[#allocation8 + $0x170] sm:$0xff]
    %v2231 = vld [vmem:[#allocation8 + $0x178] sm:$0xff]
    %v2232 = vld [vmem:[#allocation8 + $0x180] sm:$0xff]
    %v2233 = vld [vmem:[#allocation8 + $0x188] sm:$0xff]
    %v2234 = vld [vmem:[#allocation8 + $0x190] sm:$0xff]
    %v2235 = vld [vmem:[#allocation8 + $0x198] sm:$0xff]
    %v2236 = vld [vmem:[#allocation8 + $0x1a0] sm:$0xff]
    %v2237 = vld [vmem:[#allocation8 + $0x1a8] sm:$0xff]
    %v2238 = vld [vmem:[#allocation8 + $0x1b0] sm:$0xff]
    %v2239 = vld [vmem:[#allocation8 + $0x1b8] sm:$0xff]
    %v2240 = vld [vmem:[#allocation8 + $0x1c0] sm:$0xff]
    %v2241 = vld [vmem:[#allocation8 + $0x1c8] sm:$0xff]
    %v2242 = vld [vmem:[#allocation8 + $0x1d0] sm:$0xff]
    %v2243 = vld [vmem:[#allocation8 + $0x1d8] sm:$0xff]
    %v2244 = vld [vmem:[#allocation8 + $0x1e0] sm:$0xff]
    %v2245 = vld [vmem:[#allocation8 + $0x1e8] sm:$0xff]
    %v2246 = vld [vmem:[#allocation8 + $0x1f0] sm:$0xff]
    %v2247 = vld [vmem:[#allocation8 + $0x1f8] sm:$0xff]
    %2248 = vmatprep.subr.mxu0 %v2185
    %2249 = vmatpush1.msra.mxu0 %v2184
    %2250 = vmatprep.subr.mxu0 %v2189
    %2251 = vmatpush1.msra.mxu0 %v2188
    %2252 = vmatprep.subr.mxu0 %v2193
    %2253 = vmatpush1.msra.mxu0 %v2192
    %2254 = vmatprep.subr.mxu0 %v2197
    %2255 = vmatpush1.msra.mxu0 %v2196
    %2256 = vmatprep.subr.mxu0 %v2201
    %2257 = vmatpush1.msra.mxu0 %v2200
    %2258 = vmatprep.subr.mxu0 %v2205
    %2259 = vmatpush1.msra.mxu0 %v2204
    %2260 = vmatprep.subr.mxu0 %v2209
    %2261 = vmatpush1.msra.mxu0 %v2208
    %2262 = vmatprep.subr.mxu0 %v2213
    %2263 = vmatpush1.msra.mxu0 %v2212
    %2264 = vmatprep.subr.mxu0 %v2217
    %2265 = vmatpush1.msra.mxu0 %v2216
    %2266 = vmatprep.subr.mxu0 %v2221
    %2267 = vmatpush1.msra.mxu0 %v2220
    %2268 = vmatprep.subr.mxu0 %v2225
    %2269 = vmatpush1.msra.mxu0 %v2224
    %2270 = vmatprep.subr.mxu0 %v2229
    %2271 = vmatpush1.msra.mxu0 %v2228
    %2272 = vmatprep.subr.mxu0 %v2233
    %2273 = vmatpush1.msra.mxu0 %v2232
    %2274 = vmatprep.subr.mxu0 %v2237
    %2275 = vmatpush1.msra.mxu0 %v2236
    %2276 = vmatprep.subr.mxu0 %v2241
    %2277 = vmatpush1.msra.mxu0 %v2240
    %2278 = vmatprep.subr.mxu0 %v2245
    %2279 = vmatpush1.msra.mxu0 %v2244
    %2280 = vmatprep.subr.mxu0 0.0
    %2281 = vmatpush1.msra.mxu0 0.0
    %2282 = vmatprep.subr.mxu0 0.0
    %2283 = vmatpush1.msra.mxu0 0.0
    %2284 = vmatprep.subr.mxu0 0.0
    %2285 = vmatpush1.msra.mxu0 0.0
    %2286 = vmatprep.subr.mxu0 0.0
    %2287 = vmatpush1.msra.mxu0 0.0
    %2288 = vmatprep.subr.mxu0 0.0
    %2289 = vmatpush1.msra.mxu0 0.0
    %2290 = vmatprep.subr.mxu0 0.0
    %2291 = vmatpush1.msra.mxu0 0.0
    %2292 = vmatprep.subr.mxu0 0.0
    %2293 = vmatpush1.msra.mxu0 0.0
    %2294 = vmatprep.subr.mxu0 0.0
    %2295 = vmatpush1.msra.mxu0 0.0
    %2296 = vmatprep.subr.mxu0 0.0
    %2297 = vmatpush1.msra.mxu0 0.0
    %2298 = vmatprep.subr.mxu0 0.0
    %2299 = vmatpush1.msra.mxu0 0.0
    %2300 = vmatprep.subr.mxu0 0.0
    %2301 = vmatpush1.msra.mxu0 0.0
    %2302 = vmatprep.subr.mxu0 0.0
    %2303 = vmatpush1.msra.mxu0 0.0
    %2304 = vmatprep.subr.mxu0 0.0
    %2305 = vmatpush1.msra.mxu0 0.0
    %2306 = vmatprep.subr.mxu0 0.0
    %2307 = vmatpush1.msra.mxu0 0.0
    %2308 = vmatprep.subr.mxu0 0.0
    %2309 = vmatpush1.msra.mxu0 0.0
    %2310 = vmatprep.subr.mxu0 0.0
    %2311 = vmatpush1.msra.mxu0 0.0
    %2312 = vmatprep.mubr.f32.mxu0 0.0
    %2313 = vmatmul.mubr.f32.gmra.mrb[0].mxu0 %v2172
    %v2314 = vpop.f32.mrb[0].mxu0
    %v2315 = vadd.f32 0.0, %v2314
    %v2316 = vpop.f32.mrb[0].mxu0
    %v2317 = vadd.f32 0.0, %v2316
    %2318 = vdwg.mxu0
    %2319 = vmatprep.subr.mxu0 %v2187
    %2320 = vmatpush1.msra.mxu0 %v2186
    %2321 = vmatprep.subr.mxu0 %v2191
    %2322 = vmatpush1.msra.mxu0 %v2190
    %2323 = vmatprep.subr.mxu0 %v2195
    %2324 = vmatpush1.msra.mxu0 %v2194
    %2325 = vmatprep.subr.mxu0 %v2199
    %2326 = vmatpush1.msra.mxu0 %v2198
    %2327 = vmatprep.subr.mxu0 %v2203
    %2328 = vmatpush1.msra.mxu0 %v2202
    %2329 = vmatprep.subr.mxu0 %v2207
    %2330 = vmatpush1.msra.mxu0 %v2206
    %2331 = vmatprep.subr.mxu0 %v2211
    %2332 = vmatpush1.msra.mxu0 %v2210
    %2333 = vmatprep.subr.mxu0 %v2215
    %2334 = vmatpush1.msra.mxu0 %v2214
    %2335 = vmatprep.subr.mxu0 %v2219
    %2336 = vmatpush1.msra.mxu0 %v2218
    %2337 = vmatprep.subr.mxu0 %v2223
    %2338 = vmatpush1.msra.mxu0 %v2222
    %2339 = vmatprep.subr.mxu0 %v2227
    %2340 = vmatpush1.msra.mxu0 %v2226
    %2341 = vmatprep.subr.mxu0 %v2231
    %2342 = vmatpush1.msra.mxu0 %v2230
    %2343 = vmatprep.subr.mxu0 %v2235
    %2344 = vmatpush1.msra.mxu0 %v2234
    %2345 = vmatprep.subr.mxu0 %v2239
    %2346 = vmatpush1.msra.mxu0 %v2238
    %2347 = vmatprep.subr.mxu0 %v2243
    %2348 = vmatpush1.msra.mxu0 %v2242
    %2349 = vmatprep.subr.mxu0 %v2247
    %2350 = vmatpush1.msra.mxu0 %v2246
    %2351 = vmatprep.subr.mxu0 0.0
    %2352 = vmatpush1.msra.mxu0 0.0
    %2353 = vmatprep.subr.mxu0 0.0
    %2354 = vmatpush1.msra.mxu0 0.0
    %2355 = vmatprep.subr.mxu0 0.0
    %2356 = vmatpush1.msra.mxu0 0.0
    %2357 = vmatprep.subr.mxu0 0.0
    %2358 = vmatpush1.msra.mxu0 0.0
    %2359 = vmatprep.subr.mxu0 0.0
    %2360 = vmatpush1.msra.mxu0 0.0
    %2361 = vmatprep.subr.mxu0 0.0
    %2362 = vmatpush1.msra.mxu0 0.0
    %2363 = vmatprep.subr.mxu0 0.0
    %2364 = vmatpush1.msra.mxu0 0.0
    %2365 = vmatprep.subr.mxu0 0.0
    %2366 = vmatpush1.msra.mxu0 0.0
    %2367 = vmatprep.subr.mxu0 0.0
    %2368 = vmatpush1.msra.mxu0 0.0
    %2369 = vmatprep.subr.mxu0 0.0
    %2370 = vmatpush1.msra.mxu0 0.0
    %2371 = vmatprep.subr.mxu0 0.0
    %2372 = vmatpush1.msra.mxu0 0.0
    %2373 = vmatprep.subr.mxu0 0.0
    %2374 = vmatpush1.msra.mxu0 0.0
    %2375 = vmatprep.subr.mxu0 0.0
    %2376 = vmatpush1.msra.mxu0 0.0
    %2377 = vmatprep.subr.mxu0 0.0
    %2378 = vmatpush1.msra.mxu0 0.0
    %2379 = vmatprep.subr.mxu0 0.0
    %2380 = vmatpush1.msra.mxu0 0.0
    %2381 = vmatprep.subr.mxu0 0.0
    %2382 = vmatpush1.msra.mxu0 0.0
    %2383 = vmatprep.mubr.f32.mxu0 0.0
    %2384 = vmatmul.mubr.f32.gmra.mrb[0].mxu0 %v2172
    %v2385 = vpop.f32.mrb[0].mxu0
    %v2386 = vadd.f32 0.0, %v2385
    %v2387 = vpop.f32.mrb[0].mxu0
    %v2388 = vadd.f32 0.0, %v2387
    %2389 = vdwg.mxu0
    %v2390 = vadd.f32 %v2180, %v2315
    %v2391 = vadd.f32 %v2181, %v2317
    %v2392 = vadd.f32 %v2182, %v2386
    %v2393 = vadd.f32 %v2183, %v2388
    %v2394 = vxor.u32 %v2390, 2147483648
    %v2395 = vmul.f32 %v2394, 1.442695
    %v2396 = vpow.pop %v2395
    %v2397 = vadd.f32 %v2396, 1.0
    %v2398 = vrcp.pop %v2397
    %v2399 = vmul.f32 1.0, %v2398
    %v2400 = vxor.u32 %v2391, 2147483648
    %v2401 = vmul.f32 %v2400, 1.442695
    %v2402 = vpow.pop %v2401
    %v2403 = vadd.f32 %v2402, 1.0
    %v2404 = vrcp.pop %v2403
    %v2405 = vmul.f32 1.0, %v2404
    %v2406 = vtanh.pop %v2392
    %v2407 = vxor.u32 %v2393, 2147483648
    %v2408 = vmul.f32 %v2407, 1.442695
    %v2409 = vpow.pop %v2408
    %v2410 = vadd.f32 %v2409, 1.0
    %v2411 = vrcp.pop %v2410
    %v2412 = vmul.f32 1.0, %v2411
    %v2413 = vmul.f32 %v2405, %v2170
    %v2414 = vmul.f32 %v2399, %v2406
    %v2415 = vadd.f32 %v2413, %v2414
    %v2416 = vtanh.pop %v2415
    %v2417 = vmul.f32 %v2412, %v2416
    %s2418 = scalar_lea.vmem [#allocation3], 56
    %2419 = vst [vmem:[%s2418] sm:$0xff] %v2417
    %2420 = vst [vmem:[#allocation4] sm:$0xff] %v2417
    %v2421 = vlaneseq
    %v2422 = vand.u32 %v2421, 127
    %vm2423 = vcmp.lt.s32.totalorder %v2422, 64
    %v2424 = vld [vmem:[#allocation3] sm:$0xff]
    %v2425 = vld [vmem:[#allocation3 + $0x8] sm:$0xff]
    %v2426 = vld [vmem:[#allocation3 + $0x10] sm:$0xff]
    %v2427 = vld [vmem:[#allocation3 + $0x18] sm:$0xff]
    %v2428 = vld [vmem:[#allocation3 + $0x20] sm:$0xff]
    %v2429 = vld [vmem:[#allocation3 + $0x28] sm:$0xff]
    %v2430 = vld [vmem:[#allocation3 + $0x30] sm:$0xff]
    %v2431 = vld [vmem:[#allocation3 + $0x38] sm:$0xff]
    %v2432 = vld [vmem:[#allocation4] sm:$0xff]
    %v2433 = vld [vmem:[#allocation4 + $0x8] sm:$0xff]
    %v2434 = vld [vmem:[#allocation4 + $0x10] sm:$0xff]
    %v2435 = vld [vmem:[#allocation4 + $0x18] sm:$0xff]
    %v2436 = vld [vmem:[#allocation4 + $0x20] sm:$0xff]
    %v2437 = vld [vmem:[#allocation4 + $0x28] sm:$0xff]
    %v2438 = vld [vmem:[#allocation4 + $0x30] sm:$0xff]
    %v2439 = vld [vmem:[#allocation4 + $0x38] sm:$0xff]
    %v2440 = vsel %vm2423, %v2424, %v2432
    %v2441 = vsel %vm2423, %v2425, %v2433
    %v2442 = vsel %vm2423, %v2426, %v2434
    %v2443 = vsel %vm2423, %v2427, %v2435
    %v2444 = vsel %vm2423, %v2428, %v2436
    %v2445 = vsel %vm2423, %v2429, %v2437
    %v2446 = vsel %vm2423, %v2430, %v2438
    %v2447 = vsel %vm2423, %v2431, %v2439
    %v2448 = vpack.c.bf16 %v2441, %v2440
    %v2449 = vpack.c.bf16 %v2443, %v2442
    %v2450 = vpack.c.bf16 %v2445, %v2444
    %v2451 = vpack.c.bf16 %v2447, %v2446
    %v2452 = vld [vmem:[%s4] sm:$0xf]
    %v2453 = vld [vmem:[%s4 + $0x4] sm:$0xf]
    %v2454 = vld [vmem:[%s4 + $0x8] sm:$0xf]
    %v2455 = vld [vmem:[%s4 + $0xc] sm:$0xf]
    %v2456 = vld [vmem:[%s4 + $0x10] sm:$0xf]
    %v2457 = vld [vmem:[%s4 + $0x14] sm:$0xf]
    %v2458 = vld [vmem:[%s4 + $0x18] sm:$0xf]
    %v2459 = vld [vmem:[%s4 + $0x1c] sm:$0xf]
    %v2460 = vld [vmem:[%s4 + $0x20] sm:$0xf]
    %v2461 = vld [vmem:[%s4 + $0x24] sm:$0xf]
    %v2462 = vld [vmem:[%s4 + $0x28] sm:$0xf]
    %v2463 = vld [vmem:[%s4 + $0x2c] sm:$0xf]
    %v2464 = vld [vmem:[%s4 + $0x30] sm:$0xf]
    %v2465 = vld [vmem:[%s4 + $0x34] sm:$0xf]
    %v2466 = vld [vmem:[%s4 + $0x38] sm:$0xf]
    %v2467 = vld [vmem:[%s4 + $0x3c] sm:$0xf]
    %v2468 = vld [vmem:[%s5] sm:$0x1]
    %v2470 = vlaneseq
    %v2471 = vshrl.u32 %v2470, 7
    %v2472 = vsub.s32 0, %v2471
    %v2473 = vrot.slane %v2468, %v2472
    %v2491 = vunpack.c.l.b16 %v2452
    %v2492 = vunpack.c.l.b16 %v2453
    %v2493 = vunpack.c.l.b16 %v2454
    %v2494 = vunpack.c.l.b16 %v2455
    %v2495 = vunpack.c.l.b16 %v2456
    %v2496 = vunpack.c.l.b16 %v2457
    %v2497 = vunpack.c.l.b16 %v2458
    %v2498 = vunpack.c.l.b16 %v2459
    %v2499 = vunpack.c.l.b16 %v2460
    %v2500 = vunpack.c.l.b16 %v2461
    %v2501 = vunpack.c.l.b16 %v2462
    %v2502 = vunpack.c.l.b16 %v2463
    %v2503 = vunpack.c.l.b16 %v2464
    %v2504 = vunpack.c.l.b16 %v2465
    %v2505 = vunpack.c.l.b16 %v2466
    %v2506 = vunpack.c.l.b16 %v2467
    %v2507 = vpack.c.b16 %v2492, %v2491
    %v2508 = vpack.c.b16 %v2494, %v2493
    %v2509 = vpack.c.b16 %v2496, %v2495
    %v2510 = vpack.c.b16 %v2498, %v2497
    %v2511 = vpack.c.b16 %v2500, %v2499
    %v2512 = vpack.c.b16 %v2502, %v2501
    %v2513 = vpack.c.b16 %v2504, %v2503
    %v2514 = vpack.c.b16 %v2506, %v2505
    %2523 = vmatprep.subr.bf16.mxu0 0
    %2524 = vmatpush1.bf16.msra.mxu0 %v2507
    %2525 = vmatprep.subr.bf16.mxu0 0
    %2526 = vmatpush1.bf16.msra.mxu0 %v2508
    %2527 = vmatprep.subr.bf16.mxu0 0
    %2528 = vmatpush1.bf16.msra.mxu0 %v2509
    %2529 = vmatprep.subr.bf16.mxu0 0
    %2530 = vmatpush1.bf16.msra.mxu0 %v2510
    %2531 = vmatprep.subr.bf16.mxu0 0
    %2532 = vmatpush1.bf16.msra.mxu0 %v2511
    %2533 = vmatprep.subr.bf16.mxu0 0
    %2534 = vmatpush1.bf16.msra.mxu0 %v2512
    %2535 = vmatprep.subr.bf16.mxu0 0
    %2536 = vmatpush1.bf16.msra.mxu0 %v2513
    %2537 = vmatprep.subr.bf16.mxu0 0
    %2538 = vmatpush1.bf16.msra.mxu0 %v2514
    %2539 = vmatprep.subr.bf16.mxu0 0
    %2540 = vmatpush1.bf16.msra.mxu0 0
    %2541 = vmatprep.subr.bf16.mxu0 0
    %2542 = vmatpush1.bf16.msra.mxu0 0
    %2543 = vmatprep.subr.bf16.mxu0 0
    %2544 = vmatpush1.bf16.msra.mxu0 0
    %2545 = vmatprep.subr.bf16.mxu0 0
    %2546 = vmatpush1.bf16.msra.mxu0 0
    %2547 = vmatprep.subr.bf16.mxu0 0
    %2548 = vmatpush1.bf16.msra.mxu0 0
    %2549 = vmatprep.subr.bf16.mxu0 0
    %2550 = vmatpush1.bf16.msra.mxu0 0
    %2551 = vmatprep.subr.bf16.mxu0 0
    %2552 = vmatpush1.bf16.msra.mxu0 0
    %2553 = vmatprep.subr.bf16.mxu0 0
    %2554 = vmatpush1.bf16.msra.mxu0 0
    %2555 = vmatprep.mubr.bf16.mxu0 0
    %2556 = vmatmul.mubr.bf16.gmra.mrb[0].mxu0 %v2448
    %v2557 = vpop.f32.mrb[0].mxu0
    %v2558 = vadd.f32 %v2473, %v2557
    %v2559 = vpop.f32.mrb[0].mxu0
    %v2560 = vpop.f32.mrb[0].mxu0
    %v2561 = vadd.f32 %v2473, %v2560
    %v2562 = vpop.f32.mrb[0].mxu0
    %2563 = vmatprep.mubr.bf16.mxu0 0
    %2564 = vmatmul.mubr.bf16.gmra.mrb[0].mxu0 %v2449
    %v2565 = vpop.f32.mrb[0].mxu0
    %v2566 = vadd.f32 %v2473, %v2565
    %v2567 = vpop.f32.mrb[0].mxu0
    %v2568 = vpop.f32.mrb[0].mxu0
    %v2569 = vadd.f32 %v2473, %v2568
    %v2570 = vpop.f32.mrb[0].mxu0
    %2571 = vmatprep.mubr.bf16.mxu0 0
    %2572 = vmatmul.mubr.bf16.gmra.mrb[0].mxu0 %v2450
    %v2573 = vpop.f32.mrb[0].mxu0
    %v2574 = vadd.f32 %v2473, %v2573
    %v2575 = vpop.f32.mrb[0].mxu0
    %v2576 = vpop.f32.mrb[0].mxu0
    %v2577 = vadd.f32 %v2473, %v2576
    %v2578 = vpop.f32.mrb[0].mxu0
    %2579 = vmatprep.mubr.bf16.mxu0 0
    %2580 = vmatmul.mubr.bf16.gmra.mrb[0].mxu0 %v2451
    %v2581 = vpop.f32.mrb[0].mxu0
    %v2582 = vadd.f32 %v2473, %v2581
    %v2583 = vpop.f32.mrb[0].mxu0
    %v2584 = vpop.f32.mrb[0].mxu0
    %v2585 = vadd.f32 %v2473, %v2584
    %v2586 = vpop.f32.mrb[0].mxu0
    %2587 = vdwg.mxu0
    %v2588 = vmul.f32 %v2558, %v2558
    %v2589 = vmul.f32 %v2561, %v2561
    %v2590 = vmul.f32 %v2566, %v2566
    %v2591 = vmul.f32 %v2569, %v2569
    %v2592 = vmul.f32 %v2574, %v2574
    %v2593 = vmul.f32 %v2577, %v2577
    %v2594 = vmul.f32 %v2582, %v2582
    %v2595 = vmul.f32 %v2585, %v2585
    %vm2596 = vcmask 523264
    %v2597 = vsel %vm2596, %v2588, 0.0
    %2598 = vadd.xlane.f32.xlu0 %v2597
    %v2599 = vpop.xlane.xlu0 %2598
    %v2600 = vsel %vm2596, %v2589, 0.0
    %2601 = vadd.xlane.f32.xlu0 %v2600
    %v2602 = vpop.xlane.xlu0 %2601
    %v2603 = vsel %vm2596, %v2590, 0.0
    %2604 = vadd.xlane.f32.xlu0 %v2603
    %v2605 = vpop.xlane.xlu0 %2604
    %v2606 = vsel %vm2596, %v2591, 0.0
    %2607 = vadd.xlane.f32.xlu0 %v2606
    %v2608 = vpop.xlane.xlu0 %2607
    %v2609 = vsel %vm2596, %v2592, 0.0
    %2610 = vadd.xlane.f32.xlu0 %v2609
    %v2611 = vpop.xlane.xlu0 %2610
    %v2612 = vsel %vm2596, %v2593, 0.0
    %2613 = vadd.xlane.f32.xlu0 %v2612
    %v2614 = vpop.xlane.xlu0 %2613
    %v2615 = vsel %vm2596, %v2594, 0.0
    %2616 = vadd.xlane.f32.xlu0 %v2615
    %v2617 = vpop.xlane.xlu0 %2616
    %v2618 = vsel %vm2596, %v2595, 0.0
    %2619 = vadd.xlane.f32.xlu0 %v2618
    %v2620 = vpop.xlane.xlu0 %2619
    %v2621 = vmax.f32 %v2599, 1e-24
    %v2622 = vmax.f32 %v2602, 1e-24
    %v2623 = vmax.f32 %v2605, 1e-24
    %v2624 = vmax.f32 %v2608, 1e-24
    %v2625 = vmax.f32 %v2611, 1e-24
    %v2626 = vmax.f32 %v2614, 1e-24
    %v2627 = vmax.f32 %v2617, 1e-24
    %v2628 = vmax.f32 %v2620, 1e-24
    %v2629 = vrsqrt.pop %v2621
    %v2630 = vrsqrt.pop %v2622
    %v2631 = vrsqrt.pop %v2623
    %v2632 = vrsqrt.pop %v2624
    %v2633 = vrsqrt.pop %v2625
    %v2634 = vrsqrt.pop %v2626
    %v2635 = vrsqrt.pop %v2627
    %v2636 = vrsqrt.pop %v2628
    %v2637 = vmul.f32 %v2558, %v2629
    %v2638 = vmul.f32 %v2561, %v2630
    %v2639 = vmul.f32 %v2566, %v2631
    %v2640 = vmul.f32 %v2569, %v2632
    %v2641 = vmul.f32 %v2574, %v2633
    %v2642 = vmul.f32 %v2577, %v2634
    %v2643 = vmul.f32 %v2582, %v2635
    %v2644 = vmul.f32 %v2585, %v2636
    %v2645 = vpack.c.bf16 %v2638, %v2637
    %v2646 = vpack.c.bf16 %v2640, %v2639
    %v2647 = vpack.c.bf16 %v2642, %v2641
    %v2648 = vpack.c.bf16 %v2644, %v2643
    %v2649 = vld [vmem:[%s6] sm:$0xf]
    %v2650 = vld [vmem:[%s6 + $0x4] sm:$0xf]
    %v2651 = vld [vmem:[%s6 + $0x8] sm:$0xf]
    %v2652 = vld [vmem:[%s6 + $0xc] sm:$0xf]
    %v2653 = vld [vmem:[%s6 + $0x10] sm:$0xf]
    %v2654 = vld [vmem:[%s6 + $0x14] sm:$0xf]
    %v2655 = vld [vmem:[%s6 + $0x18] sm:$0xf]
    %v2656 = vld [vmem:[%s6 + $0x1c] sm:$0xf]
    %v2657 = vld [vmem:[%s7] sm:$0x1]
    %v2659 = vlaneseq
    %v2660 = vshrl.u32 %v2659, 7
    %v2661 = vsub.s32 0, %v2660
    %v2662 = vrot.slane %v2657, %v2661
    %v2672 = vunpack.c.l.b16 %v2649
    %v2673 = vunpack.c.l.b16 %v2650
    %v2674 = vunpack.c.l.b16 %v2651
    %v2675 = vunpack.c.l.b16 %v2652
    %v2676 = vunpack.c.l.b16 %v2653
    %v2677 = vunpack.c.l.b16 %v2654
    %v2678 = vunpack.c.l.b16 %v2655
    %v2679 = vunpack.c.l.b16 %v2656
    %v2680 = vpack.c.b16 %v2673, %v2672
    %v2681 = vpack.c.b16 %v2675, %v2674
    %v2682 = vpack.c.b16 %v2677, %v2676
    %v2683 = vpack.c.b16 %v2679, %v2678
    %v2689 = vsel %vm2596, %v2645, 0
    %v2692 = vsel %vm2596, %v2646, 0
    %v2695 = vsel %vm2596, %v2647, 0
    %v2698 = vsel %vm2596, %v2648, 0
    %2700 = vmatprep.subr.bf16.mxu0 0
    %2701 = vmatpush1.bf16.msra.mxu0 %v2680
    %2702 = vmatprep.subr.bf16.mxu0 0
    %2703 = vmatpush1.bf16.msra.mxu0 %v2681
    %2704 = vmatprep.subr.bf16.mxu0 0
    %2705 = vmatpush1.bf16.msra.mxu0 %v2682
    %2706 = vmatprep.subr.bf16.mxu0 0
    %2707 = vmatpush1.bf16.msra.mxu0 %v2683
    %2708 = vmatprep.subr.bf16.mxu0 0
    %2709 = vmatpush1.bf16.msra.mxu0 0
    %2710 = vmatprep.subr.bf16.mxu0 0
    %2711 = vmatpush1.bf16.msra.mxu0 0
    %2712 = vmatprep.subr.bf16.mxu0 0
    %2713 = vmatpush1.bf16.msra.mxu0 0
    %2714 = vmatprep.subr.bf16.mxu0 0
    %2715 = vmatpush1.bf16.msra.mxu0 0
    %2716 = vmatprep.subr.bf16.mxu0 0
    %2717 = vmatpush1.bf16.msra.mxu0 0
    %2718 = vmatprep.subr.bf16.mxu0 0
    %2719 = vmatpush1.bf16.msra.mxu0 0
    %2720 = vmatprep.subr.bf16.mxu0 0
    %2721 = vmatpush1.bf16.msra.mxu0 0
    %2722 = vmatprep.subr.bf16.mxu0 0
    %2723 = vmatpush1.bf16.msra.mxu0 0
    %2724 = vmatprep.subr.bf16.mxu0 0
    %2725 = vmatpush1.bf16.msra.mxu0 0
    %2726 = vmatprep.subr.bf16.mxu0 0
    %2727 = vmatpush1.bf16.msra.mxu0 0
    %2728 = vmatprep.subr.bf16.mxu0 0
    %2729 = vmatpush1.bf16.msra.mxu0 0
    %2730 = vmatprep.subr.bf16.mxu0 0
    %2731 = vmatpush1.bf16.msra.mxu0 0
    %2732 = vmatprep.mubr.bf16.mxu0 0
    %2733 = vmatmul.mubr.bf16.gmra.mrb[0].mxu0 %v2689
    %v2734 = vpop.f32.mrb[0].mxu0
    %v2735 = vadd.f32 %v2662, %v2734
    %v2736 = vpop.f32.mrb[0].mxu0
    %v2737 = vpop.f32.mrb[0].mxu0
    %v2738 = vadd.f32 %v2662, %v2737
    %v2739 = vpop.f32.mrb[0].mxu0
    %2740 = vmatprep.mubr.bf16.mxu0 0
    %2741 = vmatmul.mubr.bf16.gmra.mrb[0].mxu0 %v2692
    %v2742 = vpop.f32.mrb[0].mxu0
    %v2743 = vadd.f32 %v2662, %v2742
    %v2744 = vpop.f32.mrb[0].mxu0
    %v2745 = vpop.f32.mrb[0].mxu0
    %v2746 = vadd.f32 %v2662, %v2745
    %v2747 = vpop.f32.mrb[0].mxu0
    %2748 = vmatprep.mubr.bf16.mxu0 0
    %2749 = vmatmul.mubr.bf16.gmra.mrb[0].mxu0 %v2695
    %v2750 = vpop.f32.mrb[0].mxu0
    %v2751 = vadd.f32 %v2662, %v2750
    %v2752 = vpop.f32.mrb[0].mxu0
    %v2753 = vpop.f32.mrb[0].mxu0
    %v2754 = vadd.f32 %v2662, %v2753
    %v2755 = vpop.f32.mrb[0].mxu0
    %2756 = vmatprep.mubr.bf16.mxu0 0
    %2757 = vmatmul.mubr.bf16.gmra.mrb[0].mxu0 %v2698
    %v2758 = vpop.f32.mrb[0].mxu0
    %v2759 = vadd.f32 %v2662, %v2758
    %v2760 = vpop.f32.mrb[0].mxu0
    %v2761 = vpop.f32.mrb[0].mxu0
    %v2762 = vadd.f32 %v2662, %v2761
    %v2763 = vpop.f32.mrb[0].mxu0
    %2764 = vdwg.mxu0
    %2765 = vmax.xlane.f32.xlu0 %v2735
    %v2766 = vpop.xlane.xlu0 %2765
    %2767 = vmax.xlane.f32.xlu0 %v2738
    %v2768 = vpop.xlane.xlu0 %2767
    %2769 = vmax.xlane.f32.xlu0 %v2743
    %v2770 = vpop.xlane.xlu0 %2769
    %2771 = vmax.xlane.f32.xlu0 %v2746
    %v2772 = vpop.xlane.xlu0 %2771
    %2773 = vmax.xlane.f32.xlu0 %v2751
    %v2774 = vpop.xlane.xlu0 %2773
    %2775 = vmax.xlane.f32.xlu0 %v2754
    %v2776 = vpop.xlane.xlu0 %2775
    %2777 = vmax.xlane.f32.xlu0 %v2759
    %v2778 = vpop.xlane.xlu0 %2777
    %2779 = vmax.xlane.f32.xlu0 %v2762
    %v2780 = vpop.xlane.xlu0 %2779
    %v2781 = vsub.f32 %v2735, %v2766
    %v2782 = vsub.f32 %v2738, %v2768
    %v2783 = vsub.f32 %v2743, %v2770
    %v2784 = vsub.f32 %v2746, %v2772
    %v2785 = vsub.f32 %v2751, %v2774
    %v2786 = vsub.f32 %v2754, %v2776
    %v2787 = vsub.f32 %v2759, %v2778
    %v2788 = vsub.f32 %v2762, %v2780
    %v2789 = vmul.f32 %v2781, 1.442695
    %v2790 = vpow.pop %v2789
    %v2791 = vmul.f32 %v2782, 1.442695
    %v2792 = vpow.pop %v2791
    %v2793 = vmul.f32 %v2783, 1.442695
    %v2794 = vpow.pop %v2793
    %v2795 = vmul.f32 %v2784, 1.442695
    %v2796 = vpow.pop %v2795
    %v2797 = vmul.f32 %v2785, 1.442695
    %v2798 = vpow.pop %v2797
    %v2799 = vmul.f32 %v2786, 1.442695
    %v2800 = vpow.pop %v2799
    %v2801 = vmul.f32 %v2787, 1.442695
    %v2802 = vpow.pop %v2801
    %v2803 = vmul.f32 %v2788, 1.442695
    %v2804 = vpow.pop %v2803
    %2805 = vadd.xlane.f32.xlu0 %v2790
    %v2806 = vpop.xlane.xlu0 %2805
    %2807 = vadd.xlane.f32.xlu0 %v2792
    %v2808 = vpop.xlane.xlu0 %2807
    %2809 = vadd.xlane.f32.xlu0 %v2794
    %v2810 = vpop.xlane.xlu0 %2809
    %2811 = vadd.xlane.f32.xlu0 %v2796
    %v2812 = vpop.xlane.xlu0 %2811
    %2813 = vadd.xlane.f32.xlu0 %v2798
    %v2814 = vpop.xlane.xlu0 %2813
    %2815 = vadd.xlane.f32.xlu0 %v2800
    %v2816 = vpop.xlane.xlu0 %2815
    %2817 = vadd.xlane.f32.xlu0 %v2802
    %v2818 = vpop.xlane.xlu0 %2817
    %2819 = vadd.xlane.f32.xlu0 %v2804
    %v2820 = vpop.xlane.xlu0 %2819
    %v2821 = vlog2.pop %v2806
    %v2822 = vmul.f32 %v2821, 0.6931472
    %v2823 = vlog2.pop %v2808
    %v2824 = vmul.f32 %v2823, 0.6931472
    %v2825 = vlog2.pop %v2810
    %v2826 = vmul.f32 %v2825, 0.6931472
    %v2827 = vlog2.pop %v2812
    %v2828 = vmul.f32 %v2827, 0.6931472
    %v2829 = vlog2.pop %v2814
    %v2830 = vmul.f32 %v2829, 0.6931472
    %v2831 = vlog2.pop %v2816
    %v2832 = vmul.f32 %v2831, 0.6931472
    %v2833 = vlog2.pop %v2818
    %v2834 = vmul.f32 %v2833, 0.6931472
    %v2835 = vlog2.pop %v2820
    %v2836 = vmul.f32 %v2835, 0.6931472
    %v2837 = vsub.f32 %v2781, %v2822
    %v2838 = vsub.f32 %v2782, %v2824
    %v2839 = vsub.f32 %v2783, %v2826
    %v2840 = vsub.f32 %v2784, %v2828
    %v2841 = vsub.f32 %v2785, %v2830
    %v2842 = vsub.f32 %v2786, %v2832
    %v2843 = vsub.f32 %v2787, %v2834
    %v2844 = vsub.f32 %v2788, %v2836
    %2845 = vst [vmem:[#allocation10] sm:$0xff] %v2837
    %2846 = vst [vmem:[#allocation10 + $0x8] sm:$0xff] %v2838
    %2847 = vst [vmem:[#allocation10 + $0x10] sm:$0xff] %v2839
    %2848 = vst [vmem:[#allocation10 + $0x18] sm:$0xff] %v2840
    %2849 = vst [vmem:[#allocation10 + $0x20] sm:$0xff] %v2841
    %2850 = vst [vmem:[#allocation10 + $0x28] sm:$0xff] %v2842
    %2851 = vst [vmem:[#allocation10 + $0x30] sm:$0xff] %v2843
    %2852 = vst [vmem:[#allocation10 + $0x38] sm:$0xff] %v2844
    // Predicated region
    $region42: #{tpu_custom_call.1} parent=1 // pred_check
      _
    $region43: #{tpu_custom_call.1} parent=1 // pred_check_branch
      %2854 = sbr.rel (0) target = $region45
    $region44: #{tpu_custom_call.1} parent=1 // pred_region
      %s2856 = ssub.s32 1024, 1024
      %2857 = vsyncadd [#allocation7], %s2856
      %s2858 = sshll.u32 [#allocation10], 4
      %s2859 = int_to_ptr.vmem [resolvable:$true] %s2858
      %2864 = dma.vmem_to_hbm [thread:$0]  %s2859, 1024, %s8, [#allocation7], 128, 128, 8
    $region45: #{tpu_custom_call.1} parent=1 // pred_fallthru
      _
    // Predicated region
    $region46: #{tpu_custom_call.1} parent=1 // pred_check
      _
    $region47: #{tpu_custom_call.1} parent=1 // pred_check_branch
      %2866 = sbr.rel (0) target = $region49
    $region48: #{tpu_custom_call.1} parent=1 // pred_region
      %2867 = dma.done [#allocation7], 1024
    $region49: #{tpu_custom_call.1} parent=1 // pred_fallthru
      _
    %2868 = vsyncpa [#allocation6], 1
    %2869 = vsyncpa [#allocation9], 1
    %2870 = vsyncpa [#allocation7], 1

</llo_original>
